<compile_context>
chip_gen: v6e
topology: v6e:2x2x1
jax: 0.10.0
libtpu: 0.0.40
codegen_flags: <defaults>
</compile_context>

<pallas_src>
import jax
import jax.numpy as jnp
from jax.experimental import pallas as pl
from jax.experimental.pallas import tpu as pltpu


def _round_up(a, b):
    return (a + b - 1) // b * b


def _hw_config(lane_dense):
    """(default tile rows, scoped-VMEM limit, preferred minimum #tiles)."""
    try:
        cap = int(getattr(pltpu.get_tpu_info(), "vmem_capacity_bytes", 0))
    except Exception:
        cap = 0
    if cap <= 0:
        cap = 64 * 1024 * 1024  # conservative (v7x-class) default
    if cap >= 96 * 1024 * 1024:
        # v5e / v6e class: 128 MiB physical VMEM.
        return 16384, 64 * 1024 * 1024, 2
    # v7x class: 64 MiB physical VMEM, 2 TensorCores -> prefer >= 8 tiles so
    # the "parallel" grid axis load-balances across both cores.
    return (16384 if lane_dense else 8192), 40 * 1024 * 1024, 8


def _choose_tile(n, tile_cap, min_tiles):
    """Pick (tile_n, n_pad): tile_n a multiple of 1024 rows (128 if a single
    tile suffices) so every block satisfies the (8, 128) rule, with bounded
    zero-padding waste."""
    n_min = _round_up(n, 128)
    if n_min <= tile_cap:
        return n_min, n_min                        # single full-extent tile
    k = max(min_tiles, -(-n // tile_cap))          # number of tiles
    t = max(1024, _round_up(-(-n // k), 1024))     # rows per tile
    return t, _round_up(n, t)


def _build_ppca_call(n_pad, d, tile_n, lane_dense, vmem_limit):
    """Build the pallas_call for the fused PPCA quadratic form."""
    num_tiles = n_pad // tile_n
    sub = 128
    g = tile_n // sub  # output slab rows per tile (lane-dense layout)

    if lane_dense:
        def kernel(xz_ref, b_ref, out_ref):
            # y = [ s1*(X - Z W^T) | s2*Z ]   -- one MXU matmul per tile
            y = jnp.dot(xz_ref[...], b_ref[...],
                        preferred_element_type=jnp.float32)
            # Free leading-dim split, then a single cross-lane reduction whose
            # result is stored as a lane-dense (g, 128) slab.
            yy = (y * y).reshape(g, sub, d)
            out_ref[...] = -jnp.sum(yy, axis=-1)

        out_shape = jax.ShapeDtypeStruct((n_pad // sub, sub), jnp.float32)
        out_spec = pl.BlockSpec((g, sub), lambda i: (i, 0))
    else:
        def kernel(xz_ref, b_ref, out_ref):
            y = jnp.dot(xz_ref[...], b_ref[...],
                        preferred_element_type=jnp.float32)
            out_ref[...] = -jnp.sum(y * y, axis=-1, keepdims=True)

        out_shape = jax.ShapeDtypeStruct((n_pad, 1), jnp.float32)
        out_spec = pl.BlockSpec((tile_n, 1), lambda i: (i, 0))

    return pl.pallas_call(
        kernel,
        out_shape=out_shape,
        grid_spec=pl.GridSpec(
            grid=(num_tiles,),
            in_specs=[
                pl.BlockSpec((tile_n, d), lambda i: (i, 0)),  # fused [X|Z]
                pl.BlockSpec((d, d), lambda i: (0, 0)),       # B, grid-resident
            ],
            out_specs=out_spec,
        ),
        compiler_params=pltpu.CompilerParams(
            dimension_semantics=("parallel",),  # independent row tiles
            vmem_limit_bytes=vmem_limit,
        ),
    )


_LANE_DENSE_OK = None


def _lane_dense_supported(d):
    """One-time probe: does Mosaic lower the sublane->lane relayout needed for
    the lane-dense (tile//128, 128) output slab?  Falls back to the known-good
    (tile, 1) column layout otherwise."""
    global _LANE_DENSE_OK
    if _LANE_DENSE_OK is None:
        try:
            call = _build_ppca_call(n_pad=2048, d=d, tile_n=1024,
                                    lane_dense=True,
                                    vmem_limit=32 * 1024 * 1024)
            jax.block_until_ready(
                call(jnp.zeros((2048, d), jnp.float32),
                     jnp.zeros((d, d), jnp.float32)))
            _LANE_DENSE_OK = True
        except Exception:
            _LANE_DENSE_OK = False
    return _LANE_DENSE_OK


def _invoke(XZ, B, n, tile_cap, lane_dense, vmem_limit, min_tiles):
    d = XZ.shape[1]
    tile_n, n_pad = _choose_tile(n, tile_cap, min_tiles)
    if n_pad != n:
        XZ = jnp.pad(XZ, ((0, n_pad - n), (0, 0)))  # zero rows, sliced off
    call = _build_ppca_call(n_pad, d, tile_n, lane_dense, vmem_limit)
    out = call(XZ, B)
    if lane_dense:
        return out.reshape(n_pad)[:n]
    return out[:n, 0]


def ppca_forward(X, Z, W, var, *, tile_n=None):
    """PPCA.forward(X, Z) with parameters (W, var).

    X: [n, dx] f32, Z: [n, dz] f32, W: [dx, dz] f32, var: scalar f32.
    Returns: [n] f32 (the log unnormalised density exponent).
    """
    n, dx = X.shape
    n2, dz = Z.shape
    assert n2 == n and W.shape == (dx, dz)
    f32 = jnp.float32

    X = jnp.asarray(X, f32)
    Z = jnp.asarray(Z, f32)
    W = jnp.asarray(W, f32)
    var = jnp.asarray(var, f32)
    d = dx + dz

    # Fold all scales into one [d, d] operand so the kernel is a single
    # quadratic form:  y = [X|Z] @ B = [ s1*(X - Z W^T) | s2*Z ] and
    # exponent = -rowsum(y*y).  Direct residual => numerically stable.
    s1 = jnp.sqrt(0.5 / var)       # sqrt(0.5 / std**2)
    s2 = jnp.sqrt(jnp.asarray(0.5, f32))
    top = jnp.concatenate([jnp.eye(dx, dtype=f32) * s1,
                           jnp.zeros((dx, dz), f32)], axis=1)
    bot = jnp.concatenate([-W.T * s1,
                           jnp.eye(dz, dtype=f32) * s2], axis=1)
    B = jnp.concatenate([top, bot], axis=0)          # [d, d]

    XZ = jnp.concatenate([X, Z], axis=1)             # fused [n, d] HBM stream

    lane_dense = _lane_dense_supported(d)
    default_tile, vmem_limit, min_tiles = _hw_config(lane_dense)
    tile_cap = default_tile if tile_n is None else max(128, int(tile_n))

    try:
        return _invoke(XZ, B, n, tile_cap, lane_dense, vmem_limit, min_tiles)
    except Exception:
        # Last-resort safe configuration (small tiles, column output) so the
        # script stays functional even if a tuned config trips a VMEM or
        # lowering limit on an unexpected toolchain.
        return _invoke(XZ, B, n, 4096, False, 32 * 1024 * 1024, 1)


def ppca_forward_ref(X, Z, W, var):
    """Pure-JAX reference matching the PyTorch forward exactly."""
    std = var ** 0.5
    X0 = X - Z @ W.T
    return -0.5 / std ** 2 * jnp.sum(X0 ** 2, axis=-1) - 0.5 * jnp.sum(Z ** 2, axis=-1)


if __name__ == "__main__":
    # Deterministic parameters & inputs (synthetic; no checkpoint load).
    key = jax.random.PRNGKey(0)
    kx, kz, kw = jax.random.split(key, 3)

    # Small shapes consistent with the module's forward.
    n, dx, dz = 8, 32, 16
    X = jax.random.normal(kx, (n, dx), dtype=jnp.float32)
    Z = jax.random.normal(kz, (n, dz), dtype=jnp.float32)
    W = jax.random.normal(kw, (dx, dz), dtype=jnp.float32) * 0.1
    var = jnp.float32(0.5)

    out = ppca_forward(X, Z, W, var)
    jax.block_until_ready(out)
    ref = ppca_forward_ref(X, Z, W, var)
    assert out.shape == (n,)
    assert jnp.allclose(out, ref, rtol=1e-4, atol=1e-3), (out, ref)

    # Second check: multiple grid tiles + a partial (zero-padded) last tile.
    n2 = 2500
    X2 = jax.random.normal(kx, (n2, dx), dtype=jnp.float32)
    Z2 = jax.random.normal(kz, (n2, dz), dtype=jnp.float32)
    out2 = ppca_forward(X2, Z2, W, var, tile_n=1024)
    jax.block_until_ready(out2)
    ref2 = ppca_forward_ref(X2, Z2, W, var)
    assert out2.shape == (n2,)
    assert jnp.allclose(out2, ref2, rtol=1e-4, atol=1e-3), (out2, ref2)

    print("KERNEL_OK")
</pallas_src>

<mosaic_0001>
module attributes {stable_mosaic.version = 11 : i64} {
  func.func @kernel(%arg0: i32, %arg1: memref<1024x48xf32, #tpu.memory_space<vmem>>, %arg2: memref<48x48xf32, #tpu.memory_space<vmem>>, %arg3: memref<8x128xf32, #tpu.memory_space<vmem>>) attributes {dimension_semantics = [#tpu.dimension_semantics<parallel>], iteration_bounds = array<i64: 2>, scalar_prefetch = 0 : i64, scratch_operands = 0 : i64, tpu.core_type = #tpu.core_type<tc>, window_params = [{transform_indices = @transform_0, window_bounds = array<i64: 1024, 48>}, {pipeline_mode = #tpu.pipeline_mode<synchronous>, transform_indices = @transform_1, window_bounds = array<i64: 48, 48>}, {transform_indices = @transform_2, window_bounds = array<i64: 8, 128>}]} {
    %c0 = arith.constant 0 : index
    %c0_0 = arith.constant 0 : index
    %0 = vector.load %arg1[%c0, %c0_0] : memref<1024x48xf32, #tpu.memory_space<vmem>>, vector<1024x48xf32>
    %c0_1 = arith.constant 0 : index
    %c0_2 = arith.constant 0 : index
    %1 = vector.load %arg2[%c0_1, %c0_2] : memref<48x48xf32, #tpu.memory_space<vmem>>, vector<48x48xf32>
    %cst = arith.constant dense<0.000000e+00> : vector<1024x48xf32>
    %2 = tpu.matmul %0, %1, %cst {dimension_numbers = #tpu.dot_dimension_numbers<[1], [0], [0], [1], [0, 0, 1, 1], [], []>} : vector<1024x48xf32>, vector<48x48xf32>, vector<1024x48xf32> -> vector<1024x48xf32>
    %3 = arith.mulf %2, %2 : vector<1024x48xf32>
    %4 = vector.shape_cast %3 : vector<1024x48xf32> to vector<8x128x48xf32>
    %cst_3 = arith.constant dense<0.000000e+00> : vector<8x128xf32>
    %5 = vector.multi_reduction <add>, %4, %cst_3 [2] : vector<8x128x48xf32> to vector<8x128xf32>
    %cst_4 = arith.constant 0.000000e+00 : f32
    %6 = vector.broadcast %cst_4 : f32 to vector<8x128xf32>
    %7 = arith.subf %6, %5 : vector<8x128xf32>
    %c0_5 = arith.constant 0 : index
    %c0_6 = arith.constant 0 : index
    %8 = vector.load %arg3[%c0_5, %c0_6] : memref<8x128xf32, #tpu.memory_space<vmem>>, vector<8x128xf32>
    tpu.vector_store %arg3[%c0_5, %c0_6], %7 {strides = array<i32>} : memref<8x128xf32, #tpu.memory_space<vmem>>, vector<8x128xf32>,
    return
  }
  func.func @transform_0(%arg0: i32) -> (i32, i32) {
    %c0_i32 = arith.constant 0 : i32
    %c0_i32_0 = arith.constant 0 : i32
    return %arg0, %c0_i32 : i32, i32
  }
  func.func @transform_1(%arg0: i32) -> (i32, i32) {
    %c0_i32 = arith.constant 0 : i32
    %c0_i32_0 = arith.constant 0 : i32
    %c0_i32_1 = arith.constant 0 : i32
    return %c0_i32, %c0_i32_0 : i32, i32
  }
  func.func @transform_2(%arg0: i32) -> (i32, i32) {
    %c0_i32 = arith.constant 0 : i32
    %c0_i32_0 = arith.constant 0 : i32
    return %arg0, %c0_i32 : i32, i32
  }
}

module attributes {stable_mosaic.version = 11 : i64} {
  func.func @kernel(%arg0: i32, %arg1: memref<128x48xf32, #tpu.memory_space<vmem>>, %arg2: memref<48x48xf32, #tpu.memory_space<vmem>>, %arg3: memref<128x1xf32, #tpu.memory_space<vmem>>) attributes {dimension_semantics = [#tpu.dimension_semantics<parallel>], iteration_bounds = array<i64: 1>, scalar_prefetch = 0 : i64, scratch_operands = 0 : i64, tpu.core_type = #tpu.core_type<tc>, window_params = [{transform_indices = @transform_0, window_bounds = array<i64: 128, 48>}, {pipeline_mode = #tpu.pipeline_mode<synchronous>, transform_indices = @transform_1, window_bounds = array<i64: 48, 48>}, {transform_indices = @transform_2, window_bounds = array<i64: 128, 1>}]} {
    %c0 = arith.constant 0 : index
    %c0_0 = arith.constant 0 : index
    %0 = vector.load %arg1[%c0, %c0_0] : memref<128x48xf32, #tpu.memory_space<vmem>>, vector<128x48xf32>
    %c0_1 = arith.constant 0 : index
    %c0_2 = arith.constant 0 : index
    %1 = vector.load %arg2[%c0_1, %c0_2] : memref<48x48xf32, #tpu.memory_space<vmem>>, vector<48x48xf32>
    %cst = arith.constant dense<0.000000e+00> : vector<128x48xf32>
    %2 = tpu.matmul %0, %1, %cst {dimension_numbers = #tpu.dot_dimension_numbers<[1], [0], [0], [1], [0, 0, 1, 1], [], []>} : vector<128x48xf32>, vector<48x48xf32>, vector<128x48xf32> -> vector<128x48xf32>
    %3 = arith.mulf %2, %2 : vector<128x48xf32>
    %cst_3 = arith.constant dense<0.000000e+00> : vector<128xf32>
    %4 = vector.multi_reduction <add>, %3, %cst_3 [1] : vector<128x48xf32> to vector<128xf32>
    %5 = vector.shape_cast %4 : vector<128xf32> to vector<128x1xf32>
    %cst_4 = arith.constant 0.000000e+00 : f32
    %6 = vector.broadcast %cst_4 : f32 to vector<128x1xf32>
    %7 = arith.subf %6, %5 : vector<128x1xf32>
    %c0_5 = arith.constant 0 : index
    %c0_6 = arith.constant 0 : index
    %8 = vector.load %arg3[%c0_5, %c0_6] : memref<128x1xf32, #tpu.memory_space<vmem>>, vector<128x1xf32>
    tpu.vector_store %arg3[%c0_5, %c0_6], %7 {strides = array<i32>} : memref<128x1xf32, #tpu.memory_space<vmem>>, vector<128x1xf32>,
    return
  }
  func.func @transform_0(%arg0: i32) -> (i32, i32) {
    %c0_i32 = arith.constant 0 : i32
    %c0_i32_0 = arith.constant 0 : i32
    return %arg0, %c0_i32 : i32, i32
  }
  func.func @transform_1(%arg0: i32) -> (i32, i32) {
    %c0_i32 = arith.constant 0 : i32
    %c0_i32_0 = arith.constant 0 : i32
    %c0_i32_1 = arith.constant 0 : i32
    return %c0_i32, %c0_i32_0 : i32, i32
  }
  func.func @transform_2(%arg0: i32) -> (i32, i32) {
    %c0_i32 = arith.constant 0 : i32
    %c0_i32_0 = arith.constant 0 : i32
    return %arg0, %c0_i32 : i32, i32
  }
}

module attributes {stable_mosaic.version = 11 : i64} {
  func.func @kernel(%arg0: i32, %arg1: memref<128x48xf32, #tpu.memory_space<vmem>>, %arg2: memref<48x48xf32, #tpu.memory_space<vmem>>, %arg3: memref<128x1xf32, #tpu.memory_space<vmem>>) attributes {dimension_semantics = [#tpu.dimension_semantics<parallel>], iteration_bounds = array<i64: 1>, scalar_prefetch = 0 : i64, scratch_operands = 0 : i64, tpu.core_type = #tpu.core_type<tc>, window_params = [{transform_indices = @transform_0, window_bounds = array<i64: 128, 48>}, {pipeline_mode = #tpu.pipeline_mode<synchronous>, transform_indices = @transform_1, window_bounds = array<i64: 48, 48>}, {transform_indices = @transform_2, window_bounds = array<i64: 128, 1>}]} {
    %c0 = arith.constant 0 : index
    %c0_0 = arith.constant 0 : index
    %0 = vector.load %arg1[%c0, %c0_0] : memref<128x48xf32, #tpu.memory_space<vmem>>, vector<128x48xf32>
    %c0_1 = arith.constant 0 : index
    %c0_2 = arith.constant 0 : index
    %1 = vector.load %arg2[%c0_1, %c0_2] : memref<48x48xf32, #tpu.memory_space<vmem>>, vector<48x48xf32>
    %cst = arith.constant dense<0.000000e+00> : vector<128x48xf32>
    %2 = tpu.matmul %0, %1, %cst {dimension_numbers = #tpu.dot_dimension_numbers<[1], [0], [0], [1], [0, 0, 1, 1], [], []>} : vector<128x48xf32>, vector<48x48xf32>, vector<128x48xf32> -> vector<128x48xf32>
    %3 = arith.mulf %2, %2 : vector<128x48xf32>
    %cst_3 = arith.constant dense<0.000000e+00> : vector<128xf32>
    %4 = vector.multi_reduction <add>, %3, %cst_3 [1] : vector<128x48xf32> to vector<128xf32>
    %5 = vector.shape_cast %4 : vector<128xf32> to vector<128x1xf32>
    %cst_4 = arith.constant 0.000000e+00 : f32
    %6 = vector.broadcast %cst_4 : f32 to vector<128x1xf32>
    %7 = arith.subf %6, %5 : vector<128x1xf32>
    %c0_5 = arith.constant 0 : index
    %c0_6 = arith.constant 0 : index
    %8 = vector.load %arg3[%c0_5, %c0_6] : memref<128x1xf32, #tpu.memory_space<vmem>>, vector<128x1xf32>
    tpu.vector_store %arg3[%c0_5, %c0_6], %7 {strides = array<i32>} : memref<128x1xf32, #tpu.memory_space<vmem>>, vector<128x1xf32>,
    return
  }
  func.func @transform_0(%arg0: i32) -> (i32, i32) {
    %c0_i32 = arith.constant 0 : i32
    %c0_i32_0 = arith.constant 0 : i32
    return %arg0, %c0_i32 : i32, i32
  }
  func.func @transform_1(%arg0: i32) -> (i32, i32) {
    %c0_i32 = arith.constant 0 : i32
    %c0_i32_0 = arith.constant 0 : i32
    %c0_i32_1 = arith.constant 0 : i32
    return %c0_i32, %c0_i32_0 : i32, i32
  }
  func.func @transform_2(%arg0: i32) -> (i32, i32) {
    %c0_i32 = arith.constant 0 : i32
    %c0_i32_0 = arith.constant 0 : i32
    return %arg0, %c0_i32 : i32, i32
  }
}

</mosaic_0001>

<llo_original>
// kernel: tpu_custom_call.1
$region0: #{tpu_custom_call.1}
  #allocation0 [shape = 'u32[]', space=smem, size = 0x4, offset = 0x4, fixed_abs, tag = 'smem constant byte address 0x4 - core index']
  #allocation1 [shape = 'u32[144,128]{1,0:T(1,128)}', space=vmem, size = 0x12000, scoped, tag = 'internal scratch']
  %s0 = inlined_call_operand.vmem [shape: f32[2048,48], index: 0, kind: input, shape index: {}]
  %s1 = inlined_call_operand.vmem [shape: f32[48,48], index: 1, kind: input, shape index: {}]
  %s2 = inlined_call_operand.hbm [shape: f32[16,128], index: 2, kind: output, shape index: {}]
  %s3 = sld [smem:[#allocation0]]
  $region41: #{tpu_custom_call.1} parent=0
    _
  %s5 = ssub.s32 1, %s3
  %s6 = scalar_select 0, %s5, %s3
  $region1: #{tpu_custom_call.1} parent=0
    #allocation2 [shape = 'u8[8192]{0}', space=vmem, size = 0x2000, scoped, tag = 'output window, operand 0']
    #allocation3 [shape = 's32[2]{0}', space=sflag, size = 0x8, scoped, tag = 'scoped memory for tpu_custom_call.1']
    %7 = vsyncpa [#allocation3], 0
    %s8 = scalar_lea.sflag [#allocation3], 1
    %9 = vsyncpa %s8, 0
    loop: start=0, step=1, limit=4
    $region2: #{tpu_custom_call.1} parent=1 // loop_pre_header
      _
    $region3: #{tpu_custom_call.1} parent=1 // loop_header
      %s11 = sphi 0, %s15
      %p12 = scmp.ge.s32.totalorder %s11, 4
      %s21 = sphi 0, %s23
      %s24 = sphi 0, %s21
      %s25 = sphi 0, %s24
      %s41 = sphi 0, %s25
      %s45 = sphi 0, %s45
      %s47 = sphi 0, %s45
      %s48 = sphi 0, %s47
      %s62 = sphi 0, %s48
      %s68 = sphi 0, %s70
      %s71 = sphi 0, %s68
      %s72 = sphi 0, %s71
      %s88 = sphi 0, %s72
    $region4: #{tpu_custom_call.1} parent=1 // loop_header_branch
      %14 = sbr.rel (%p12) target = $region8
    $region5: #{tpu_custom_call.1} parent=1 // loop_body
      %s16 = ssub.s32 %s11, 1
      %s17 = ssub.s32 %s11, 2
      %s18 = sadd.s32 %s11, 1
      %s19 = ssub.s32 %s11, %s18
      %p20 = scmp.eq.s32.totalorder %s19, 0
      %s22 = sadd.s32 %s21, 1
      %s23 = scalar_select %p20, %s21, %s22
      %p26 = pneg %p20
      %p27 = scmp.eq.s32.totalorder %s11, 1
      %p28 = por %p26, %p27
      %p29 = scmp.ne.s32.totalorder %s21, %s24
      %p30 = scmp.eq.s32.totalorder %s11, 0
      %p31 = por %p29, %p30
      %p32 = scmp.ne.s32.totalorder %s21, %s24
      %p33 = scmp.eq.s32.totalorder %s16, 1
      %p34 = por %p32, %p33
      %p35 = scmp.ne.s32.totalorder %s24, %s25
      %p36 = scmp.eq.s32.totalorder %s16, 0
      %p37 = por %p35, %p36
      %p38 = scmp.ne.s32.totalorder %s24, %s25
      %p39 = scmp.eq.s32.totalorder %s17, 1
      %p40 = por %p38, %p39
      %p42 = scmp.ne.s32.totalorder %s25, %s41
      %p43 = scmp.eq.s32.totalorder %s17, 0
      %p44 = por %p42, %p43
      %s46 = sadd.s32 %s45, 1
      %p49 = scmp.eq.s32.totalorder %s11, 1
      %p50 = scmp.ne.s32.totalorder %s45, %s47
      %p51 = scmp.eq.s32.totalorder %s11, 0
      %p52 = por %p50, %p51
      %p53 = scmp.ne.s32.totalorder %s45, %s47
      %p54 = scmp.eq.s32.totalorder %s16, 1
      %p55 = por %p53, %p54
      %p56 = scmp.ne.s32.totalorder %s47, %s48
      %p57 = scmp.eq.s32.totalorder %s16, 0
      %p58 = por %p56, %p57
      %p59 = scmp.ne.s32.totalorder %s47, %s48
      %p60 = scmp.eq.s32.totalorder %s17, 1
      %p61 = por %p59, %p60
      %p63 = scmp.ne.s32.totalorder %s48, %s62
      %p64 = scmp.eq.s32.totalorder %s17, 0
      %p65 = por %p63, %p64
      %s66 = ssub.s32 %s11, %s18
      %p67 = scmp.eq.s32.totalorder %s66, 0
      %s69 = sadd.s32 %s68, 1
      %s70 = scalar_select %p67, %s68, %s69
      %p73 = pneg %p67
      %p74 = scmp.eq.s32.totalorder %s11, 1
      %p75 = por %p73, %p74
      %p76 = scmp.ne.s32.totalorder %s68, %s71
      %p77 = scmp.eq.s32.totalorder %s11, 0
      %p78 = por %p76, %p77
      %p79 = scmp.ne.s32.totalorder %s68, %s71
      %p80 = scmp.eq.s32.totalorder %s16, 1
      %p81 = por %p79, %p80
      %p82 = scmp.ne.s32.totalorder %s71, %s72
      %p83 = scmp.eq.s32.totalorder %s16, 0
      %p84 = por %p82, %p83
      %p85 = scmp.ne.s32.totalorder %s71, %s72
      %p86 = scmp.eq.s32.totalorder %s17, 1
      %p87 = por %p85, %p86
      %p89 = scmp.ne.s32.totalorder %s72, %s88
      %p90 = scmp.eq.s32.totalorder %s17, 0
      %p91 = por %p89, %p90
      %p92 = scmp.le.s32.totalorder 1, %s11
      %p93 = scmp.lt.s32.totalorder %s11, 3
      %p94 = pnand %p92, %p93
      %p95 = pneg %p94
      // Predicated region
      $region9: #{tpu_custom_call.1} parent=5 // pred_check
        _
      $region10: #{tpu_custom_call.1} parent=5 // pred_check_branch
        %97 = sbr.rel (%p94) target = $region12
      $region11: #{tpu_custom_call.1} parent=5 // pred_region
        %s98 = ssub.s32 %s11, 1
        // Predicated region
        $region13: #{tpu_custom_call.1} parent=11 // pred_check
          %p99 = pneg %p58
        $region14: #{tpu_custom_call.1} parent=11 // pred_check_branch
          %101 = sbr.rel (%p99) target = $region16
        $region15: #{tpu_custom_call.1} parent=11 // pred_region
          _
        $region16: #{tpu_custom_call.1} parent=11 // pred_fallthru
          _
      $region12: #{tpu_custom_call.1} parent=5 // pred_fallthru
        _
      %p102 = scmp.lt.s32.totalorder %s11, 2
      // Predicated region
      $region17: #{tpu_custom_call.1} parent=5 // pred_check
        %p103 = pneg %p102
      $region18: #{tpu_custom_call.1} parent=5 // pred_check_branch
        %105 = sbr.rel (%p103) target = $region20
      $region19: #{tpu_custom_call.1} parent=5 // pred_region
        // Predicated region
        $region21: #{tpu_custom_call.1} parent=19 // pred_check
          %p106 = pneg %p31
        $region22: #{tpu_custom_call.1} parent=19 // pred_check_branch
          %108 = sbr.rel (%p106) target = $region24
        $region23: #{tpu_custom_call.1} parent=19 // pred_region
          %s109 = smul.u32 128, %s11
          %p110 = scmp.lt.s32.totalorder %s109, 255
          %s111 = scalar_select %p110, %s109, 255
          %s112 = smul.addr %s111, 8
          %s113 = scalar_lea.vmem %s0, %s112
          %s114 = smul.u32 128, %s11
        $region24: #{tpu_custom_call.1} parent=19 // pred_fallthru
          _
      $region20: #{tpu_custom_call.1} parent=5 // pred_fallthru
        _
      %p115 = scmp.le.s32.totalorder 1, %s11
      %p116 = scmp.lt.s32.totalorder %s11, 3
      %p117 = pnand %p115, %p116
      %p118 = pneg %p117
      // Predicated region
      $region25: #{tpu_custom_call.1} parent=5 // pred_check
        _
      $region26: #{tpu_custom_call.1} parent=5 // pred_check_branch
        %120 = sbr.rel (%p117) target = $region28
      $region27: #{tpu_custom_call.1} parent=5 // pred_region
        %s121 = ssub.s32 %s11, 1
        %s122 = smul.u32 128, %s16
        %p123 = scmp.lt.s32.totalorder %s122, 255
        %s124 = scalar_select %p123, %s122, 255
        %s125 = smul.addr %s124, 8
        %s126 = scalar_lea.vmem %s0, %s125
        %p127 = pneg %p37
        %p128 = pneg %p34
        %p129 = pneg %p58
        %p130 = pneg %p55
        %p131 = pneg %p84
        %p132 = pneg %p81
        %s133 = sand.u32 %s71, 1
        %s134 = scalar_lea.sflag [#allocation3], %s133
        %s135 = sand.u32 %s71, 1
        %s136 = smul.addr %s135, 8
        %s137 = scalar_lea.vmem [#allocation2], %s136
        %s138 = smul.u32 128, %s16
        %p139 = scmp.lt.s32.totalorder %s138, 255
        %s140 = scalar_select %p139, %s138, 255
        %s141 = smul.addr %s140, 8
        %s142 = scalar_lea.vmem %s0, %s141
        %s143 = smul.u32 128, %s16
        %v144 = vld [vmem:[%s142] sm:$0xff]
        %v145 = vld [vmem:[%s142 + $0x8] sm:$0xff]
        %v146 = vld [vmem:[%s142 + $0x10] sm:$0xff]
        %v147 = vld [vmem:[%s142 + $0x18] sm:$0xff]
        %v148 = vld [vmem:[%s142 + $0x20] sm:$0xff]
        %v149 = vld [vmem:[%s142 + $0x28] sm:$0xff]
        %v150 = vld [vmem:[%s142 + $0x30] sm:$0xff]
        %v151 = vld [vmem:[%s142 + $0x38] sm:$0xff]
        %v152 = vld [vmem:[%s142 + $0x40] sm:$0xff]
        %v153 = vld [vmem:[%s142 + $0x48] sm:$0xff]
        %v154 = vld [vmem:[%s142 + $0x50] sm:$0xff]
        %v155 = vld [vmem:[%s142 + $0x58] sm:$0xff]
        %v156 = vld [vmem:[%s142 + $0x60] sm:$0xff]
        %v157 = vld [vmem:[%s142 + $0x68] sm:$0xff]
        %v158 = vld [vmem:[%s142 + $0x70] sm:$0xff]
        %v159 = vld [vmem:[%s142 + $0x78] sm:$0xff]
        %v160 = vld [vmem:[%s142 + $0x80] sm:$0xff]
        %v161 = vld [vmem:[%s142 + $0x88] sm:$0xff]
        %v162 = vld [vmem:[%s142 + $0x90] sm:$0xff]
        %v163 = vld [vmem:[%s142 + $0x98] sm:$0xff]
        %v164 = vld [vmem:[%s142 + $0xa0] sm:$0xff]
        %v165 = vld [vmem:[%s142 + $0xa8] sm:$0xff]
        %v166 = vld [vmem:[%s142 + $0xb0] sm:$0xff]
        %v167 = vld [vmem:[%s142 + $0xb8] sm:$0xff]
        %v168 = vld [vmem:[%s142 + $0xc0] sm:$0xff]
        %v169 = vld [vmem:[%s142 + $0xc8] sm:$0xff]
        %v170 = vld [vmem:[%s142 + $0xd0] sm:$0xff]
        %v171 = vld [vmem:[%s142 + $0xd8] sm:$0xff]
        %v172 = vld [vmem:[%s142 + $0xe0] sm:$0xff]
        %v173 = vld [vmem:[%s142 + $0xe8] sm:$0xff]
        %v174 = vld [vmem:[%s142 + $0xf0] sm:$0xff]
        %v175 = vld [vmem:[%s142 + $0xf8] sm:$0xff]
        %v176 = vld [vmem:[%s142 + $0x100] sm:$0xff]
        %v177 = vld [vmem:[%s142 + $0x108] sm:$0xff]
        %v178 = vld [vmem:[%s142 + $0x110] sm:$0xff]
        %v179 = vld [vmem:[%s142 + $0x118] sm:$0xff]
        %v180 = vld [vmem:[%s142 + $0x120] sm:$0xff]
        %v181 = vld [vmem:[%s142 + $0x128] sm:$0xff]
        %v182 = vld [vmem:[%s142 + $0x130] sm:$0xff]
        %v183 = vld [vmem:[%s142 + $0x138] sm:$0xff]
        %v184 = vld [vmem:[%s142 + $0x140] sm:$0xff]
        %v185 = vld [vmem:[%s142 + $0x148] sm:$0xff]
        %v186 = vld [vmem:[%s142 + $0x150] sm:$0xff]
        %v187 = vld [vmem:[%s142 + $0x158] sm:$0xff]
        %v188 = vld [vmem:[%s142 + $0x160] sm:$0xff]
        %v189 = vld [vmem:[%s142 + $0x168] sm:$0xff]
        %v190 = vld [vmem:[%s142 + $0x170] sm:$0xff]
        %v191 = vld [vmem:[%s142 + $0x178] sm:$0xff]
        %v192 = vld [vmem:[%s142 + $0x180] sm:$0xff]
        %v193 = vld [vmem:[%s142 + $0x188] sm:$0xff]
        %v194 = vld [vmem:[%s142 + $0x190] sm:$0xff]
        %v195 = vld [vmem:[%s142 + $0x198] sm:$0xff]
        %v196 = vld [vmem:[%s142 + $0x1a0] sm:$0xff]
        %v197 = vld [vmem:[%s142 + $0x1a8] sm:$0xff]
        %v198 = vld [vmem:[%s142 + $0x1b0] sm:$0xff]
        %v199 = vld [vmem:[%s142 + $0x1b8] sm:$0xff]
        %v200 = vld [vmem:[%s142 + $0x1c0] sm:$0xff]
        %v201 = vld [vmem:[%s142 + $0x1c8] sm:$0xff]
        %v202 = vld [vmem:[%s142 + $0x1d0] sm:$0xff]
        %v203 = vld [vmem:[%s142 + $0x1d8] sm:$0xff]
        %v204 = vld [vmem:[%s142 + $0x1e0] sm:$0xff]
        %v205 = vld [vmem:[%s142 + $0x1e8] sm:$0xff]
        %v206 = vld [vmem:[%s142 + $0x1f0] sm:$0xff]
        %v207 = vld [vmem:[%s142 + $0x1f8] sm:$0xff]
        %v208 = vld [vmem:[%s142 + $0x200] sm:$0xff]
        %v209 = vld [vmem:[%s142 + $0x208] sm:$0xff]
        %v210 = vld [vmem:[%s142 + $0x210] sm:$0xff]
        %v211 = vld [vmem:[%s142 + $0x218] sm:$0xff]
        %v212 = vld [vmem:[%s142 + $0x220] sm:$0xff]
        %v213 = vld [vmem:[%s142 + $0x228] sm:$0xff]
        %v214 = vld [vmem:[%s142 + $0x230] sm:$0xff]
        %v215 = vld [vmem:[%s142 + $0x238] sm:$0xff]
        %v216 = vld [vmem:[%s142 + $0x240] sm:$0xff]
        %v217 = vld [vmem:[%s142 + $0x248] sm:$0xff]
        %v218 = vld [vmem:[%s142 + $0x250] sm:$0xff]
        %v219 = vld [vmem:[%s142 + $0x258] sm:$0xff]
        %v220 = vld [vmem:[%s142 + $0x260] sm:$0xff]
        %v221 = vld [vmem:[%s142 + $0x268] sm:$0xff]
        %v222 = vld [vmem:[%s142 + $0x270] sm:$0xff]
        %v223 = vld [vmem:[%s142 + $0x278] sm:$0xff]
        %v224 = vld [vmem:[%s142 + $0x280] sm:$0xff]
        %v225 = vld [vmem:[%s142 + $0x288] sm:$0xff]
        %v226 = vld [vmem:[%s142 + $0x290] sm:$0xff]
        %v227 = vld [vmem:[%s142 + $0x298] sm:$0xff]
        %v228 = vld [vmem:[%s142 + $0x2a0] sm:$0xff]
        %v229 = vld [vmem:[%s142 + $0x2a8] sm:$0xff]
        %v230 = vld [vmem:[%s142 + $0x2b0] sm:$0xff]
        %v231 = vld [vmem:[%s142 + $0x2b8] sm:$0xff]
        %v232 = vld [vmem:[%s142 + $0x2c0] sm:$0xff]
        %v233 = vld [vmem:[%s142 + $0x2c8] sm:$0xff]
        %v234 = vld [vmem:[%s142 + $0x2d0] sm:$0xff]
        %v235 = vld [vmem:[%s142 + $0x2d8] sm:$0xff]
        %v236 = vld [vmem:[%s142 + $0x2e0] sm:$0xff]
        %v237 = vld [vmem:[%s142 + $0x2e8] sm:$0xff]
        %v238 = vld [vmem:[%s142 + $0x2f0] sm:$0xff]
        %v239 = vld [vmem:[%s142 + $0x2f8] sm:$0xff]
        %v240 = vld [vmem:[%s142 + $0x300] sm:$0xff]
        %v241 = vld [vmem:[%s142 + $0x308] sm:$0xff]
        %v242 = vld [vmem:[%s142 + $0x310] sm:$0xff]
        %v243 = vld [vmem:[%s142 + $0x318] sm:$0xff]
        %v244 = vld [vmem:[%s142 + $0x320] sm:$0xff]
        %v245 = vld [vmem:[%s142 + $0x328] sm:$0xff]
        %v246 = vld [vmem:[%s142 + $0x330] sm:$0xff]
        %v247 = vld [vmem:[%s142 + $0x338] sm:$0xff]
        %v248 = vld [vmem:[%s142 + $0x340] sm:$0xff]
        %v249 = vld [vmem:[%s142 + $0x348] sm:$0xff]
        %v250 = vld [vmem:[%s142 + $0x350] sm:$0xff]
        %v251 = vld [vmem:[%s142 + $0x358] sm:$0xff]
        %v252 = vld [vmem:[%s142 + $0x360] sm:$0xff]
        %v253 = vld [vmem:[%s142 + $0x368] sm:$0xff]
        %v254 = vld [vmem:[%s142 + $0x370] sm:$0xff]
        %v255 = vld [vmem:[%s142 + $0x378] sm:$0xff]
        %v256 = vld [vmem:[%s142 + $0x380] sm:$0xff]
        %v257 = vld [vmem:[%s142 + $0x388] sm:$0xff]
        %v258 = vld [vmem:[%s142 + $0x390] sm:$0xff]
        %v259 = vld [vmem:[%s142 + $0x398] sm:$0xff]
        %v260 = vld [vmem:[%s142 + $0x3a0] sm:$0xff]
        %v261 = vld [vmem:[%s142 + $0x3a8] sm:$0xff]
        %v262 = vld [vmem:[%s142 + $0x3b0] sm:$0xff]
        %v263 = vld [vmem:[%s142 + $0x3b8] sm:$0xff]
        %v264 = vld [vmem:[%s142 + $0x3c0] sm:$0xff]
        %v265 = vld [vmem:[%s142 + $0x3c8] sm:$0xff]
        %v266 = vld [vmem:[%s142 + $0x3d0] sm:$0xff]
        %v267 = vld [vmem:[%s142 + $0x3d8] sm:$0xff]
        %v268 = vld [vmem:[%s142 + $0x3e0] sm:$0xff]
        %v269 = vld [vmem:[%s142 + $0x3e8] sm:$0xff]
        %v270 = vld [vmem:[%s142 + $0x3f0] sm:$0xff]
        %v271 = vld [vmem:[%s142 + $0x3f8] sm:$0xff]
        %v272 = vld [vmem:[%s1] sm:$0xff]
        %v273 = vld [vmem:[%s1 + $0x8] sm:$0xff]
        %v274 = vld [vmem:[%s1 + $0x10] sm:$0xff]
        %v275 = vld [vmem:[%s1 + $0x18] sm:$0xff]
        %v276 = vld [vmem:[%s1 + $0x20] sm:$0xff]
        %v277 = vld [vmem:[%s1 + $0x28] sm:$0xff]
        %vm278 = vcmask 392192
        %v280 = vsel %vm278, %v144, 0
        %v283 = vsel %vm278, %v145, 0
        %v286 = vsel %vm278, %v146, 0
        %v289 = vsel %vm278, %v147, 0
        %v292 = vsel %vm278, %v148, 0
        %v295 = vsel %vm278, %v149, 0
        %v298 = vsel %vm278, %v150, 0
        %v301 = vsel %vm278, %v151, 0
        %v304 = vsel %vm278, %v152, 0
        %v307 = vsel %vm278, %v153, 0
        %v310 = vsel %vm278, %v154, 0
        %v313 = vsel %vm278, %v155, 0
        %v316 = vsel %vm278, %v156, 0
        %v319 = vsel %vm278, %v157, 0
        %v322 = vsel %vm278, %v158, 0
        %v325 = vsel %vm278, %v159, 0
        %v328 = vsel %vm278, %v160, 0
        %v331 = vsel %vm278, %v161, 0
        %v334 = vsel %vm278, %v162, 0
        %v337 = vsel %vm278, %v163, 0
        %v340 = vsel %vm278, %v164, 0
        %v343 = vsel %vm278, %v165, 0
        %v346 = vsel %vm278, %v166, 0
        %v349 = vsel %vm278, %v167, 0
        %v352 = vsel %vm278, %v168, 0
        %v355 = vsel %vm278, %v169, 0
        %v358 = vsel %vm278, %v170, 0
        %v361 = vsel %vm278, %v171, 0
        %v364 = vsel %vm278, %v172, 0
        %v367 = vsel %vm278, %v173, 0
        %v370 = vsel %vm278, %v174, 0
        %v373 = vsel %vm278, %v175, 0
        %v376 = vsel %vm278, %v176, 0
        %v379 = vsel %vm278, %v177, 0
        %v382 = vsel %vm278, %v178, 0
        %v385 = vsel %vm278, %v179, 0
        %v388 = vsel %vm278, %v180, 0
        %v391 = vsel %vm278, %v181, 0
        %v394 = vsel %vm278, %v182, 0
        %v397 = vsel %vm278, %v183, 0
        %v400 = vsel %vm278, %v184, 0
        %v403 = vsel %vm278, %v185, 0
        %v406 = vsel %vm278, %v186, 0
        %v409 = vsel %vm278, %v187, 0
        %v412 = vsel %vm278, %v188, 0
        %v415 = vsel %vm278, %v189, 0
        %v418 = vsel %vm278, %v190, 0
        %v421 = vsel %vm278, %v191, 0
        %v424 = vsel %vm278, %v192, 0
        %v427 = vsel %vm278, %v193, 0
        %v430 = vsel %vm278, %v194, 0
        %v433 = vsel %vm278, %v195, 0
        %v436 = vsel %vm278, %v196, 0
        %v439 = vsel %vm278, %v197, 0
        %v442 = vsel %vm278, %v198, 0
        %v445 = vsel %vm278, %v199, 0
        %v448 = vsel %vm278, %v200, 0
        %v451 = vsel %vm278, %v201, 0
        %v454 = vsel %vm278, %v202, 0
        %v457 = vsel %vm278, %v203, 0
        %v460 = vsel %vm278, %v204, 0
        %v463 = vsel %vm278, %v205, 0
        %v466 = vsel %vm278, %v206, 0
        %v469 = vsel %vm278, %v207, 0
        %v472 = vsel %vm278, %v208, 0
        %v475 = vsel %vm278, %v209, 0
        %v478 = vsel %vm278, %v210, 0
        %v481 = vsel %vm278, %v211, 0
        %v484 = vsel %vm278, %v212, 0
        %v487 = vsel %vm278, %v213, 0
        %v490 = vsel %vm278, %v214, 0
        %v493 = vsel %vm278, %v215, 0
        %v496 = vsel %vm278, %v216, 0
        %v499 = vsel %vm278, %v217, 0
        %v502 = vsel %vm278, %v218, 0
        %v505 = vsel %vm278, %v219, 0
        %v508 = vsel %vm278, %v220, 0
        %v511 = vsel %vm278, %v221, 0
        %v514 = vsel %vm278, %v222, 0
        %v517 = vsel %vm278, %v223, 0
        %v520 = vsel %vm278, %v224, 0
        %v523 = vsel %vm278, %v225, 0
        %v526 = vsel %vm278, %v226, 0
        %v529 = vsel %vm278, %v227, 0
        %v532 = vsel %vm278, %v228, 0
        %v535 = vsel %vm278, %v229, 0
        %v538 = vsel %vm278, %v230, 0
        %v541 = vsel %vm278, %v231, 0
        %v544 = vsel %vm278, %v232, 0
        %v547 = vsel %vm278, %v233, 0
        %v550 = vsel %vm278, %v234, 0
        %v553 = vsel %vm278, %v235, 0
        %v556 = vsel %vm278, %v236, 0
        %v559 = vsel %vm278, %v237, 0
        %v562 = vsel %vm278, %v238, 0
        %v565 = vsel %vm278, %v239, 0
        %v568 = vsel %vm278, %v240, 0
        %v571 = vsel %vm278, %v241, 0
        %v574 = vsel %vm278, %v242, 0
        %v577 = vsel %vm278, %v243, 0
        %v580 = vsel %vm278, %v244, 0
        %v583 = vsel %vm278, %v245, 0
        %v586 = vsel %vm278, %v246, 0
        %v589 = vsel %vm278, %v247, 0
        %v592 = vsel %vm278, %v248, 0
        %v595 = vsel %vm278, %v249, 0
        %v598 = vsel %vm278, %v250, 0
        %v601 = vsel %vm278, %v251, 0
        %v604 = vsel %vm278, %v252, 0
        %v607 = vsel %vm278, %v253, 0
        %v610 = vsel %vm278, %v254, 0
        %v613 = vsel %vm278, %v255, 0
        %v616 = vsel %vm278, %v256, 0
        %v619 = vsel %vm278, %v257, 0
        %v622 = vsel %vm278, %v258, 0
        %v625 = vsel %vm278, %v259, 0
        %v628 = vsel %vm278, %v260, 0
        %v631 = vsel %vm278, %v261, 0
        %v634 = vsel %vm278, %v262, 0
        %v637 = vsel %vm278, %v263, 0
        %v640 = vsel %vm278, %v264, 0
        %v643 = vsel %vm278, %v265, 0
        %v646 = vsel %vm278, %v266, 0
        %v649 = vsel %vm278, %v267, 0
        %v652 = vsel %vm278, %v268, 0
        %v655 = vsel %vm278, %v269, 0
        %v658 = vsel %vm278, %v270, 0
        %v661 = vsel %vm278, %v271, 0
        %663 = vmatprep.subr.mxu0 0.0
        %664 = vmatpush1.msra.mxu0 0.0
        %665 = vmatprep.subr.mxu0 0.0
        %666 = vmatpush1.msra.mxu0 0.0
        %667 = vmatprep.subr.mxu0 0.0
        %668 = vmatpush1.msra.mxu0 0.0
        %669 = vmatprep.subr.mxu0 0.0
        %670 = vmatpush1.msra.mxu0 0.0
        %671 = vmatprep.subr.mxu0 0.0
        %672 = vmatpush1.msra.mxu0 0.0
        %673 = vmatprep.subr.mxu0 0.0
        %674 = vmatpush1.msra.mxu0 0.0
        %675 = vmatprep.subr.mxu0 0.0
        %676 = vmatpush1.msra.mxu0 0.0
        %677 = vmatprep.subr.mxu0 0.0
        %678 = vmatpush1.msra.mxu0 0.0
        %679 = vmatprep.subr.mxu0 0.0
        %680 = vmatpush1.msra.mxu0 0.0
        %681 = vmatprep.subr.mxu0 0.0
        %682 = vmatpush1.msra.mxu0 0.0
        %683 = vmatprep.subr.mxu0 0.0
        %684 = vmatpush1.msra.mxu0 %v277
        %685 = vmatprep.subr.mxu0 0.0
        %686 = vmatpush1.msra.mxu0 %v276
        %687 = vmatprep.subr.mxu0 0.0
        %688 = vmatpush1.msra.mxu0 %v275
        %689 = vmatprep.subr.mxu0 0.0
        %690 = vmatpush1.msra.mxu0 %v274
        %691 = vmatprep.subr.mxu0 0.0
        %692 = vmatpush1.msra.mxu0 %v273
        %693 = vmatprep.subr.mxu0 0.0
        %694 = vmatpush1.msra.mxu0 %v272
        %695 = vmatprep.subr.mxu0 0.0
        %696 = vmatpush2.msra.mxu0 0.0
        %697 = vmatprep.subr.mxu0 0.0
        %698 = vmatpush2.msra.mxu0 0.0
        %699 = vmatprep.subr.mxu0 0.0
        %700 = vmatpush2.msra.mxu0 0.0
        %701 = vmatprep.subr.mxu0 0.0
        %702 = vmatpush2.msra.mxu0 0.0
        %703 = vmatprep.subr.mxu0 0.0
        %704 = vmatpush2.msra.mxu0 0.0
        %705 = vmatprep.subr.mxu0 0.0
        %706 = vmatpush2.msra.mxu0 0.0
        %707 = vmatprep.subr.mxu0 0.0
        %708 = vmatpush2.msra.mxu0 0.0
        %709 = vmatprep.subr.mxu0 0.0
        %710 = vmatpush2.msra.mxu0 0.0
        %711 = vmatprep.subr.mxu0 0.0
        %712 = vmatpush2.msra.mxu0 0.0
        %713 = vmatprep.subr.mxu0 0.0
        %714 = vmatpush2.msra.mxu0 0.0
        %715 = vmatprep.subr.mxu0 0.0
        %716 = vmatpush2.msra.mxu0 0.0
        %717 = vmatprep.subr.mxu0 0.0
        %718 = vmatpush2.msra.mxu0 0.0
        %719 = vmatprep.subr.mxu0 0.0
        %720 = vmatpush2.msra.mxu0 0.0
        %721 = vmatprep.subr.mxu0 0.0
        %722 = vmatpush2.msra.mxu0 0.0
        %723 = vmatprep.subr.mxu0 0.0
        %724 = vmatpush2.msra.mxu0 0.0
        %725 = vmatprep.subr.mxu0 0.0
        %726 = vmatpush2.msra.mxu0 0.0
        %727 = vmatprep.mubr.f32.mxu0 0.0
        %728 = vmatmul.mubr.f32.gmra.mxu0 %v280
        %v729 = vpop.f32.mrf.mxu0
        %v730 = vadd.f32 0.0, %v729
        %v731 = vpop.f32.mrf.mxu0
        %732 = vmatprep.mubr.f32.mxu0 0.0
        %733 = vmatmul.mubr.f32.gmra.mxu0 %v283
        %v734 = vpop.f32.mrf.mxu0
        %v735 = vadd.f32 0.0, %v734
        %v736 = vpop.f32.mrf.mxu0
        %737 = vmatprep.mubr.f32.mxu0 0.0
        %738 = vmatmul.mubr.f32.gmra.mxu0 %v286
        %v739 = vpop.f32.mrf.mxu0
        %v740 = vadd.f32 0.0, %v739
        %v741 = vpop.f32.mrf.mxu0
        %742 = vmatprep.mubr.f32.mxu0 0.0
        %743 = vmatmul.mubr.f32.gmra.mxu0 %v289
        %v744 = vpop.f32.mrf.mxu0
        %v745 = vadd.f32 0.0, %v744
        %v746 = vpop.f32.mrf.mxu0
        %747 = vmatprep.mubr.f32.mxu0 0.0
        %748 = vmatmul.mubr.f32.gmra.mxu0 %v292
        %v749 = vpop.f32.mrf.mxu0
        %v750 = vadd.f32 0.0, %v749
        %v751 = vpop.f32.mrf.mxu0
        %752 = vmatprep.mubr.f32.mxu0 0.0
        %753 = vmatmul.mubr.f32.gmra.mxu0 %v295
        %v754 = vpop.f32.mrf.mxu0
        %v755 = vadd.f32 0.0, %v754
        %v756 = vpop.f32.mrf.mxu0
        %757 = vmatprep.mubr.f32.mxu0 0.0
        %758 = vmatmul.mubr.f32.gmra.mxu0 %v298
        %v759 = vpop.f32.mrf.mxu0
        %v760 = vadd.f32 0.0, %v759
        %v761 = vpop.f32.mrf.mxu0
        %762 = vmatprep.mubr.f32.mxu0 0.0
        %763 = vmatmul.mubr.f32.gmra.mxu0 %v301
        %v764 = vpop.f32.mrf.mxu0
        %v765 = vadd.f32 0.0, %v764
        %v766 = vpop.f32.mrf.mxu0
        %767 = vmatprep.mubr.f32.mxu0 0.0
        %768 = vmatmul.mubr.f32.gmra.mxu0 %v304
        %v769 = vpop.f32.mrf.mxu0
        %v770 = vadd.f32 0.0, %v769
        %v771 = vpop.f32.mrf.mxu0
        %772 = vmatprep.mubr.f32.mxu0 0.0
        %773 = vmatmul.mubr.f32.gmra.mxu0 %v307
        %v774 = vpop.f32.mrf.mxu0
        %v775 = vadd.f32 0.0, %v774
        %v776 = vpop.f32.mrf.mxu0
        %777 = vmatprep.mubr.f32.mxu0 0.0
        %778 = vmatmul.mubr.f32.gmra.mxu0 %v310
        %v779 = vpop.f32.mrf.mxu0
        %v780 = vadd.f32 0.0, %v779
        %v781 = vpop.f32.mrf.mxu0
        %782 = vmatprep.mubr.f32.mxu0 0.0
        %783 = vmatmul.mubr.f32.gmra.mxu0 %v313
        %v784 = vpop.f32.mrf.mxu0
        %v785 = vadd.f32 0.0, %v784
        %v786 = vpop.f32.mrf.mxu0
        %787 = vmatprep.mubr.f32.mxu0 0.0
        %788 = vmatmul.mubr.f32.gmra.mxu0 %v316
        %v789 = vpop.f32.mrf.mxu0
        %v790 = vadd.f32 0.0, %v789
        %v791 = vpop.f32.mrf.mxu0
        %792 = vmatprep.mubr.f32.mxu0 0.0
        %793 = vmatmul.mubr.f32.gmra.mxu0 %v319
        %v794 = vpop.f32.mrf.mxu0
        %v795 = vadd.f32 0.0, %v794
        %v796 = vpop.f32.mrf.mxu0
        %797 = vmatprep.mubr.f32.mxu0 0.0
        %798 = vmatmul.mubr.f32.gmra.mxu0 %v322
        %v799 = vpop.f32.mrf.mxu0
        %v800 = vadd.f32 0.0, %v799
        %v801 = vpop.f32.mrf.mxu0
        %802 = vmatprep.mubr.f32.mxu0 0.0
        %803 = vmatmul.mubr.f32.gmra.mxu0 %v325
        %v804 = vpop.f32.mrf.mxu0
        %v805 = vadd.f32 0.0, %v804
        %v806 = vpop.f32.mrf.mxu0
        %807 = vmatprep.mubr.f32.mxu0 0.0
        %808 = vmatmul.mubr.f32.gmra.mxu0 %v328
        %v809 = vpop.f32.mrf.mxu0
        %v810 = vadd.f32 0.0, %v809
        %v811 = vpop.f32.mrf.mxu0
        %812 = vmatprep.mubr.f32.mxu0 0.0
        %813 = vmatmul.mubr.f32.gmra.mxu0 %v331
        %v814 = vpop.f32.mrf.mxu0
        %v815 = vadd.f32 0.0, %v814
        %v816 = vpop.f32.mrf.mxu0
        %817 = vmatprep.mubr.f32.mxu0 0.0
        %818 = vmatmul.mubr.f32.gmra.mxu0 %v334
        %v819 = vpop.f32.mrf.mxu0
        %v820 = vadd.f32 0.0, %v819
        %v821 = vpop.f32.mrf.mxu0
        %822 = vmatprep.mubr.f32.mxu0 0.0
        %823 = vmatmul.mubr.f32.gmra.mxu0 %v337
        %v824 = vpop.f32.mrf.mxu0
        %v825 = vadd.f32 0.0, %v824
        %v826 = vpop.f32.mrf.mxu0
        %827 = vmatprep.mubr.f32.mxu0 0.0
        %828 = vmatmul.mubr.f32.gmra.mxu0 %v340
        %v829 = vpop.f32.mrf.mxu0
        %v830 = vadd.f32 0.0, %v829
        %v831 = vpop.f32.mrf.mxu0
        %832 = vmatprep.mubr.f32.mxu0 0.0
        %833 = vmatmul.mubr.f32.gmra.mxu0 %v343
        %v834 = vpop.f32.mrf.mxu0
        %v835 = vadd.f32 0.0, %v834
        %v836 = vpop.f32.mrf.mxu0
        %837 = vmatprep.mubr.f32.mxu0 0.0
        %838 = vmatmul.mubr.f32.gmra.mxu0 %v346
        %v839 = vpop.f32.mrf.mxu0
        %v840 = vadd.f32 0.0, %v839
        %v841 = vpop.f32.mrf.mxu0
        %842 = vmatprep.mubr.f32.mxu0 0.0
        %843 = vmatmul.mubr.f32.gmra.mxu0 %v349
        %v844 = vpop.f32.mrf.mxu0
        %v845 = vadd.f32 0.0, %v844
        %v846 = vpop.f32.mrf.mxu0
        %847 = vmatprep.mubr.f32.mxu0 0.0
        %848 = vmatmul.mubr.f32.gmra.mxu0 %v352
        %v849 = vpop.f32.mrf.mxu0
        %v850 = vadd.f32 0.0, %v849
        %v851 = vpop.f32.mrf.mxu0
        %852 = vmatprep.mubr.f32.mxu0 0.0
        %853 = vmatmul.mubr.f32.gmra.mxu0 %v355
        %v854 = vpop.f32.mrf.mxu0
        %v855 = vadd.f32 0.0, %v854
        %v856 = vpop.f32.mrf.mxu0
        %857 = vmatprep.mubr.f32.mxu0 0.0
        %858 = vmatmul.mubr.f32.gmra.mxu0 %v358
        %v859 = vpop.f32.mrf.mxu0
        %v860 = vadd.f32 0.0, %v859
        %v861 = vpop.f32.mrf.mxu0
        %862 = vmatprep.mubr.f32.mxu0 0.0
        %863 = vmatmul.mubr.f32.gmra.mxu0 %v361
        %v864 = vpop.f32.mrf.mxu0
        %v865 = vadd.f32 0.0, %v864
        %v866 = vpop.f32.mrf.mxu0
        %867 = vmatprep.mubr.f32.mxu0 0.0
        %868 = vmatmul.mubr.f32.gmra.mxu0 %v364
        %v869 = vpop.f32.mrf.mxu0
        %v870 = vadd.f32 0.0, %v869
        %v871 = vpop.f32.mrf.mxu0
        %872 = vmatprep.mubr.f32.mxu0 0.0
        %873 = vmatmul.mubr.f32.gmra.mxu0 %v367
        %v874 = vpop.f32.mrf.mxu0
        %v875 = vadd.f32 0.0, %v874
        %v876 = vpop.f32.mrf.mxu0
        %877 = vmatprep.mubr.f32.mxu0 0.0
        %878 = vmatmul.mubr.f32.gmra.mxu0 %v370
        %v879 = vpop.f32.mrf.mxu0
        %v880 = vadd.f32 0.0, %v879
        %v881 = vpop.f32.mrf.mxu0
        %882 = vmatprep.mubr.f32.mxu0 0.0
        %883 = vmatmul.mubr.f32.gmra.mxu0 %v373
        %v884 = vpop.f32.mrf.mxu0
        %v885 = vadd.f32 0.0, %v884
        %v886 = vpop.f32.mrf.mxu0
        %887 = vmatprep.mubr.f32.mxu0 0.0
        %888 = vmatmul.mubr.f32.gmra.mxu0 %v376
        %v889 = vpop.f32.mrf.mxu0
        %v890 = vadd.f32 0.0, %v889
        %v891 = vpop.f32.mrf.mxu0
        %892 = vmatprep.mubr.f32.mxu0 0.0
        %893 = vmatmul.mubr.f32.gmra.mxu0 %v379
        %v894 = vpop.f32.mrf.mxu0
        %v895 = vadd.f32 0.0, %v894
        %v896 = vpop.f32.mrf.mxu0
        %897 = vmatprep.mubr.f32.mxu0 0.0
        %898 = vmatmul.mubr.f32.gmra.mxu0 %v382
        %v899 = vpop.f32.mrf.mxu0
        %v900 = vadd.f32 0.0, %v899
        %v901 = vpop.f32.mrf.mxu0
        %902 = vmatprep.mubr.f32.mxu0 0.0
        %903 = vmatmul.mubr.f32.gmra.mxu0 %v385
        %v904 = vpop.f32.mrf.mxu0
        %v905 = vadd.f32 0.0, %v904
        %v906 = vpop.f32.mrf.mxu0
        %907 = vmatprep.mubr.f32.mxu0 0.0
        %908 = vmatmul.mubr.f32.gmra.mxu0 %v388
        %v909 = vpop.f32.mrf.mxu0
        %v910 = vadd.f32 0.0, %v909
        %v911 = vpop.f32.mrf.mxu0
        %912 = vmatprep.mubr.f32.mxu0 0.0
        %913 = vmatmul.mubr.f32.gmra.mxu0 %v391
        %v914 = vpop.f32.mrf.mxu0
        %v915 = vadd.f32 0.0, %v914
        %v916 = vpop.f32.mrf.mxu0
        %917 = vmatprep.mubr.f32.mxu0 0.0
        %918 = vmatmul.mubr.f32.gmra.mxu0 %v394
        %v919 = vpop.f32.mrf.mxu0
        %v920 = vadd.f32 0.0, %v919
        %v921 = vpop.f32.mrf.mxu0
        %922 = vmatprep.mubr.f32.mxu0 0.0
        %923 = vmatmul.mubr.f32.gmra.mxu0 %v397
        %v924 = vpop.f32.mrf.mxu0
        %v925 = vadd.f32 0.0, %v924
        %v926 = vpop.f32.mrf.mxu0
        %927 = vmatprep.mubr.f32.mxu0 0.0
        %928 = vmatmul.mubr.f32.gmra.mxu0 %v400
        %v929 = vpop.f32.mrf.mxu0
        %v930 = vadd.f32 0.0, %v929
        %v931 = vpop.f32.mrf.mxu0
        %932 = vmatprep.mubr.f32.mxu0 0.0
        %933 = vmatmul.mubr.f32.gmra.mxu0 %v403
        %v934 = vpop.f32.mrf.mxu0
        %v935 = vadd.f32 0.0, %v934
        %v936 = vpop.f32.mrf.mxu0
        %937 = vmatprep.mubr.f32.mxu0 0.0
        %938 = vmatmul.mubr.f32.gmra.mxu0 %v406
        %v939 = vpop.f32.mrf.mxu0
        %v940 = vadd.f32 0.0, %v939
        %v941 = vpop.f32.mrf.mxu0
        %942 = vmatprep.mubr.f32.mxu0 0.0
        %943 = vmatmul.mubr.f32.gmra.mxu0 %v409
        %v944 = vpop.f32.mrf.mxu0
        %v945 = vadd.f32 0.0, %v944
        %v946 = vpop.f32.mrf.mxu0
        %947 = vmatprep.mubr.f32.mxu0 0.0
        %948 = vmatmul.mubr.f32.gmra.mxu0 %v412
        %v949 = vpop.f32.mrf.mxu0
        %v950 = vadd.f32 0.0, %v949
        %v951 = vpop.f32.mrf.mxu0
        %952 = vmatprep.mubr.f32.mxu0 0.0
        %953 = vmatmul.mubr.f32.gmra.mxu0 %v415
        %v954 = vpop.f32.mrf.mxu0
        %v955 = vadd.f32 0.0, %v954
        %v956 = vpop.f32.mrf.mxu0
        %957 = vmatprep.mubr.f32.mxu0 0.0
        %958 = vmatmul.mubr.f32.gmra.mxu0 %v418
        %v959 = vpop.f32.mrf.mxu0
        %v960 = vadd.f32 0.0, %v959
        %v961 = vpop.f32.mrf.mxu0
        %962 = vmatprep.mubr.f32.mxu0 0.0
        %963 = vmatmul.mubr.f32.gmra.mxu0 %v421
        %v964 = vpop.f32.mrf.mxu0
        %v965 = vadd.f32 0.0, %v964
        %v966 = vpop.f32.mrf.mxu0
        %967 = vmatprep.mubr.f32.mxu0 0.0
        %968 = vmatmul.mubr.f32.gmra.mxu0 %v424
        %v969 = vpop.f32.mrf.mxu0
        %v970 = vadd.f32 0.0, %v969
        %v971 = vpop.f32.mrf.mxu0
        %972 = vmatprep.mubr.f32.mxu0 0.0
        %973 = vmatmul.mubr.f32.gmra.mxu0 %v427
        %v974 = vpop.f32.mrf.mxu0
        %v975 = vadd.f32 0.0, %v974
        %v976 = vpop.f32.mrf.mxu0
        %977 = vmatprep.mubr.f32.mxu0 0.0
        %978 = vmatmul.mubr.f32.gmra.mxu0 %v430
        %v979 = vpop.f32.mrf.mxu0
        %v980 = vadd.f32 0.0, %v979
        %v981 = vpop.f32.mrf.mxu0
        %982 = vmatprep.mubr.f32.mxu0 0.0
        %983 = vmatmul.mubr.f32.gmra.mxu0 %v433
        %v984 = vpop.f32.mrf.mxu0
        %v985 = vadd.f32 0.0, %v984
        %v986 = vpop.f32.mrf.mxu0
        %987 = vmatprep.mubr.f32.mxu0 0.0
        %988 = vmatmul.mubr.f32.gmra.mxu0 %v436
        %v989 = vpop.f32.mrf.mxu0
        %v990 = vadd.f32 0.0, %v989
        %v991 = vpop.f32.mrf.mxu0
        %992 = vmatprep.mubr.f32.mxu0 0.0
        %993 = vmatmul.mubr.f32.gmra.mxu0 %v439
        %v994 = vpop.f32.mrf.mxu0
        %v995 = vadd.f32 0.0, %v994
        %v996 = vpop.f32.mrf.mxu0
        %997 = vmatprep.mubr.f32.mxu0 0.0
        %998 = vmatmul.mubr.f32.gmra.mxu0 %v442
        %v999 = vpop.f32.mrf.mxu0
        %v1000 = vadd.f32 0.0, %v999
        %v1001 = vpop.f32.mrf.mxu0
        %1002 = vmatprep.mubr.f32.mxu0 0.0
        %1003 = vmatmul.mubr.f32.gmra.mxu0 %v445
        %v1004 = vpop.f32.mrf.mxu0
        %v1005 = vadd.f32 0.0, %v1004
        %v1006 = vpop.f32.mrf.mxu0
        %1007 = vmatprep.mubr.f32.mxu0 0.0
        %1008 = vmatmul.mubr.f32.gmra.mxu0 %v448
        %v1009 = vpop.f32.mrf.mxu0
        %v1010 = vadd.f32 0.0, %v1009
        %v1011 = vpop.f32.mrf.mxu0
        %1012 = vmatprep.mubr.f32.mxu0 0.0
        %1013 = vmatmul.mubr.f32.gmra.mxu0 %v451
        %v1014 = vpop.f32.mrf.mxu0
        %v1015 = vadd.f32 0.0, %v1014
        %v1016 = vpop.f32.mrf.mxu0
        %1017 = vmatprep.mubr.f32.mxu0 0.0
        %1018 = vmatmul.mubr.f32.gmra.mxu0 %v454
        %v1019 = vpop.f32.mrf.mxu0
        %v1020 = vadd.f32 0.0, %v1019
        %v1021 = vpop.f32.mrf.mxu0
        %1022 = vmatprep.mubr.f32.mxu0 0.0
        %1023 = vmatmul.mubr.f32.gmra.mxu0 %v457
        %v1024 = vpop.f32.mrf.mxu0
        %v1025 = vadd.f32 0.0, %v1024
        %v1026 = vpop.f32.mrf.mxu0
        %1027 = vmatprep.mubr.f32.mxu0 0.0
        %1028 = vmatmul.mubr.f32.gmra.mxu0 %v460
        %v1029 = vpop.f32.mrf.mxu0
        %v1030 = vadd.f32 0.0, %v1029
        %v1031 = vpop.f32.mrf.mxu0
        %1032 = vmatprep.mubr.f32.mxu0 0.0
        %1033 = vmatmul.mubr.f32.gmra.mxu0 %v463
        %v1034 = vpop.f32.mrf.mxu0
        %v1035 = vadd.f32 0.0, %v1034
        %v1036 = vpop.f32.mrf.mxu0
        %1037 = vmatprep.mubr.f32.mxu0 0.0
        %1038 = vmatmul.mubr.f32.gmra.mxu0 %v466
        %v1039 = vpop.f32.mrf.mxu0
        %v1040 = vadd.f32 0.0, %v1039
        %v1041 = vpop.f32.mrf.mxu0
        %1042 = vmatprep.mubr.f32.mxu0 0.0
        %1043 = vmatmul.mubr.f32.gmra.mxu0 %v469
        %v1044 = vpop.f32.mrf.mxu0
        %v1045 = vadd.f32 0.0, %v1044
        %v1046 = vpop.f32.mrf.mxu0
        %1047 = vmatprep.mubr.f32.mxu0 0.0
        %1048 = vmatmul.mubr.f32.gmra.mxu0 %v472
        %v1049 = vpop.f32.mrf.mxu0
        %v1050 = vadd.f32 0.0, %v1049
        %v1051 = vpop.f32.mrf.mxu0
        %1052 = vmatprep.mubr.f32.mxu0 0.0
        %1053 = vmatmul.mubr.f32.gmra.mxu0 %v475
        %v1054 = vpop.f32.mrf.mxu0
        %v1055 = vadd.f32 0.0, %v1054
        %v1056 = vpop.f32.mrf.mxu0
        %1057 = vmatprep.mubr.f32.mxu0 0.0
        %1058 = vmatmul.mubr.f32.gmra.mxu0 %v478
        %v1059 = vpop.f32.mrf.mxu0
        %v1060 = vadd.f32 0.0, %v1059
        %v1061 = vpop.f32.mrf.mxu0
        %1062 = vmatprep.mubr.f32.mxu0 0.0
        %1063 = vmatmul.mubr.f32.gmra.mxu0 %v481
        %v1064 = vpop.f32.mrf.mxu0
        %v1065 = vadd.f32 0.0, %v1064
        %v1066 = vpop.f32.mrf.mxu0
        %1067 = vmatprep.mubr.f32.mxu0 0.0
        %1068 = vmatmul.mubr.f32.gmra.mxu0 %v484
        %v1069 = vpop.f32.mrf.mxu0
        %v1070 = vadd.f32 0.0, %v1069
        %v1071 = vpop.f32.mrf.mxu0
        %1072 = vmatprep.mubr.f32.mxu0 0.0
        %1073 = vmatmul.mubr.f32.gmra.mxu0 %v487
        %v1074 = vpop.f32.mrf.mxu0
        %v1075 = vadd.f32 0.0, %v1074
        %v1076 = vpop.f32.mrf.mxu0
        %1077 = vmatprep.mubr.f32.mxu0 0.0
        %1078 = vmatmul.mubr.f32.gmra.mxu0 %v490
        %v1079 = vpop.f32.mrf.mxu0
        %v1080 = vadd.f32 0.0, %v1079
        %v1081 = vpop.f32.mrf.mxu0
        %1082 = vmatprep.mubr.f32.mxu0 0.0
        %1083 = vmatmul.mubr.f32.gmra.mxu0 %v493
        %v1084 = vpop.f32.mrf.mxu0
        %v1085 = vadd.f32 0.0, %v1084
        %v1086 = vpop.f32.mrf.mxu0
        %1087 = vmatprep.mubr.f32.mxu0 0.0
        %1088 = vmatmul.mubr.f32.gmra.mxu0 %v496
        %v1089 = vpop.f32.mrf.mxu0
        %v1090 = vadd.f32 0.0, %v1089
        %v1091 = vpop.f32.mrf.mxu0
        %1092 = vmatprep.mubr.f32.mxu0 0.0
        %1093 = vmatmul.mubr.f32.gmra.mxu0 %v499
        %v1094 = vpop.f32.mrf.mxu0
        %v1095 = vadd.f32 0.0, %v1094
        %v1096 = vpop.f32.mrf.mxu0
        %1097 = vmatprep.mubr.f32.mxu0 0.0
        %1098 = vmatmul.mubr.f32.gmra.mxu0 %v502
        %v1099 = vpop.f32.mrf.mxu0
        %v1100 = vadd.f32 0.0, %v1099
        %v1101 = vpop.f32.mrf.mxu0
        %1102 = vmatprep.mubr.f32.mxu0 0.0
        %1103 = vmatmul.mubr.f32.gmra.mxu0 %v505
        %v1104 = vpop.f32.mrf.mxu0
        %v1105 = vadd.f32 0.0, %v1104
        %v1106 = vpop.f32.mrf.mxu0
        %1107 = vmatprep.mubr.f32.mxu0 0.0
        %1108 = vmatmul.mubr.f32.gmra.mxu0 %v508
        %v1109 = vpop.f32.mrf.mxu0
        %v1110 = vadd.f32 0.0, %v1109
        %v1111 = vpop.f32.mrf.mxu0
        %1112 = vmatprep.mubr.f32.mxu0 0.0
        %1113 = vmatmul.mubr.f32.gmra.mxu0 %v511
        %v1114 = vpop.f32.mrf.mxu0
        %v1115 = vadd.f32 0.0, %v1114
        %v1116 = vpop.f32.mrf.mxu0
        %1117 = vmatprep.mubr.f32.mxu0 0.0
        %1118 = vmatmul.mubr.f32.gmra.mxu0 %v514
        %v1119 = vpop.f32.mrf.mxu0
        %v1120 = vadd.f32 0.0, %v1119
        %v1121 = vpop.f32.mrf.mxu0
        %1122 = vmatprep.mubr.f32.mxu0 0.0
        %1123 = vmatmul.mubr.f32.gmra.mxu0 %v517
        %v1124 = vpop.f32.mrf.mxu0
        %v1125 = vadd.f32 0.0, %v1124
        %v1126 = vpop.f32.mrf.mxu0
        %1127 = vmatprep.mubr.f32.mxu0 0.0
        %1128 = vmatmul.mubr.f32.gmra.mxu0 %v520
        %v1129 = vpop.f32.mrf.mxu0
        %v1130 = vadd.f32 0.0, %v1129
        %v1131 = vpop.f32.mrf.mxu0
        %1132 = vmatprep.mubr.f32.mxu0 0.0
        %1133 = vmatmul.mubr.f32.gmra.mxu0 %v523
        %v1134 = vpop.f32.mrf.mxu0
        %v1135 = vadd.f32 0.0, %v1134
        %v1136 = vpop.f32.mrf.mxu0
        %1137 = vmatprep.mubr.f32.mxu0 0.0
        %1138 = vmatmul.mubr.f32.gmra.mxu0 %v526
        %v1139 = vpop.f32.mrf.mxu0
        %v1140 = vadd.f32 0.0, %v1139
        %v1141 = vpop.f32.mrf.mxu0
        %1142 = vmatprep.mubr.f32.mxu0 0.0
        %1143 = vmatmul.mubr.f32.gmra.mxu0 %v529
        %v1144 = vpop.f32.mrf.mxu0
        %v1145 = vadd.f32 0.0, %v1144
        %v1146 = vpop.f32.mrf.mxu0
        %1147 = vmatprep.mubr.f32.mxu0 0.0
        %1148 = vmatmul.mubr.f32.gmra.mxu0 %v532
        %v1149 = vpop.f32.mrf.mxu0
        %v1150 = vadd.f32 0.0, %v1149
        %v1151 = vpop.f32.mrf.mxu0
        %1152 = vmatprep.mubr.f32.mxu0 0.0
        %1153 = vmatmul.mubr.f32.gmra.mxu0 %v535
        %v1154 = vpop.f32.mrf.mxu0
        %v1155 = vadd.f32 0.0, %v1154
        %v1156 = vpop.f32.mrf.mxu0
        %1157 = vmatprep.mubr.f32.mxu0 0.0
        %1158 = vmatmul.mubr.f32.gmra.mxu0 %v538
        %v1159 = vpop.f32.mrf.mxu0
        %v1160 = vadd.f32 0.0, %v1159
        %v1161 = vpop.f32.mrf.mxu0
        %1162 = vmatprep.mubr.f32.mxu0 0.0
        %1163 = vmatmul.mubr.f32.gmra.mxu0 %v541
        %v1164 = vpop.f32.mrf.mxu0
        %v1165 = vadd.f32 0.0, %v1164
        %v1166 = vpop.f32.mrf.mxu0
        %1167 = vmatprep.mubr.f32.mxu0 0.0
        %1168 = vmatmul.mubr.f32.gmra.mxu0 %v544
        %v1169 = vpop.f32.mrf.mxu0
        %v1170 = vadd.f32 0.0, %v1169
        %v1171 = vpop.f32.mrf.mxu0
        %1172 = vmatprep.mubr.f32.mxu0 0.0
        %1173 = vmatmul.mubr.f32.gmra.mxu0 %v547
        %v1174 = vpop.f32.mrf.mxu0
        %v1175 = vadd.f32 0.0, %v1174
        %v1176 = vpop.f32.mrf.mxu0
        %1177 = vmatprep.mubr.f32.mxu0 0.0
        %1178 = vmatmul.mubr.f32.gmra.mxu0 %v550
        %v1179 = vpop.f32.mrf.mxu0
        %v1180 = vadd.f32 0.0, %v1179
        %v1181 = vpop.f32.mrf.mxu0
        %1182 = vmatprep.mubr.f32.mxu0 0.0
        %1183 = vmatmul.mubr.f32.gmra.mxu0 %v553
        %v1184 = vpop.f32.mrf.mxu0
        %v1185 = vadd.f32 0.0, %v1184
        %v1186 = vpop.f32.mrf.mxu0
        %1187 = vmatprep.mubr.f32.mxu0 0.0
        %1188 = vmatmul.mubr.f32.gmra.mxu0 %v556
        %v1189 = vpop.f32.mrf.mxu0
        %v1190 = vadd.f32 0.0, %v1189
        %v1191 = vpop.f32.mrf.mxu0
        %1192 = vmatprep.mubr.f32.mxu0 0.0
        %1193 = vmatmul.mubr.f32.gmra.mxu0 %v559
        %v1194 = vpop.f32.mrf.mxu0
        %v1195 = vadd.f32 0.0, %v1194
        %v1196 = vpop.f32.mrf.mxu0
        %1197 = vmatprep.mubr.f32.mxu0 0.0
        %1198 = vmatmul.mubr.f32.gmra.mxu0 %v562
        %v1199 = vpop.f32.mrf.mxu0
        %v1200 = vadd.f32 0.0, %v1199
        %v1201 = vpop.f32.mrf.mxu0
        %1202 = vmatprep.mubr.f32.mxu0 0.0
        %1203 = vmatmul.mubr.f32.gmra.mxu0 %v565
        %v1204 = vpop.f32.mrf.mxu0
        %v1205 = vadd.f32 0.0, %v1204
        %v1206 = vpop.f32.mrf.mxu0
        %1207 = vmatprep.mubr.f32.mxu0 0.0
        %1208 = vmatmul.mubr.f32.gmra.mxu0 %v568
        %v1209 = vpop.f32.mrf.mxu0
        %v1210 = vadd.f32 0.0, %v1209
        %v1211 = vpop.f32.mrf.mxu0
        %1212 = vmatprep.mubr.f32.mxu0 0.0
        %1213 = vmatmul.mubr.f32.gmra.mxu0 %v571
        %v1214 = vpop.f32.mrf.mxu0
        %v1215 = vadd.f32 0.0, %v1214
        %v1216 = vpop.f32.mrf.mxu0
        %1217 = vmatprep.mubr.f32.mxu0 0.0
        %1218 = vmatmul.mubr.f32.gmra.mxu0 %v574
        %v1219 = vpop.f32.mrf.mxu0
        %v1220 = vadd.f32 0.0, %v1219
        %v1221 = vpop.f32.mrf.mxu0
        %1222 = vmatprep.mubr.f32.mxu0 0.0
        %1223 = vmatmul.mubr.f32.gmra.mxu0 %v577
        %v1224 = vpop.f32.mrf.mxu0
        %v1225 = vadd.f32 0.0, %v1224
        %v1226 = vpop.f32.mrf.mxu0
        %1227 = vmatprep.mubr.f32.mxu0 0.0
        %1228 = vmatmul.mubr.f32.gmra.mxu0 %v580
        %v1229 = vpop.f32.mrf.mxu0
        %v1230 = vadd.f32 0.0, %v1229
        %v1231 = vpop.f32.mrf.mxu0
        %1232 = vmatprep.mubr.f32.mxu0 0.0
        %1233 = vmatmul.mubr.f32.gmra.mxu0 %v583
        %v1234 = vpop.f32.mrf.mxu0
        %v1235 = vadd.f32 0.0, %v1234
        %v1236 = vpop.f32.mrf.mxu0
        %1237 = vmatprep.mubr.f32.mxu0 0.0
        %1238 = vmatmul.mubr.f32.gmra.mxu0 %v586
        %v1239 = vpop.f32.mrf.mxu0
        %v1240 = vadd.f32 0.0, %v1239
        %v1241 = vpop.f32.mrf.mxu0
        %1242 = vmatprep.mubr.f32.mxu0 0.0
        %1243 = vmatmul.mubr.f32.gmra.mxu0 %v589
        %v1244 = vpop.f32.mrf.mxu0
        %v1245 = vadd.f32 0.0, %v1244
        %v1246 = vpop.f32.mrf.mxu0
        %1247 = vmatprep.mubr.f32.mxu0 0.0
        %1248 = vmatmul.mubr.f32.gmra.mxu0 %v592
        %v1249 = vpop.f32.mrf.mxu0
        %v1250 = vadd.f32 0.0, %v1249
        %v1251 = vpop.f32.mrf.mxu0
        %1252 = vmatprep.mubr.f32.mxu0 0.0
        %1253 = vmatmul.mubr.f32.gmra.mxu0 %v595
        %v1254 = vpop.f32.mrf.mxu0
        %v1255 = vadd.f32 0.0, %v1254
        %v1256 = vpop.f32.mrf.mxu0
        %1257 = vmatprep.mubr.f32.mxu0 0.0
        %1258 = vmatmul.mubr.f32.gmra.mxu0 %v598
        %v1259 = vpop.f32.mrf.mxu0
        %v1260 = vadd.f32 0.0, %v1259
        %v1261 = vpop.f32.mrf.mxu0
        %1262 = vmatprep.mubr.f32.mxu0 0.0
        %1263 = vmatmul.mubr.f32.gmra.mxu0 %v601
        %v1264 = vpop.f32.mrf.mxu0
        %v1265 = vadd.f32 0.0, %v1264
        %v1266 = vpop.f32.mrf.mxu0
        %1267 = vmatprep.mubr.f32.mxu0 0.0
        %1268 = vmatmul.mubr.f32.gmra.mxu0 %v604
        %v1269 = vpop.f32.mrf.mxu0
        %v1270 = vadd.f32 0.0, %v1269
        %v1271 = vpop.f32.mrf.mxu0
        %1272 = vmatprep.mubr.f32.mxu0 0.0
        %1273 = vmatmul.mubr.f32.gmra.mxu0 %v607
        %v1274 = vpop.f32.mrf.mxu0
        %v1275 = vadd.f32 0.0, %v1274
        %v1276 = vpop.f32.mrf.mxu0
        %1277 = vmatprep.mubr.f32.mxu0 0.0
        %1278 = vmatmul.mubr.f32.gmra.mxu0 %v610
        %v1279 = vpop.f32.mrf.mxu0
        %v1280 = vadd.f32 0.0, %v1279
        %v1281 = vpop.f32.mrf.mxu0
        %1282 = vmatprep.mubr.f32.mxu0 0.0
        %1283 = vmatmul.mubr.f32.gmra.mxu0 %v613
        %v1284 = vpop.f32.mrf.mxu0
        %v1285 = vadd.f32 0.0, %v1284
        %v1286 = vpop.f32.mrf.mxu0
        %1287 = vmatprep.mubr.f32.mxu0 0.0
        %1288 = vmatmul.mubr.f32.gmra.mxu0 %v616
        %v1289 = vpop.f32.mrf.mxu0
        %v1290 = vadd.f32 0.0, %v1289
        %v1291 = vpop.f32.mrf.mxu0
        %1292 = vmatprep.mubr.f32.mxu0 0.0
        %1293 = vmatmul.mubr.f32.gmra.mxu0 %v619
        %v1294 = vpop.f32.mrf.mxu0
        %v1295 = vadd.f32 0.0, %v1294
        %v1296 = vpop.f32.mrf.mxu0
        %1297 = vmatprep.mubr.f32.mxu0 0.0
        %1298 = vmatmul.mubr.f32.gmra.mxu0 %v622
        %v1299 = vpop.f32.mrf.mxu0
        %v1300 = vadd.f32 0.0, %v1299
        %v1301 = vpop.f32.mrf.mxu0
        %1302 = vmatprep.mubr.f32.mxu0 0.0
        %1303 = vmatmul.mubr.f32.gmra.mxu0 %v625
        %v1304 = vpop.f32.mrf.mxu0
        %v1305 = vadd.f32 0.0, %v1304
        %v1306 = vpop.f32.mrf.mxu0
        %1307 = vmatprep.mubr.f32.mxu0 0.0
        %1308 = vmatmul.mubr.f32.gmra.mxu0 %v628
        %v1309 = vpop.f32.mrf.mxu0
        %v1310 = vadd.f32 0.0, %v1309
        %v1311 = vpop.f32.mrf.mxu0
        %1312 = vmatprep.mubr.f32.mxu0 0.0
        %1313 = vmatmul.mubr.f32.gmra.mxu0 %v631
        %v1314 = vpop.f32.mrf.mxu0
        %v1315 = vadd.f32 0.0, %v1314
        %v1316 = vpop.f32.mrf.mxu0
        %1317 = vmatprep.mubr.f32.mxu0 0.0
        %1318 = vmatmul.mubr.f32.gmra.mxu0 %v634
        %v1319 = vpop.f32.mrf.mxu0
        %v1320 = vadd.f32 0.0, %v1319
        %v1321 = vpop.f32.mrf.mxu0
        %1322 = vmatprep.mubr.f32.mxu0 0.0
        %1323 = vmatmul.mubr.f32.gmra.mxu0 %v637
        %v1324 = vpop.f32.mrf.mxu0
        %v1325 = vadd.f32 0.0, %v1324
        %v1326 = vpop.f32.mrf.mxu0
        %1327 = vmatprep.mubr.f32.mxu0 0.0
        %1328 = vmatmul.mubr.f32.gmra.mxu0 %v640
        %v1329 = vpop.f32.mrf.mxu0
        %v1330 = vadd.f32 0.0, %v1329
        %v1331 = vpop.f32.mrf.mxu0
        %1332 = vmatprep.mubr.f32.mxu0 0.0
        %1333 = vmatmul.mubr.f32.gmra.mxu0 %v643
        %v1334 = vpop.f32.mrf.mxu0
        %v1335 = vadd.f32 0.0, %v1334
        %v1336 = vpop.f32.mrf.mxu0
        %1337 = vmatprep.mubr.f32.mxu0 0.0
        %1338 = vmatmul.mubr.f32.gmra.mxu0 %v646
        %v1339 = vpop.f32.mrf.mxu0
        %v1340 = vadd.f32 0.0, %v1339
        %v1341 = vpop.f32.mrf.mxu0
        %1342 = vmatprep.mubr.f32.mxu0 0.0
        %1343 = vmatmul.mubr.f32.gmra.mxu0 %v649
        %v1344 = vpop.f32.mrf.mxu0
        %v1345 = vadd.f32 0.0, %v1344
        %v1346 = vpop.f32.mrf.mxu0
        %1347 = vmatprep.mubr.f32.mxu0 0.0
        %1348 = vmatmul.mubr.f32.gmra.mxu0 %v652
        %v1349 = vpop.f32.mrf.mxu0
        %v1350 = vadd.f32 0.0, %v1349
        %v1351 = vpop.f32.mrf.mxu0
        %1352 = vmatprep.mubr.f32.mxu0 0.0
        %1353 = vmatmul.mubr.f32.gmra.mxu0 %v655
        %v1354 = vpop.f32.mrf.mxu0
        %v1355 = vadd.f32 0.0, %v1354
        %v1356 = vpop.f32.mrf.mxu0
        %1357 = vmatprep.mubr.f32.mxu0 0.0
        %1358 = vmatmul.mubr.f32.gmra.mxu0 %v658
        %v1359 = vpop.f32.mrf.mxu0
        %v1360 = vadd.f32 0.0, %v1359
        %v1361 = vpop.f32.mrf.mxu0
        %1362 = vmatprep.mubr.f32.mxu0 0.0
        %1363 = vmatmul.mubr.f32.gmra.mxu0 %v661
        %v1364 = vpop.f32.mrf.mxu0
        %v1365 = vadd.f32 0.0, %v1364
        %v1366 = vpop.f32.mrf.mxu0
        %1367 = vdwg.mxu0
        %v1368 = vmul.f32 %v730, %v730
        %v1369 = vmul.f32 %v735, %v735
        %v1370 = vmul.f32 %v740, %v740
        %v1371 = vmul.f32 %v745, %v745
        %v1372 = vmul.f32 %v750, %v750
        %v1373 = vmul.f32 %v755, %v755
        %v1374 = vmul.f32 %v760, %v760
        %v1375 = vmul.f32 %v765, %v765
        %v1376 = vmul.f32 %v770, %v770
        %v1377 = vmul.f32 %v775, %v775
        %v1378 = vmul.f32 %v780, %v780
        %v1379 = vmul.f32 %v785, %v785
        %v1380 = vmul.f32 %v790, %v790
        %v1381 = vmul.f32 %v795, %v795
        %v1382 = vmul.f32 %v800, %v800
        %v1383 = vmul.f32 %v805, %v805
        %v1384 = vmul.f32 %v810, %v810
        %v1385 = vmul.f32 %v815, %v815
        %v1386 = vmul.f32 %v820, %v820
        %v1387 = vmul.f32 %v825, %v825
        %v1388 = vmul.f32 %v830, %v830
        %v1389 = vmul.f32 %v835, %v835
        %v1390 = vmul.f32 %v840, %v840
        %v1391 = vmul.f32 %v845, %v845
        %v1392 = vmul.f32 %v850, %v850
        %v1393 = vmul.f32 %v855, %v855
        %v1394 = vmul.f32 %v860, %v860
        %v1395 = vmul.f32 %v865, %v865
        %v1396 = vmul.f32 %v870, %v870
        %v1397 = vmul.f32 %v875, %v875
        %v1398 = vmul.f32 %v880, %v880
        %v1399 = vmul.f32 %v885, %v885
        %v1400 = vmul.f32 %v890, %v890
        %v1401 = vmul.f32 %v895, %v895
        %v1402 = vmul.f32 %v900, %v900
        %v1403 = vmul.f32 %v905, %v905
        %v1404 = vmul.f32 %v910, %v910
        %v1405 = vmul.f32 %v915, %v915
        %v1406 = vmul.f32 %v920, %v920
        %v1407 = vmul.f32 %v925, %v925
        %v1408 = vmul.f32 %v930, %v930
        %v1409 = vmul.f32 %v935, %v935
        %v1410 = vmul.f32 %v940, %v940
        %v1411 = vmul.f32 %v945, %v945
        %v1412 = vmul.f32 %v950, %v950
        %v1413 = vmul.f32 %v955, %v955
        %v1414 = vmul.f32 %v960, %v960
        %v1415 = vmul.f32 %v965, %v965
        %v1416 = vmul.f32 %v970, %v970
        %v1417 = vmul.f32 %v975, %v975
        %v1418 = vmul.f32 %v980, %v980
        %v1419 = vmul.f32 %v985, %v985
        %v1420 = vmul.f32 %v990, %v990
        %v1421 = vmul.f32 %v995, %v995
        %v1422 = vmul.f32 %v1000, %v1000
        %v1423 = vmul.f32 %v1005, %v1005
        %v1424 = vmul.f32 %v1010, %v1010
        %v1425 = vmul.f32 %v1015, %v1015
        %v1426 = vmul.f32 %v1020, %v1020
        %v1427 = vmul.f32 %v1025, %v1025
        %v1428 = vmul.f32 %v1030, %v1030
        %v1429 = vmul.f32 %v1035, %v1035
        %v1430 = vmul.f32 %v1040, %v1040
        %v1431 = vmul.f32 %v1045, %v1045
        %v1432 = vmul.f32 %v1050, %v1050
        %v1433 = vmul.f32 %v1055, %v1055
        %v1434 = vmul.f32 %v1060, %v1060
        %v1435 = vmul.f32 %v1065, %v1065
        %v1436 = vmul.f32 %v1070, %v1070
        %v1437 = vmul.f32 %v1075, %v1075
        %v1438 = vmul.f32 %v1080, %v1080
        %v1439 = vmul.f32 %v1085, %v1085
        %v1440 = vmul.f32 %v1090, %v1090
        %v1441 = vmul.f32 %v1095, %v1095
        %v1442 = vmul.f32 %v1100, %v1100
        %v1443 = vmul.f32 %v1105, %v1105
        %v1444 = vmul.f32 %v1110, %v1110
        %v1445 = vmul.f32 %v1115, %v1115
        %v1446 = vmul.f32 %v1120, %v1120
        %v1447 = vmul.f32 %v1125, %v1125
        %v1448 = vmul.f32 %v1130, %v1130
        %v1449 = vmul.f32 %v1135, %v1135
        %v1450 = vmul.f32 %v1140, %v1140
        %v1451 = vmul.f32 %v1145, %v1145
        %v1452 = vmul.f32 %v1150, %v1150
        %v1453 = vmul.f32 %v1155, %v1155
        %v1454 = vmul.f32 %v1160, %v1160
        %v1455 = vmul.f32 %v1165, %v1165
        %v1456 = vmul.f32 %v1170, %v1170
        %v1457 = vmul.f32 %v1175, %v1175
        %v1458 = vmul.f32 %v1180, %v1180
        %v1459 = vmul.f32 %v1185, %v1185
        %v1460 = vmul.f32 %v1190, %v1190
        %v1461 = vmul.f32 %v1195, %v1195
        %v1462 = vmul.f32 %v1200, %v1200
        %v1463 = vmul.f32 %v1205, %v1205
        %v1464 = vmul.f32 %v1210, %v1210
        %v1465 = vmul.f32 %v1215, %v1215
        %v1466 = vmul.f32 %v1220, %v1220
        %v1467 = vmul.f32 %v1225, %v1225
        %v1468 = vmul.f32 %v1230, %v1230
        %v1469 = vmul.f32 %v1235, %v1235
        %v1470 = vmul.f32 %v1240, %v1240
        %v1471 = vmul.f32 %v1245, %v1245
        %v1472 = vmul.f32 %v1250, %v1250
        %v1473 = vmul.f32 %v1255, %v1255
        %v1474 = vmul.f32 %v1260, %v1260
        %v1475 = vmul.f32 %v1265, %v1265
        %v1476 = vmul.f32 %v1270, %v1270
        %v1477 = vmul.f32 %v1275, %v1275
        %v1478 = vmul.f32 %v1280, %v1280
        %v1479 = vmul.f32 %v1285, %v1285
        %v1480 = vmul.f32 %v1290, %v1290
        %v1481 = vmul.f32 %v1295, %v1295
        %v1482 = vmul.f32 %v1300, %v1300
        %v1483 = vmul.f32 %v1305, %v1305
        %v1484 = vmul.f32 %v1310, %v1310
        %v1485 = vmul.f32 %v1315, %v1315
        %v1486 = vmul.f32 %v1320, %v1320
        %v1487 = vmul.f32 %v1325, %v1325
        %v1488 = vmul.f32 %v1330, %v1330
        %v1489 = vmul.f32 %v1335, %v1335
        %v1490 = vmul.f32 %v1340, %v1340
        %v1491 = vmul.f32 %v1345, %v1345
        %v1492 = vmul.f32 %v1350, %v1350
        %v1493 = vmul.f32 %v1355, %v1355
        %v1494 = vmul.f32 %v1360, %v1360
        %v1495 = vmul.f32 %v1365, %v1365
        %v1496 = vsel %vm278, %v1368, 0.0
        %1497 = vadd.xlane.f32.xlu0 %v1496
        %v1498 = vpop.xlane.xlu0 %1497
        %v1499 = vsel %vm278, %v1369, 0.0
        %1500 = vadd.xlane.f32.xlu0 %v1499
        %v1501 = vpop.xlane.xlu0 %1500
        %v1502 = vsel %vm278, %v1370, 0.0
        %1503 = vadd.xlane.f32.xlu0 %v1502
        %v1504 = vpop.xlane.xlu0 %1503
        %v1505 = vsel %vm278, %v1371, 0.0
        %1506 = vadd.xlane.f32.xlu0 %v1505
        %v1507 = vpop.xlane.xlu0 %1506
        %v1508 = vsel %vm278, %v1372, 0.0
        %1509 = vadd.xlane.f32.xlu0 %v1508
        %v1510 = vpop.xlane.xlu0 %1509
        %v1511 = vsel %vm278, %v1373, 0.0
        %1512 = vadd.xlane.f32.xlu0 %v1511
        %v1513 = vpop.xlane.xlu0 %1512
        %v1514 = vsel %vm278, %v1374, 0.0
        %1515 = vadd.xlane.f32.xlu0 %v1514
        %v1516 = vpop.xlane.xlu0 %1515
        %v1517 = vsel %vm278, %v1375, 0.0
        %1518 = vadd.xlane.f32.xlu0 %v1517
        %v1519 = vpop.xlane.xlu0 %1518
        %v1520 = vsel %vm278, %v1376, 0.0
        %1521 = vadd.xlane.f32.xlu0 %v1520
        %v1522 = vpop.xlane.xlu0 %1521
        %v1523 = vsel %vm278, %v1377, 0.0
        %1524 = vadd.xlane.f32.xlu0 %v1523
        %v1525 = vpop.xlane.xlu0 %1524
        %v1526 = vsel %vm278, %v1378, 0.0
        %1527 = vadd.xlane.f32.xlu0 %v1526
        %v1528 = vpop.xlane.xlu0 %1527
        %v1529 = vsel %vm278, %v1379, 0.0
        %1530 = vadd.xlane.f32.xlu0 %v1529
        %v1531 = vpop.xlane.xlu0 %1530
        %v1532 = vsel %vm278, %v1380, 0.0
        %1533 = vadd.xlane.f32.xlu0 %v1532
        %v1534 = vpop.xlane.xlu0 %1533
        %v1535 = vsel %vm278, %v1381, 0.0
        %1536 = vadd.xlane.f32.xlu0 %v1535
        %v1537 = vpop.xlane.xlu0 %1536
        %v1538 = vsel %vm278, %v1382, 0.0
        %1539 = vadd.xlane.f32.xlu0 %v1538
        %v1540 = vpop.xlane.xlu0 %1539
        %v1541 = vsel %vm278, %v1383, 0.0
        %1542 = vadd.xlane.f32.xlu0 %v1541
        %v1543 = vpop.xlane.xlu0 %1542
        %v1544 = vsel %vm278, %v1384, 0.0
        %1545 = vadd.xlane.f32.xlu0 %v1544
        %v1546 = vpop.xlane.xlu0 %1545
        %v1547 = vsel %vm278, %v1385, 0.0
        %1548 = vadd.xlane.f32.xlu0 %v1547
        %v1549 = vpop.xlane.xlu0 %1548
        %v1550 = vsel %vm278, %v1386, 0.0
        %1551 = vadd.xlane.f32.xlu0 %v1550
        %v1552 = vpop.xlane.xlu0 %1551
        %v1553 = vsel %vm278, %v1387, 0.0
        %1554 = vadd.xlane.f32.xlu0 %v1553
        %v1555 = vpop.xlane.xlu0 %1554
        %v1556 = vsel %vm278, %v1388, 0.0
        %1557 = vadd.xlane.f32.xlu0 %v1556
        %v1558 = vpop.xlane.xlu0 %1557
        %v1559 = vsel %vm278, %v1389, 0.0
        %1560 = vadd.xlane.f32.xlu0 %v1559
        %v1561 = vpop.xlane.xlu0 %1560
        %v1562 = vsel %vm278, %v1390, 0.0
        %1563 = vadd.xlane.f32.xlu0 %v1562
        %v1564 = vpop.xlane.xlu0 %1563
        %v1565 = vsel %vm278, %v1391, 0.0
        %1566 = vadd.xlane.f32.xlu0 %v1565
        %v1567 = vpop.xlane.xlu0 %1566
        %v1568 = vsel %vm278, %v1392, 0.0
        %1569 = vadd.xlane.f32.xlu0 %v1568
        %v1570 = vpop.xlane.xlu0 %1569
        %v1571 = vsel %vm278, %v1393, 0.0
        %1572 = vadd.xlane.f32.xlu0 %v1571
        %v1573 = vpop.xlane.xlu0 %1572
        %v1574 = vsel %vm278, %v1394, 0.0
        %1575 = vadd.xlane.f32.xlu0 %v1574
        %v1576 = vpop.xlane.xlu0 %1575
        %v1577 = vsel %vm278, %v1395, 0.0
        %1578 = vadd.xlane.f32.xlu0 %v1577
        %v1579 = vpop.xlane.xlu0 %1578
        %v1580 = vsel %vm278, %v1396, 0.0
        %1581 = vadd.xlane.f32.xlu0 %v1580
        %v1582 = vpop.xlane.xlu0 %1581
        %v1583 = vsel %vm278, %v1397, 0.0
        %1584 = vadd.xlane.f32.xlu0 %v1583
        %v1585 = vpop.xlane.xlu0 %1584
        %v1586 = vsel %vm278, %v1398, 0.0
        %1587 = vadd.xlane.f32.xlu0 %v1586
        %v1588 = vpop.xlane.xlu0 %1587
        %v1589 = vsel %vm278, %v1399, 0.0
        %1590 = vadd.xlane.f32.xlu0 %v1589
        %v1591 = vpop.xlane.xlu0 %1590
        %v1592 = vsel %vm278, %v1400, 0.0
        %1593 = vadd.xlane.f32.xlu0 %v1592
        %v1594 = vpop.xlane.xlu0 %1593
        %v1595 = vsel %vm278, %v1401, 0.0
        %1596 = vadd.xlane.f32.xlu0 %v1595
        %v1597 = vpop.xlane.xlu0 %1596
        %v1598 = vsel %vm278, %v1402, 0.0
        %1599 = vadd.xlane.f32.xlu0 %v1598
        %v1600 = vpop.xlane.xlu0 %1599
        %v1601 = vsel %vm278, %v1403, 0.0
        %1602 = vadd.xlane.f32.xlu0 %v1601
        %v1603 = vpop.xlane.xlu0 %1602
        %v1604 = vsel %vm278, %v1404, 0.0
        %1605 = vadd.xlane.f32.xlu0 %v1604
        %v1606 = vpop.xlane.xlu0 %1605
        %v1607 = vsel %vm278, %v1405, 0.0
        %1608 = vadd.xlane.f32.xlu0 %v1607
        %v1609 = vpop.xlane.xlu0 %1608
        %v1610 = vsel %vm278, %v1406, 0.0
        %1611 = vadd.xlane.f32.xlu0 %v1610
        %v1612 = vpop.xlane.xlu0 %1611
        %v1613 = vsel %vm278, %v1407, 0.0
        %1614 = vadd.xlane.f32.xlu0 %v1613
        %v1615 = vpop.xlane.xlu0 %1614
        %v1616 = vsel %vm278, %v1408, 0.0
        %1617 = vadd.xlane.f32.xlu0 %v1616
        %v1618 = vpop.xlane.xlu0 %1617
        %v1619 = vsel %vm278, %v1409, 0.0
        %1620 = vadd.xlane.f32.xlu0 %v1619
        %v1621 = vpop.xlane.xlu0 %1620
        %v1622 = vsel %vm278, %v1410, 0.0
        %1623 = vadd.xlane.f32.xlu0 %v1622
        %v1624 = vpop.xlane.xlu0 %1623
        %v1625 = vsel %vm278, %v1411, 0.0
        %1626 = vadd.xlane.f32.xlu0 %v1625
        %v1627 = vpop.xlane.xlu0 %1626
        %v1628 = vsel %vm278, %v1412, 0.0
        %1629 = vadd.xlane.f32.xlu0 %v1628
        %v1630 = vpop.xlane.xlu0 %1629
        %v1631 = vsel %vm278, %v1413, 0.0
        %1632 = vadd.xlane.f32.xlu0 %v1631
        %v1633 = vpop.xlane.xlu0 %1632
        %v1634 = vsel %vm278, %v1414, 0.0
        %1635 = vadd.xlane.f32.xlu0 %v1634
        %v1636 = vpop.xlane.xlu0 %1635
        %v1637 = vsel %vm278, %v1415, 0.0
        %1638 = vadd.xlane.f32.xlu0 %v1637
        %v1639 = vpop.xlane.xlu0 %1638
        %v1640 = vsel %vm278, %v1416, 0.0
        %1641 = vadd.xlane.f32.xlu0 %v1640
        %v1642 = vpop.xlane.xlu0 %1641
        %v1643 = vsel %vm278, %v1417, 0.0
        %1644 = vadd.xlane.f32.xlu0 %v1643
        %v1645 = vpop.xlane.xlu0 %1644
        %v1646 = vsel %vm278, %v1418, 0.0
        %1647 = vadd.xlane.f32.xlu0 %v1646
        %v1648 = vpop.xlane.xlu0 %1647
        %v1649 = vsel %vm278, %v1419, 0.0
        %1650 = vadd.xlane.f32.xlu0 %v1649
        %v1651 = vpop.xlane.xlu0 %1650
        %v1652 = vsel %vm278, %v1420, 0.0
        %1653 = vadd.xlane.f32.xlu0 %v1652
        %v1654 = vpop.xlane.xlu0 %1653
        %v1655 = vsel %vm278, %v1421, 0.0
        %1656 = vadd.xlane.f32.xlu0 %v1655
        %v1657 = vpop.xlane.xlu0 %1656
        %v1658 = vsel %vm278, %v1422, 0.0
        %1659 = vadd.xlane.f32.xlu0 %v1658
        %v1660 = vpop.xlane.xlu0 %1659
        %v1661 = vsel %vm278, %v1423, 0.0
        %1662 = vadd.xlane.f32.xlu0 %v1661
        %v1663 = vpop.xlane.xlu0 %1662
        %v1664 = vsel %vm278, %v1424, 0.0
        %1665 = vadd.xlane.f32.xlu0 %v1664
        %v1666 = vpop.xlane.xlu0 %1665
        %v1667 = vsel %vm278, %v1425, 0.0
        %1668 = vadd.xlane.f32.xlu0 %v1667
        %v1669 = vpop.xlane.xlu0 %1668
        %v1670 = vsel %vm278, %v1426, 0.0
        %1671 = vadd.xlane.f32.xlu0 %v1670
        %v1672 = vpop.xlane.xlu0 %1671
        %v1673 = vsel %vm278, %v1427, 0.0
        %1674 = vadd.xlane.f32.xlu0 %v1673
        %v1675 = vpop.xlane.xlu0 %1674
        %v1676 = vsel %vm278, %v1428, 0.0
        %1677 = vadd.xlane.f32.xlu0 %v1676
        %v1678 = vpop.xlane.xlu0 %1677
        %v1679 = vsel %vm278, %v1429, 0.0
        %1680 = vadd.xlane.f32.xlu0 %v1679
        %v1681 = vpop.xlane.xlu0 %1680
        %v1682 = vsel %vm278, %v1430, 0.0
        %1683 = vadd.xlane.f32.xlu0 %v1682
        %v1684 = vpop.xlane.xlu0 %1683
        %v1685 = vsel %vm278, %v1431, 0.0
        %1686 = vadd.xlane.f32.xlu0 %v1685
        %v1687 = vpop.xlane.xlu0 %1686
        %v1688 = vsel %vm278, %v1432, 0.0
        %1689 = vadd.xlane.f32.xlu0 %v1688
        %v1690 = vpop.xlane.xlu0 %1689
        %v1691 = vsel %vm278, %v1433, 0.0
        %1692 = vadd.xlane.f32.xlu0 %v1691
        %v1693 = vpop.xlane.xlu0 %1692
        %v1694 = vsel %vm278, %v1434, 0.0
        %1695 = vadd.xlane.f32.xlu0 %v1694
        %v1696 = vpop.xlane.xlu0 %1695
        %v1697 = vsel %vm278, %v1435, 0.0
        %1698 = vadd.xlane.f32.xlu0 %v1697
        %v1699 = vpop.xlane.xlu0 %1698
        %v1700 = vsel %vm278, %v1436, 0.0
        %1701 = vadd.xlane.f32.xlu0 %v1700
        %v1702 = vpop.xlane.xlu0 %1701
        %v1703 = vsel %vm278, %v1437, 0.0
        %1704 = vadd.xlane.f32.xlu0 %v1703
        %v1705 = vpop.xlane.xlu0 %1704
        %v1706 = vsel %vm278, %v1438, 0.0
        %1707 = vadd.xlane.f32.xlu0 %v1706
        %v1708 = vpop.xlane.xlu0 %1707
        %v1709 = vsel %vm278, %v1439, 0.0
        %1710 = vadd.xlane.f32.xlu0 %v1709
        %v1711 = vpop.xlane.xlu0 %1710
        %v1712 = vsel %vm278, %v1440, 0.0
        %1713 = vadd.xlane.f32.xlu0 %v1712
        %v1714 = vpop.xlane.xlu0 %1713
        %v1715 = vsel %vm278, %v1441, 0.0
        %1716 = vadd.xlane.f32.xlu0 %v1715
        %v1717 = vpop.xlane.xlu0 %1716
        %v1718 = vsel %vm278, %v1442, 0.0
        %1719 = vadd.xlane.f32.xlu0 %v1718
        %v1720 = vpop.xlane.xlu0 %1719
        %v1721 = vsel %vm278, %v1443, 0.0
        %1722 = vadd.xlane.f32.xlu0 %v1721
        %v1723 = vpop.xlane.xlu0 %1722
        %v1724 = vsel %vm278, %v1444, 0.0
        %1725 = vadd.xlane.f32.xlu0 %v1724
        %v1726 = vpop.xlane.xlu0 %1725
        %v1727 = vsel %vm278, %v1445, 0.0
        %1728 = vadd.xlane.f32.xlu0 %v1727
        %v1729 = vpop.xlane.xlu0 %1728
        %v1730 = vsel %vm278, %v1446, 0.0
        %1731 = vadd.xlane.f32.xlu0 %v1730
        %v1732 = vpop.xlane.xlu0 %1731
        %v1733 = vsel %vm278, %v1447, 0.0
        %1734 = vadd.xlane.f32.xlu0 %v1733
        %v1735 = vpop.xlane.xlu0 %1734
        %v1736 = vsel %vm278, %v1448, 0.0
        %1737 = vadd.xlane.f32.xlu0 %v1736
        %v1738 = vpop.xlane.xlu0 %1737
        %v1739 = vsel %vm278, %v1449, 0.0
        %1740 = vadd.xlane.f32.xlu0 %v1739
        %v1741 = vpop.xlane.xlu0 %1740
        %v1742 = vsel %vm278, %v1450, 0.0
        %1743 = vadd.xlane.f32.xlu0 %v1742
        %v1744 = vpop.xlane.xlu0 %1743
        %v1745 = vsel %vm278, %v1451, 0.0
        %1746 = vadd.xlane.f32.xlu0 %v1745
        %v1747 = vpop.xlane.xlu0 %1746
        %v1748 = vsel %vm278, %v1452, 0.0
        %1749 = vadd.xlane.f32.xlu0 %v1748
        %v1750 = vpop.xlane.xlu0 %1749
        %v1751 = vsel %vm278, %v1453, 0.0
        %1752 = vadd.xlane.f32.xlu0 %v1751
        %v1753 = vpop.xlane.xlu0 %1752
        %v1754 = vsel %vm278, %v1454, 0.0
        %1755 = vadd.xlane.f32.xlu0 %v1754
        %v1756 = vpop.xlane.xlu0 %1755
        %v1757 = vsel %vm278, %v1455, 0.0
        %1758 = vadd.xlane.f32.xlu0 %v1757
        %v1759 = vpop.xlane.xlu0 %1758
        %v1760 = vsel %vm278, %v1456, 0.0
        %1761 = vadd.xlane.f32.xlu0 %v1760
        %v1762 = vpop.xlane.xlu0 %1761
        %v1763 = vsel %vm278, %v1457, 0.0
        %1764 = vadd.xlane.f32.xlu0 %v1763
        %v1765 = vpop.xlane.xlu0 %1764
        %v1766 = vsel %vm278, %v1458, 0.0
        %1767 = vadd.xlane.f32.xlu0 %v1766
        %v1768 = vpop.xlane.xlu0 %1767
        %v1769 = vsel %vm278, %v1459, 0.0
        %1770 = vadd.xlane.f32.xlu0 %v1769
        %v1771 = vpop.xlane.xlu0 %1770
        %v1772 = vsel %vm278, %v1460, 0.0
        %1773 = vadd.xlane.f32.xlu0 %v1772
        %v1774 = vpop.xlane.xlu0 %1773
        %v1775 = vsel %vm278, %v1461, 0.0
        %1776 = vadd.xlane.f32.xlu0 %v1775
        %v1777 = vpop.xlane.xlu0 %1776
        %v1778 = vsel %vm278, %v1462, 0.0
        %1779 = vadd.xlane.f32.xlu0 %v1778
        %v1780 = vpop.xlane.xlu0 %1779
        %v1781 = vsel %vm278, %v1463, 0.0
        %1782 = vadd.xlane.f32.xlu0 %v1781
        %v1783 = vpop.xlane.xlu0 %1782
        %v1784 = vsel %vm278, %v1464, 0.0
        %1785 = vadd.xlane.f32.xlu0 %v1784
        %v1786 = vpop.xlane.xlu0 %1785
        %v1787 = vsel %vm278, %v1465, 0.0
        %1788 = vadd.xlane.f32.xlu0 %v1787
        %v1789 = vpop.xlane.xlu0 %1788
        %v1790 = vsel %vm278, %v1466, 0.0
        %1791 = vadd.xlane.f32.xlu0 %v1790
        %v1792 = vpop.xlane.xlu0 %1791
        %v1793 = vsel %vm278, %v1467, 0.0
        %1794 = vadd.xlane.f32.xlu0 %v1793
        %v1795 = vpop.xlane.xlu0 %1794
        %v1796 = vsel %vm278, %v1468, 0.0
        %1797 = vadd.xlane.f32.xlu0 %v1796
        %v1798 = vpop.xlane.xlu0 %1797
        %v1799 = vsel %vm278, %v1469, 0.0
        %1800 = vadd.xlane.f32.xlu0 %v1799
        %v1801 = vpop.xlane.xlu0 %1800
        %v1802 = vsel %vm278, %v1470, 0.0
        %1803 = vadd.xlane.f32.xlu0 %v1802
        %v1804 = vpop.xlane.xlu0 %1803
        %v1805 = vsel %vm278, %v1471, 0.0
        %1806 = vadd.xlane.f32.xlu0 %v1805
        %v1807 = vpop.xlane.xlu0 %1806
        %v1808 = vsel %vm278, %v1472, 0.0
        %1809 = vadd.xlane.f32.xlu0 %v1808
        %v1810 = vpop.xlane.xlu0 %1809
        %v1811 = vsel %vm278, %v1473, 0.0
        %1812 = vadd.xlane.f32.xlu0 %v1811
        %v1813 = vpop.xlane.xlu0 %1812
        %v1814 = vsel %vm278, %v1474, 0.0
        %1815 = vadd.xlane.f32.xlu0 %v1814
        %v1816 = vpop.xlane.xlu0 %1815
        %v1817 = vsel %vm278, %v1475, 0.0
        %1818 = vadd.xlane.f32.xlu0 %v1817
        %v1819 = vpop.xlane.xlu0 %1818
        %v1820 = vsel %vm278, %v1476, 0.0
        %1821 = vadd.xlane.f32.xlu0 %v1820
        %v1822 = vpop.xlane.xlu0 %1821
        %v1823 = vsel %vm278, %v1477, 0.0
        %1824 = vadd.xlane.f32.xlu0 %v1823
        %v1825 = vpop.xlane.xlu0 %1824
        %v1826 = vsel %vm278, %v1478, 0.0
        %1827 = vadd.xlane.f32.xlu0 %v1826
        %v1828 = vpop.xlane.xlu0 %1827
        %v1829 = vsel %vm278, %v1479, 0.0
        %1830 = vadd.xlane.f32.xlu0 %v1829
        %v1831 = vpop.xlane.xlu0 %1830
        %v1832 = vsel %vm278, %v1480, 0.0
        %1833 = vadd.xlane.f32.xlu0 %v1832
        %v1834 = vpop.xlane.xlu0 %1833
        %v1835 = vsel %vm278, %v1481, 0.0
        %1836 = vadd.xlane.f32.xlu0 %v1835
        %v1837 = vpop.xlane.xlu0 %1836
        %v1838 = vsel %vm278, %v1482, 0.0
        %1839 = vadd.xlane.f32.xlu0 %v1838
        %v1840 = vpop.xlane.xlu0 %1839
        %v1841 = vsel %vm278, %v1483, 0.0
        %1842 = vadd.xlane.f32.xlu0 %v1841
        %v1843 = vpop.xlane.xlu0 %1842
        %v1844 = vsel %vm278, %v1484, 0.0
        %1845 = vadd.xlane.f32.xlu0 %v1844
        %v1846 = vpop.xlane.xlu0 %1845
        %v1847 = vsel %vm278, %v1485, 0.0
        %1848 = vadd.xlane.f32.xlu0 %v1847
        %v1849 = vpop.xlane.xlu0 %1848
        %v1850 = vsel %vm278, %v1486, 0.0
        %1851 = vadd.xlane.f32.xlu0 %v1850
        %v1852 = vpop.xlane.xlu0 %1851
        %v1853 = vsel %vm278, %v1487, 0.0
        %1854 = vadd.xlane.f32.xlu0 %v1853
        %v1855 = vpop.xlane.xlu0 %1854
        %v1856 = vsel %vm278, %v1488, 0.0
        %1857 = vadd.xlane.f32.xlu0 %v1856
        %v1858 = vpop.xlane.xlu0 %1857
        %v1859 = vsel %vm278, %v1489, 0.0
        %1860 = vadd.xlane.f32.xlu0 %v1859
        %v1861 = vpop.xlane.xlu0 %1860
        %v1862 = vsel %vm278, %v1490, 0.0
        %1863 = vadd.xlane.f32.xlu0 %v1862
        %v1864 = vpop.xlane.xlu0 %1863
        %v1865 = vsel %vm278, %v1491, 0.0
        %1866 = vadd.xlane.f32.xlu0 %v1865
        %v1867 = vpop.xlane.xlu0 %1866
        %v1868 = vsel %vm278, %v1492, 0.0
        %1869 = vadd.xlane.f32.xlu0 %v1868
        %v1870 = vpop.xlane.xlu0 %1869
        %v1871 = vsel %vm278, %v1493, 0.0
        %1872 = vadd.xlane.f32.xlu0 %v1871
        %v1873 = vpop.xlane.xlu0 %1872
        %v1874 = vsel %vm278, %v1494, 0.0
        %1875 = vadd.xlane.f32.xlu0 %v1874
        %v1876 = vpop.xlane.xlu0 %1875
        %v1877 = vsel %vm278, %v1495, 0.0
        %1878 = vadd.xlane.f32.xlu0 %v1877
        %v1879 = vpop.xlane.xlu0 %1878
        %v1880 = vsub.f32 0.0, %v1498
        %v1881 = vsub.f32 0.0, %v1501
        %v1882 = vsub.f32 0.0, %v1504
        %v1883 = vsub.f32 0.0, %v1507
        %v1884 = vsub.f32 0.0, %v1510
        %v1885 = vsub.f32 0.0, %v1513
        %v1886 = vsub.f32 0.0, %v1516
        %v1887 = vsub.f32 0.0, %v1519
        %v1888 = vsub.f32 0.0, %v1522
        %v1889 = vsub.f32 0.0, %v1525
        %v1890 = vsub.f32 0.0, %v1528
        %v1891 = vsub.f32 0.0, %v1531
        %v1892 = vsub.f32 0.0, %v1534
        %v1893 = vsub.f32 0.0, %v1537
        %v1894 = vsub.f32 0.0, %v1540
        %v1895 = vsub.f32 0.0, %v1543
        %v1896 = vsub.f32 0.0, %v1546
        %v1897 = vsub.f32 0.0, %v1549
        %v1898 = vsub.f32 0.0, %v1552
        %v1899 = vsub.f32 0.0, %v1555
        %v1900 = vsub.f32 0.0, %v1558
        %v1901 = vsub.f32 0.0, %v1561
        %v1902 = vsub.f32 0.0, %v1564
        %v1903 = vsub.f32 0.0, %v1567
        %v1904 = vsub.f32 0.0, %v1570
        %v1905 = vsub.f32 0.0, %v1573
        %v1906 = vsub.f32 0.0, %v1576
        %v1907 = vsub.f32 0.0, %v1579
        %v1908 = vsub.f32 0.0, %v1582
        %v1909 = vsub.f32 0.0, %v1585
        %v1910 = vsub.f32 0.0, %v1588
        %v1911 = vsub.f32 0.0, %v1591
        %v1912 = vsub.f32 0.0, %v1594
        %v1913 = vsub.f32 0.0, %v1597
        %v1914 = vsub.f32 0.0, %v1600
        %v1915 = vsub.f32 0.0, %v1603
        %v1916 = vsub.f32 0.0, %v1606
        %v1917 = vsub.f32 0.0, %v1609
        %v1918 = vsub.f32 0.0, %v1612
        %v1919 = vsub.f32 0.0, %v1615
        %v1920 = vsub.f32 0.0, %v1618
        %v1921 = vsub.f32 0.0, %v1621
        %v1922 = vsub.f32 0.0, %v1624
        %v1923 = vsub.f32 0.0, %v1627
        %v1924 = vsub.f32 0.0, %v1630
        %v1925 = vsub.f32 0.0, %v1633
        %v1926 = vsub.f32 0.0, %v1636
        %v1927 = vsub.f32 0.0, %v1639
        %v1928 = vsub.f32 0.0, %v1642
        %v1929 = vsub.f32 0.0, %v1645
        %v1930 = vsub.f32 0.0, %v1648
        %v1931 = vsub.f32 0.0, %v1651
        %v1932 = vsub.f32 0.0, %v1654
        %v1933 = vsub.f32 0.0, %v1657
        %v1934 = vsub.f32 0.0, %v1660
        %v1935 = vsub.f32 0.0, %v1663
        %v1936 = vsub.f32 0.0, %v1666
        %v1937 = vsub.f32 0.0, %v1669
        %v1938 = vsub.f32 0.0, %v1672
        %v1939 = vsub.f32 0.0, %v1675
        %v1940 = vsub.f32 0.0, %v1678
        %v1941 = vsub.f32 0.0, %v1681
        %v1942 = vsub.f32 0.0, %v1684
        %v1943 = vsub.f32 0.0, %v1687
        %v1944 = vsub.f32 0.0, %v1690
        %v1945 = vsub.f32 0.0, %v1693
        %v1946 = vsub.f32 0.0, %v1696
        %v1947 = vsub.f32 0.0, %v1699
        %v1948 = vsub.f32 0.0, %v1702
        %v1949 = vsub.f32 0.0, %v1705
        %v1950 = vsub.f32 0.0, %v1708
        %v1951 = vsub.f32 0.0, %v1711
        %v1952 = vsub.f32 0.0, %v1714
        %v1953 = vsub.f32 0.0, %v1717
        %v1954 = vsub.f32 0.0, %v1720
        %v1955 = vsub.f32 0.0, %v1723
        %v1956 = vsub.f32 0.0, %v1726
        %v1957 = vsub.f32 0.0, %v1729
        %v1958 = vsub.f32 0.0, %v1732
        %v1959 = vsub.f32 0.0, %v1735
        %v1960 = vsub.f32 0.0, %v1738
        %v1961 = vsub.f32 0.0, %v1741
        %v1962 = vsub.f32 0.0, %v1744
        %v1963 = vsub.f32 0.0, %v1747
        %v1964 = vsub.f32 0.0, %v1750
        %v1965 = vsub.f32 0.0, %v1753
        %v1966 = vsub.f32 0.0, %v1756
        %v1967 = vsub.f32 0.0, %v1759
        %v1968 = vsub.f32 0.0, %v1762
        %v1969 = vsub.f32 0.0, %v1765
        %v1970 = vsub.f32 0.0, %v1768
        %v1971 = vsub.f32 0.0, %v1771
        %v1972 = vsub.f32 0.0, %v1774
        %v1973 = vsub.f32 0.0, %v1777
        %v1974 = vsub.f32 0.0, %v1780
        %v1975 = vsub.f32 0.0, %v1783
        %v1976 = vsub.f32 0.0, %v1786
        %v1977 = vsub.f32 0.0, %v1789
        %v1978 = vsub.f32 0.0, %v1792
        %v1979 = vsub.f32 0.0, %v1795
        %v1980 = vsub.f32 0.0, %v1798
        %v1981 = vsub.f32 0.0, %v1801
        %v1982 = vsub.f32 0.0, %v1804
        %v1983 = vsub.f32 0.0, %v1807
        %v1984 = vsub.f32 0.0, %v1810
        %v1985 = vsub.f32 0.0, %v1813
        %v1986 = vsub.f32 0.0, %v1816
        %v1987 = vsub.f32 0.0, %v1819
        %v1988 = vsub.f32 0.0, %v1822
        %v1989 = vsub.f32 0.0, %v1825
        %v1990 = vsub.f32 0.0, %v1828
        %v1991 = vsub.f32 0.0, %v1831
        %v1992 = vsub.f32 0.0, %v1834
        %v1993 = vsub.f32 0.0, %v1837
        %v1994 = vsub.f32 0.0, %v1840
        %v1995 = vsub.f32 0.0, %v1843
        %v1996 = vsub.f32 0.0, %v1846
        %v1997 = vsub.f32 0.0, %v1849
        %v1998 = vsub.f32 0.0, %v1852
        %v1999 = vsub.f32 0.0, %v1855
        %v2000 = vsub.f32 0.0, %v1858
        %v2001 = vsub.f32 0.0, %v1861
        %v2002 = vsub.f32 0.0, %v1864
        %v2003 = vsub.f32 0.0, %v1867
        %v2004 = vsub.f32 0.0, %v1870
        %v2005 = vsub.f32 0.0, %v1873
        %v2006 = vsub.f32 0.0, %v1876
        %v2007 = vsub.f32 0.0, %v1879
        %v2136 = vlaneseq
        %v2137 = vand.u32 %v2136, 127
        %v2138 = vlaneseq
        %v2139 = vshrl.u32 %v2138, 7
        %v2140 = vsub.s32 %v2137, %v2139
        %v2141 = vrot.slane %v1880, %v2140
        %v2142 = vadd.s32 %v2137, 4294967288
        %v2143 = vlaneseq
        %v2144 = vshrl.u32 %v2143, 7
        %v2145 = vsub.s32 %v2142, %v2144
        %v2146 = vrot.slane %v1881, %v2145
        %vm2147 = vcmask 130112
        %v2148 = vsel %vm2147, %v2146, %v2141
        %v2149 = vadd.s32 %v2137, 4294967280
        %v2150 = vlaneseq
        %v2151 = vshrl.u32 %v2150, 7
        %v2152 = vsub.s32 %v2149, %v2151
        %v2153 = vrot.slane %v1882, %v2152
        %vm2154 = vcmask 195712
        %v2155 = vsel %vm2154, %v2153, %v2148
        %v2156 = vadd.s32 %v2137, 4294967272
        %v2157 = vlaneseq
        %v2158 = vshrl.u32 %v2157, 7
        %v2159 = vsub.s32 %v2156, %v2158
        %v2160 = vrot.slane %v1883, %v2159
        %vm2161 = vcmask 261312
        %v2162 = vsel %vm2161, %v2160, %v2155
        %v2163 = vadd.s32 %v2137, 4294967264
        %v2164 = vlaneseq
        %v2165 = vshrl.u32 %v2164, 7
        %v2166 = vsub.s32 %v2163, %v2165
        %v2167 = vrot.slane %v1884, %v2166
        %vm2168 = vcmask 326912
        %v2169 = vsel %vm2168, %v2167, %v2162
        %v2170 = vadd.s32 %v2137, 4294967256
        %v2171 = vlaneseq
        %v2172 = vshrl.u32 %v2171, 7
        %v2173 = vsub.s32 %v2170, %v2172
        %v2174 = vrot.slane %v1885, %v2173
        %vm2175 = vcmask 392512
        %v2176 = vsel %vm2175, %v2174, %v2169
        %v2177 = vadd.s32 %v2137, 4294967248
        %v2178 = vlaneseq
        %v2179 = vshrl.u32 %v2178, 7
        %v2180 = vsub.s32 %v2177, %v2179
        %v2181 = vrot.slane %v1886, %v2180
        %vm2182 = vcmask 458112
        %v2183 = vsel %vm2182, %v2181, %v2176
        %v2184 = vadd.s32 %v2137, 4294967240
        %v2185 = vlaneseq
        %v2186 = vshrl.u32 %v2185, 7
        %v2187 = vsub.s32 %v2184, %v2186
        %v2188 = vrot.slane %v1887, %v2187
        %vm2189 = vcmask 523712
        %v2190 = vsel %vm2189, %v2188, %v2183
        %v2191 = vadd.s32 %v2137, 4294967232
        %v2192 = vlaneseq
        %v2193 = vshrl.u32 %v2192, 7
        %v2194 = vsub.s32 %v2191, %v2193
        %v2195 = vrot.slane %v1888, %v2194
        %vm2196 = vcmask 589312
        %v2197 = vsel %vm2196, %v2195, %v2190
        %v2198 = vadd.s32 %v2137, 4294967224
        %v2199 = vlaneseq
        %v2200 = vshrl.u32 %v2199, 7
        %v2201 = vsub.s32 %v2198, %v2200
        %v2202 = vrot.slane %v1889, %v2201
        %vm2203 = vcmask 654912
        %v2204 = vsel %vm2203, %v2202, %v2197
        %v2205 = vadd.s32 %v2137, 4294967216
        %v2206 = vlaneseq
        %v2207 = vshrl.u32 %v2206, 7
        %v2208 = vsub.s32 %v2205, %v2207
        %v2209 = vrot.slane %v1890, %v2208
        %vm2210 = vcmask 720512
        %v2211 = vsel %vm2210, %v2209, %v2204
        %v2212 = vadd.s32 %v2137, 4294967208
        %v2213 = vlaneseq
        %v2214 = vshrl.u32 %v2213, 7
        %v2215 = vsub.s32 %v2212, %v2214
        %v2216 = vrot.slane %v1891, %v2215
        %vm2217 = vcmask 786112
        %v2218 = vsel %vm2217, %v2216, %v2211
        %v2219 = vadd.s32 %v2137, 4294967200
        %v2220 = vlaneseq
        %v2221 = vshrl.u32 %v2220, 7
        %v2222 = vsub.s32 %v2219, %v2221
        %v2223 = vrot.slane %v1892, %v2222
        %vm2224 = vcmask 851712
        %v2225 = vsel %vm2224, %v2223, %v2218
        %v2226 = vadd.s32 %v2137, 4294967192
        %v2227 = vlaneseq
        %v2228 = vshrl.u32 %v2227, 7
        %v2229 = vsub.s32 %v2226, %v2228
        %v2230 = vrot.slane %v1893, %v2229
        %vm2231 = vcmask 917312
        %v2232 = vsel %vm2231, %v2230, %v2225
        %v2233 = vadd.s32 %v2137, 4294967184
        %v2234 = vlaneseq
        %v2235 = vshrl.u32 %v2234, 7
        %v2236 = vsub.s32 %v2233, %v2235
        %v2237 = vrot.slane %v1894, %v2236
        %vm2238 = vcmask 982912
        %v2239 = vsel %vm2238, %v2237, %v2232
        %v2240 = vadd.s32 %v2137, 4294967176
        %v2241 = vlaneseq
        %v2242 = vshrl.u32 %v2241, 7
        %v2243 = vsub.s32 %v2240, %v2242
        %v2244 = vrot.slane %v1895, %v2243
        %vm2245 = vcmask 1048512
        %v2246 = vsel %vm2245, %v2244, %v2239
        %v2247 = vlaneseq
        %v2248 = vshrl.u32 %v2247, 7
        %v2249 = vsub.s32 %v2137, %v2248
        %v2250 = vrot.slane %v1896, %v2249
        %v2251 = vlaneseq
        %v2252 = vshrl.u32 %v2251, 7
        %v2253 = vsub.s32 %v2142, %v2252
        %v2254 = vrot.slane %v1897, %v2253
        %v2255 = vsel %vm2147, %v2254, %v2250
        %v2256 = vlaneseq
        %v2257 = vshrl.u32 %v2256, 7
        %v2258 = vsub.s32 %v2149, %v2257
        %v2259 = vrot.slane %v1898, %v2258
        %v2260 = vsel %vm2154, %v2259, %v2255
        %v2261 = vlaneseq
        %v2262 = vshrl.u32 %v2261, 7
        %v2263 = vsub.s32 %v2156, %v2262
        %v2264 = vrot.slane %v1899, %v2263
        %v2265 = vsel %vm2161, %v2264, %v2260
        %v2266 = vlaneseq
        %v2267 = vshrl.u32 %v2266, 7
        %v2268 = vsub.s32 %v2163, %v2267
        %v2269 = vrot.slane %v1900, %v2268
        %v2270 = vsel %vm2168, %v2269, %v2265
        %v2271 = vlaneseq
        %v2272 = vshrl.u32 %v2271, 7
        %v2273 = vsub.s32 %v2170, %v2272
        %v2274 = vrot.slane %v1901, %v2273
        %v2275 = vsel %vm2175, %v2274, %v2270
        %v2276 = vlaneseq
        %v2277 = vshrl.u32 %v2276, 7
        %v2278 = vsub.s32 %v2177, %v2277
        %v2279 = vrot.slane %v1902, %v2278
        %v2280 = vsel %vm2182, %v2279, %v2275
        %v2281 = vlaneseq
        %v2282 = vshrl.u32 %v2281, 7
        %v2283 = vsub.s32 %v2184, %v2282
        %v2284 = vrot.slane %v1903, %v2283
        %v2285 = vsel %vm2189, %v2284, %v2280
        %v2286 = vlaneseq
        %v2287 = vshrl.u32 %v2286, 7
        %v2288 = vsub.s32 %v2191, %v2287
        %v2289 = vrot.slane %v1904, %v2288
        %v2290 = vsel %vm2196, %v2289, %v2285
        %v2291 = vlaneseq
        %v2292 = vshrl.u32 %v2291, 7
        %v2293 = vsub.s32 %v2198, %v2292
        %v2294 = vrot.slane %v1905, %v2293
        %v2295 = vsel %vm2203, %v2294, %v2290
        %v2296 = vlaneseq
        %v2297 = vshrl.u32 %v2296, 7
        %v2298 = vsub.s32 %v2205, %v2297
        %v2299 = vrot.slane %v1906, %v2298
        %v2300 = vsel %vm2210, %v2299, %v2295
        %v2301 = vlaneseq
        %v2302 = vshrl.u32 %v2301, 7
        %v2303 = vsub.s32 %v2212, %v2302
        %v2304 = vrot.slane %v1907, %v2303
        %v2305 = vsel %vm2217, %v2304, %v2300
        %v2306 = vlaneseq
        %v2307 = vshrl.u32 %v2306, 7
        %v2308 = vsub.s32 %v2219, %v2307
        %v2309 = vrot.slane %v1908, %v2308
        %v2310 = vsel %vm2224, %v2309, %v2305
        %v2311 = vlaneseq
        %v2312 = vshrl.u32 %v2311, 7
        %v2313 = vsub.s32 %v2226, %v2312
        %v2314 = vrot.slane %v1909, %v2313
        %v2315 = vsel %vm2231, %v2314, %v2310
        %v2316 = vlaneseq
        %v2317 = vshrl.u32 %v2316, 7
        %v2318 = vsub.s32 %v2233, %v2317
        %v2319 = vrot.slane %v1910, %v2318
        %v2320 = vsel %vm2238, %v2319, %v2315
        %v2321 = vlaneseq
        %v2322 = vshrl.u32 %v2321, 7
        %v2323 = vsub.s32 %v2240, %v2322
        %v2324 = vrot.slane %v1911, %v2323
        %v2325 = vsel %vm2245, %v2324, %v2320
        %v2326 = vlaneseq
        %v2327 = vshrl.u32 %v2326, 7
        %v2328 = vsub.s32 %v2137, %v2327
        %v2329 = vrot.slane %v1912, %v2328
        %v2330 = vlaneseq
        %v2331 = vshrl.u32 %v2330, 7
        %v2332 = vsub.s32 %v2142, %v2331
        %v2333 = vrot.slane %v1913, %v2332
        %v2334 = vsel %vm2147, %v2333, %v2329
        %v2335 = vlaneseq
        %v2336 = vshrl.u32 %v2335, 7
        %v2337 = vsub.s32 %v2149, %v2336
        %v2338 = vrot.slane %v1914, %v2337
        %v2339 = vsel %vm2154, %v2338, %v2334
        %v2340 = vlaneseq
        %v2341 = vshrl.u32 %v2340, 7
        %v2342 = vsub.s32 %v2156, %v2341
        %v2343 = vrot.slane %v1915, %v2342
        %v2344 = vsel %vm2161, %v2343, %v2339
        %v2345 = vlaneseq
        %v2346 = vshrl.u32 %v2345, 7
        %v2347 = vsub.s32 %v2163, %v2346
        %v2348 = vrot.slane %v1916, %v2347
        %v2349 = vsel %vm2168, %v2348, %v2344
        %v2350 = vlaneseq
        %v2351 = vshrl.u32 %v2350, 7
        %v2352 = vsub.s32 %v2170, %v2351
        %v2353 = vrot.slane %v1917, %v2352
        %v2354 = vsel %vm2175, %v2353, %v2349
        %v2355 = vlaneseq
        %v2356 = vshrl.u32 %v2355, 7
        %v2357 = vsub.s32 %v2177, %v2356
        %v2358 = vrot.slane %v1918, %v2357
        %v2359 = vsel %vm2182, %v2358, %v2354
        %v2360 = vlaneseq
        %v2361 = vshrl.u32 %v2360, 7
        %v2362 = vsub.s32 %v2184, %v2361
        %v2363 = vrot.slane %v1919, %v2362
        %v2364 = vsel %vm2189, %v2363, %v2359
        %v2365 = vlaneseq
        %v2366 = vshrl.u32 %v2365, 7
        %v2367 = vsub.s32 %v2191, %v2366
        %v2368 = vrot.slane %v1920, %v2367
        %v2369 = vsel %vm2196, %v2368, %v2364
        %v2370 = vlaneseq
        %v2371 = vshrl.u32 %v2370, 7
        %v2372 = vsub.s32 %v2198, %v2371
        %v2373 = vrot.slane %v1921, %v2372
        %v2374 = vsel %vm2203, %v2373, %v2369
        %v2375 = vlaneseq
        %v2376 = vshrl.u32 %v2375, 7
        %v2377 = vsub.s32 %v2205, %v2376
        %v2378 = vrot.slane %v1922, %v2377
        %v2379 = vsel %vm2210, %v2378, %v2374
        %v2380 = vlaneseq
        %v2381 = vshrl.u32 %v2380, 7
        %v2382 = vsub.s32 %v2212, %v2381
        %v2383 = vrot.slane %v1923, %v2382
        %v2384 = vsel %vm2217, %v2383, %v2379
        %v2385 = vlaneseq
        %v2386 = vshrl.u32 %v2385, 7
        %v2387 = vsub.s32 %v2219, %v2386
        %v2388 = vrot.slane %v1924, %v2387
        %v2389 = vsel %vm2224, %v2388, %v2384
        %v2390 = vlaneseq
        %v2391 = vshrl.u32 %v2390, 7
        %v2392 = vsub.s32 %v2226, %v2391
        %v2393 = vrot.slane %v1925, %v2392
        %v2394 = vsel %vm2231, %v2393, %v2389
        %v2395 = vlaneseq
        %v2396 = vshrl.u32 %v2395, 7
        %v2397 = vsub.s32 %v2233, %v2396
        %v2398 = vrot.slane %v1926, %v2397
        %v2399 = vsel %vm2238, %v2398, %v2394
        %v2400 = vlaneseq
        %v2401 = vshrl.u32 %v2400, 7
        %v2402 = vsub.s32 %v2240, %v2401
        %v2403 = vrot.slane %v1927, %v2402
        %v2404 = vsel %vm2245, %v2403, %v2399
        %v2405 = vlaneseq
        %v2406 = vshrl.u32 %v2405, 7
        %v2407 = vsub.s32 %v2137, %v2406
        %v2408 = vrot.slane %v1928, %v2407
        %v2409 = vlaneseq
        %v2410 = vshrl.u32 %v2409, 7
        %v2411 = vsub.s32 %v2142, %v2410
        %v2412 = vrot.slane %v1929, %v2411
        %v2413 = vsel %vm2147, %v2412, %v2408
        %v2414 = vlaneseq
        %v2415 = vshrl.u32 %v2414, 7
        %v2416 = vsub.s32 %v2149, %v2415
        %v2417 = vrot.slane %v1930, %v2416
        %v2418 = vsel %vm2154, %v2417, %v2413
        %v2419 = vlaneseq
        %v2420 = vshrl.u32 %v2419, 7
        %v2421 = vsub.s32 %v2156, %v2420
        %v2422 = vrot.slane %v1931, %v2421
        %v2423 = vsel %vm2161, %v2422, %v2418
        %v2424 = vlaneseq
        %v2425 = vshrl.u32 %v2424, 7
        %v2426 = vsub.s32 %v2163, %v2425
        %v2427 = vrot.slane %v1932, %v2426
        %v2428 = vsel %vm2168, %v2427, %v2423
        %v2429 = vlaneseq
        %v2430 = vshrl.u32 %v2429, 7
        %v2431 = vsub.s32 %v2170, %v2430
        %v2432 = vrot.slane %v1933, %v2431
        %v2433 = vsel %vm2175, %v2432, %v2428
        %v2434 = vlaneseq
        %v2435 = vshrl.u32 %v2434, 7
        %v2436 = vsub.s32 %v2177, %v2435
        %v2437 = vrot.slane %v1934, %v2436
        %v2438 = vsel %vm2182, %v2437, %v2433
        %v2439 = vlaneseq
        %v2440 = vshrl.u32 %v2439, 7
        %v2441 = vsub.s32 %v2184, %v2440
        %v2442 = vrot.slane %v1935, %v2441
        %v2443 = vsel %vm2189, %v2442, %v2438
        %v2444 = vlaneseq
        %v2445 = vshrl.u32 %v2444, 7
        %v2446 = vsub.s32 %v2191, %v2445
        %v2447 = vrot.slane %v1936, %v2446
        %v2448 = vsel %vm2196, %v2447, %v2443
        %v2449 = vlaneseq
        %v2450 = vshrl.u32 %v2449, 7
        %v2451 = vsub.s32 %v2198, %v2450
        %v2452 = vrot.slane %v1937, %v2451
        %v2453 = vsel %vm2203, %v2452, %v2448
        %v2454 = vlaneseq
        %v2455 = vshrl.u32 %v2454, 7
        %v2456 = vsub.s32 %v2205, %v2455
        %v2457 = vrot.slane %v1938, %v2456
        %v2458 = vsel %vm2210, %v2457, %v2453
        %v2459 = vlaneseq
        %v2460 = vshrl.u32 %v2459, 7
        %v2461 = vsub.s32 %v2212, %v2460
        %v2462 = vrot.slane %v1939, %v2461
        %v2463 = vsel %vm2217, %v2462, %v2458
        %v2464 = vlaneseq
        %v2465 = vshrl.u32 %v2464, 7
        %v2466 = vsub.s32 %v2219, %v2465
        %v2467 = vrot.slane %v1940, %v2466
        %v2468 = vsel %vm2224, %v2467, %v2463
        %v2469 = vlaneseq
        %v2470 = vshrl.u32 %v2469, 7
        %v2471 = vsub.s32 %v2226, %v2470
        %v2472 = vrot.slane %v1941, %v2471
        %v2473 = vsel %vm2231, %v2472, %v2468
        %v2474 = vlaneseq
        %v2475 = vshrl.u32 %v2474, 7
        %v2476 = vsub.s32 %v2233, %v2475
        %v2477 = vrot.slane %v1942, %v2476
        %v2478 = vsel %vm2238, %v2477, %v2473
        %v2479 = vlaneseq
        %v2480 = vshrl.u32 %v2479, 7
        %v2481 = vsub.s32 %v2240, %v2480
        %v2482 = vrot.slane %v1943, %v2481
        %v2483 = vsel %vm2245, %v2482, %v2478
        %v2484 = vlaneseq
        %v2485 = vshrl.u32 %v2484, 7
        %v2486 = vsub.s32 %v2137, %v2485
        %v2487 = vrot.slane %v1944, %v2486
        %v2488 = vlaneseq
        %v2489 = vshrl.u32 %v2488, 7
        %v2490 = vsub.s32 %v2142, %v2489
        %v2491 = vrot.slane %v1945, %v2490
        %v2492 = vsel %vm2147, %v2491, %v2487
        %v2493 = vlaneseq
        %v2494 = vshrl.u32 %v2493, 7
        %v2495 = vsub.s32 %v2149, %v2494
        %v2496 = vrot.slane %v1946, %v2495
        %v2497 = vsel %vm2154, %v2496, %v2492
        %v2498 = vlaneseq
        %v2499 = vshrl.u32 %v2498, 7
        %v2500 = vsub.s32 %v2156, %v2499
        %v2501 = vrot.slane %v1947, %v2500
        %v2502 = vsel %vm2161, %v2501, %v2497
        %v2503 = vlaneseq
        %v2504 = vshrl.u32 %v2503, 7
        %v2505 = vsub.s32 %v2163, %v2504
        %v2506 = vrot.slane %v1948, %v2505
        %v2507 = vsel %vm2168, %v2506, %v2502
        %v2508 = vlaneseq
        %v2509 = vshrl.u32 %v2508, 7
        %v2510 = vsub.s32 %v2170, %v2509
        %v2511 = vrot.slane %v1949, %v2510
        %v2512 = vsel %vm2175, %v2511, %v2507
        %v2513 = vlaneseq
        %v2514 = vshrl.u32 %v2513, 7
        %v2515 = vsub.s32 %v2177, %v2514
        %v2516 = vrot.slane %v1950, %v2515
        %v2517 = vsel %vm2182, %v2516, %v2512
        %v2518 = vlaneseq
        %v2519 = vshrl.u32 %v2518, 7
        %v2520 = vsub.s32 %v2184, %v2519
        %v2521 = vrot.slane %v1951, %v2520
        %v2522 = vsel %vm2189, %v2521, %v2517
        %v2523 = vlaneseq
        %v2524 = vshrl.u32 %v2523, 7
        %v2525 = vsub.s32 %v2191, %v2524
        %v2526 = vrot.slane %v1952, %v2525
        %v2527 = vsel %vm2196, %v2526, %v2522
        %v2528 = vlaneseq
        %v2529 = vshrl.u32 %v2528, 7
        %v2530 = vsub.s32 %v2198, %v2529
        %v2531 = vrot.slane %v1953, %v2530
        %v2532 = vsel %vm2203, %v2531, %v2527
        %v2533 = vlaneseq
        %v2534 = vshrl.u32 %v2533, 7
        %v2535 = vsub.s32 %v2205, %v2534
        %v2536 = vrot.slane %v1954, %v2535
        %v2537 = vsel %vm2210, %v2536, %v2532
        %v2538 = vlaneseq
        %v2539 = vshrl.u32 %v2538, 7
        %v2540 = vsub.s32 %v2212, %v2539
        %v2541 = vrot.slane %v1955, %v2540
        %v2542 = vsel %vm2217, %v2541, %v2537
        %v2543 = vlaneseq
        %v2544 = vshrl.u32 %v2543, 7
        %v2545 = vsub.s32 %v2219, %v2544
        %v2546 = vrot.slane %v1956, %v2545
        %v2547 = vsel %vm2224, %v2546, %v2542
        %v2548 = vlaneseq
        %v2549 = vshrl.u32 %v2548, 7
        %v2550 = vsub.s32 %v2226, %v2549
        %v2551 = vrot.slane %v1957, %v2550
        %v2552 = vsel %vm2231, %v2551, %v2547
        %v2553 = vlaneseq
        %v2554 = vshrl.u32 %v2553, 7
        %v2555 = vsub.s32 %v2233, %v2554
        %v2556 = vrot.slane %v1958, %v2555
        %v2557 = vsel %vm2238, %v2556, %v2552
        %v2558 = vlaneseq
        %v2559 = vshrl.u32 %v2558, 7
        %v2560 = vsub.s32 %v2240, %v2559
        %v2561 = vrot.slane %v1959, %v2560
        %v2562 = vsel %vm2245, %v2561, %v2557
        %v2563 = vlaneseq
        %v2564 = vshrl.u32 %v2563, 7
        %v2565 = vsub.s32 %v2137, %v2564
        %v2566 = vrot.slane %v1960, %v2565
        %v2567 = vlaneseq
        %v2568 = vshrl.u32 %v2567, 7
        %v2569 = vsub.s32 %v2142, %v2568
        %v2570 = vrot.slane %v1961, %v2569
        %v2571 = vsel %vm2147, %v2570, %v2566
        %v2572 = vlaneseq
        %v2573 = vshrl.u32 %v2572, 7
        %v2574 = vsub.s32 %v2149, %v2573
        %v2575 = vrot.slane %v1962, %v2574
        %v2576 = vsel %vm2154, %v2575, %v2571
        %v2577 = vlaneseq
        %v2578 = vshrl.u32 %v2577, 7
        %v2579 = vsub.s32 %v2156, %v2578
        %v2580 = vrot.slane %v1963, %v2579
        %v2581 = vsel %vm2161, %v2580, %v2576
        %v2582 = vlaneseq
        %v2583 = vshrl.u32 %v2582, 7
        %v2584 = vsub.s32 %v2163, %v2583
        %v2585 = vrot.slane %v1964, %v2584
        %v2586 = vsel %vm2168, %v2585, %v2581
        %v2587 = vlaneseq
        %v2588 = vshrl.u32 %v2587, 7
        %v2589 = vsub.s32 %v2170, %v2588
        %v2590 = vrot.slane %v1965, %v2589
        %v2591 = vsel %vm2175, %v2590, %v2586
        %v2592 = vlaneseq
        %v2593 = vshrl.u32 %v2592, 7
        %v2594 = vsub.s32 %v2177, %v2593
        %v2595 = vrot.slane %v1966, %v2594
        %v2596 = vsel %vm2182, %v2595, %v2591
        %v2597 = vlaneseq
        %v2598 = vshrl.u32 %v2597, 7
        %v2599 = vsub.s32 %v2184, %v2598
        %v2600 = vrot.slane %v1967, %v2599
        %v2601 = vsel %vm2189, %v2600, %v2596
        %v2602 = vlaneseq
        %v2603 = vshrl.u32 %v2602, 7
        %v2604 = vsub.s32 %v2191, %v2603
        %v2605 = vrot.slane %v1968, %v2604
        %v2606 = vsel %vm2196, %v2605, %v2601
        %v2607 = vlaneseq
        %v2608 = vshrl.u32 %v2607, 7
        %v2609 = vsub.s32 %v2198, %v2608
        %v2610 = vrot.slane %v1969, %v2609
        %v2611 = vsel %vm2203, %v2610, %v2606
        %v2612 = vlaneseq
        %v2613 = vshrl.u32 %v2612, 7
        %v2614 = vsub.s32 %v2205, %v2613
        %v2615 = vrot.slane %v1970, %v2614
        %v2616 = vsel %vm2210, %v2615, %v2611
        %v2617 = vlaneseq
        %v2618 = vshrl.u32 %v2617, 7
        %v2619 = vsub.s32 %v2212, %v2618
        %v2620 = vrot.slane %v1971, %v2619
        %v2621 = vsel %vm2217, %v2620, %v2616
        %v2622 = vlaneseq
        %v2623 = vshrl.u32 %v2622, 7
        %v2624 = vsub.s32 %v2219, %v2623
        %v2625 = vrot.slane %v1972, %v2624
        %v2626 = vsel %vm2224, %v2625, %v2621
        %v2627 = vlaneseq
        %v2628 = vshrl.u32 %v2627, 7
        %v2629 = vsub.s32 %v2226, %v2628
        %v2630 = vrot.slane %v1973, %v2629
        %v2631 = vsel %vm2231, %v2630, %v2626
        %v2632 = vlaneseq
        %v2633 = vshrl.u32 %v2632, 7
        %v2634 = vsub.s32 %v2233, %v2633
        %v2635 = vrot.slane %v1974, %v2634
        %v2636 = vsel %vm2238, %v2635, %v2631
        %v2637 = vlaneseq
        %v2638 = vshrl.u32 %v2637, 7
        %v2639 = vsub.s32 %v2240, %v2638
        %v2640 = vrot.slane %v1975, %v2639
        %v2641 = vsel %vm2245, %v2640, %v2636
        %v2642 = vlaneseq
        %v2643 = vshrl.u32 %v2642, 7
        %v2644 = vsub.s32 %v2137, %v2643
        %v2645 = vrot.slane %v1976, %v2644
        %v2646 = vlaneseq
        %v2647 = vshrl.u32 %v2646, 7
        %v2648 = vsub.s32 %v2142, %v2647
        %v2649 = vrot.slane %v1977, %v2648
        %v2650 = vsel %vm2147, %v2649, %v2645
        %v2651 = vlaneseq
        %v2652 = vshrl.u32 %v2651, 7
        %v2653 = vsub.s32 %v2149, %v2652
        %v2654 = vrot.slane %v1978, %v2653
        %v2655 = vsel %vm2154, %v2654, %v2650
        %v2656 = vlaneseq
        %v2657 = vshrl.u32 %v2656, 7
        %v2658 = vsub.s32 %v2156, %v2657
        %v2659 = vrot.slane %v1979, %v2658
        %v2660 = vsel %vm2161, %v2659, %v2655
        %v2661 = vlaneseq
        %v2662 = vshrl.u32 %v2661, 7
        %v2663 = vsub.s32 %v2163, %v2662
        %v2664 = vrot.slane %v1980, %v2663
        %v2665 = vsel %vm2168, %v2664, %v2660
        %v2666 = vlaneseq
        %v2667 = vshrl.u32 %v2666, 7
        %v2668 = vsub.s32 %v2170, %v2667
        %v2669 = vrot.slane %v1981, %v2668
        %v2670 = vsel %vm2175, %v2669, %v2665
        %v2671 = vlaneseq
        %v2672 = vshrl.u32 %v2671, 7
        %v2673 = vsub.s32 %v2177, %v2672
        %v2674 = vrot.slane %v1982, %v2673
        %v2675 = vsel %vm2182, %v2674, %v2670
        %v2676 = vlaneseq
        %v2677 = vshrl.u32 %v2676, 7
        %v2678 = vsub.s32 %v2184, %v2677
        %v2679 = vrot.slane %v1983, %v2678
        %v2680 = vsel %vm2189, %v2679, %v2675
        %v2681 = vlaneseq
        %v2682 = vshrl.u32 %v2681, 7
        %v2683 = vsub.s32 %v2191, %v2682
        %v2684 = vrot.slane %v1984, %v2683
        %v2685 = vsel %vm2196, %v2684, %v2680
        %v2686 = vlaneseq
        %v2687 = vshrl.u32 %v2686, 7
        %v2688 = vsub.s32 %v2198, %v2687
        %v2689 = vrot.slane %v1985, %v2688
        %v2690 = vsel %vm2203, %v2689, %v2685
        %v2691 = vlaneseq
        %v2692 = vshrl.u32 %v2691, 7
        %v2693 = vsub.s32 %v2205, %v2692
        %v2694 = vrot.slane %v1986, %v2693
        %v2695 = vsel %vm2210, %v2694, %v2690
        %v2696 = vlaneseq
        %v2697 = vshrl.u32 %v2696, 7
        %v2698 = vsub.s32 %v2212, %v2697
        %v2699 = vrot.slane %v1987, %v2698
        %v2700 = vsel %vm2217, %v2699, %v2695
        %v2701 = vlaneseq
        %v2702 = vshrl.u32 %v2701, 7
        %v2703 = vsub.s32 %v2219, %v2702
        %v2704 = vrot.slane %v1988, %v2703
        %v2705 = vsel %vm2224, %v2704, %v2700
        %v2706 = vlaneseq
        %v2707 = vshrl.u32 %v2706, 7
        %v2708 = vsub.s32 %v2226, %v2707
        %v2709 = vrot.slane %v1989, %v2708
        %v2710 = vsel %vm2231, %v2709, %v2705
        %v2711 = vlaneseq
        %v2712 = vshrl.u32 %v2711, 7
        %v2713 = vsub.s32 %v2233, %v2712
        %v2714 = vrot.slane %v1990, %v2713
        %v2715 = vsel %vm2238, %v2714, %v2710
        %v2716 = vlaneseq
        %v2717 = vshrl.u32 %v2716, 7
        %v2718 = vsub.s32 %v2240, %v2717
        %v2719 = vrot.slane %v1991, %v2718
        %v2720 = vsel %vm2245, %v2719, %v2715
        %v2721 = vlaneseq
        %v2722 = vshrl.u32 %v2721, 7
        %v2723 = vsub.s32 %v2137, %v2722
        %v2724 = vrot.slane %v1992, %v2723
        %v2725 = vlaneseq
        %v2726 = vshrl.u32 %v2725, 7
        %v2727 = vsub.s32 %v2142, %v2726
        %v2728 = vrot.slane %v1993, %v2727
        %v2729 = vsel %vm2147, %v2728, %v2724
        %v2730 = vlaneseq
        %v2731 = vshrl.u32 %v2730, 7
        %v2732 = vsub.s32 %v2149, %v2731
        %v2733 = vrot.slane %v1994, %v2732
        %v2734 = vsel %vm2154, %v2733, %v2729
        %v2735 = vlaneseq
        %v2736 = vshrl.u32 %v2735, 7
        %v2737 = vsub.s32 %v2156, %v2736
        %v2738 = vrot.slane %v1995, %v2737
        %v2739 = vsel %vm2161, %v2738, %v2734
        %v2740 = vlaneseq
        %v2741 = vshrl.u32 %v2740, 7
        %v2742 = vsub.s32 %v2163, %v2741
        %v2743 = vrot.slane %v1996, %v2742
        %v2744 = vsel %vm2168, %v2743, %v2739
        %v2745 = vlaneseq
        %v2746 = vshrl.u32 %v2745, 7
        %v2747 = vsub.s32 %v2170, %v2746
        %v2748 = vrot.slane %v1997, %v2747
        %v2749 = vsel %vm2175, %v2748, %v2744
        %v2750 = vlaneseq
        %v2751 = vshrl.u32 %v2750, 7
        %v2752 = vsub.s32 %v2177, %v2751
        %v2753 = vrot.slane %v1998, %v2752
        %v2754 = vsel %vm2182, %v2753, %v2749
        %v2755 = vlaneseq
        %v2756 = vshrl.u32 %v2755, 7
        %v2757 = vsub.s32 %v2184, %v2756
        %v2758 = vrot.slane %v1999, %v2757
        %v2759 = vsel %vm2189, %v2758, %v2754
        %v2760 = vlaneseq
        %v2761 = vshrl.u32 %v2760, 7
        %v2762 = vsub.s32 %v2191, %v2761
        %v2763 = vrot.slane %v2000, %v2762
        %v2764 = vsel %vm2196, %v2763, %v2759
        %v2765 = vlaneseq
        %v2766 = vshrl.u32 %v2765, 7
        %v2767 = vsub.s32 %v2198, %v2766
        %v2768 = vrot.slane %v2001, %v2767
        %v2769 = vsel %vm2203, %v2768, %v2764
        %v2770 = vlaneseq
        %v2771 = vshrl.u32 %v2770, 7
        %v2772 = vsub.s32 %v2205, %v2771
        %v2773 = vrot.slane %v2002, %v2772
        %v2774 = vsel %vm2210, %v2773, %v2769
        %v2775 = vlaneseq
        %v2776 = vshrl.u32 %v2775, 7
        %v2777 = vsub.s32 %v2212, %v2776
        %v2778 = vrot.slane %v2003, %v2777
        %v2779 = vsel %vm2217, %v2778, %v2774
        %v2780 = vlaneseq
        %v2781 = vshrl.u32 %v2780, 7
        %v2782 = vsub.s32 %v2219, %v2781
        %v2783 = vrot.slane %v2004, %v2782
        %v2784 = vsel %vm2224, %v2783, %v2779
        %v2785 = vlaneseq
        %v2786 = vshrl.u32 %v2785, 7
        %v2787 = vsub.s32 %v2226, %v2786
        %v2788 = vrot.slane %v2005, %v2787
        %v2789 = vsel %vm2231, %v2788, %v2784
        %v2790 = vlaneseq
        %v2791 = vshrl.u32 %v2790, 7
        %v2792 = vsub.s32 %v2233, %v2791
        %v2793 = vrot.slane %v2006, %v2792
        %v2794 = vsel %vm2238, %v2793, %v2789
        %v2795 = vlaneseq
        %v2796 = vshrl.u32 %v2795, 7
        %v2797 = vsub.s32 %v2240, %v2796
        %v2798 = vrot.slane %v2007, %v2797
        %v2799 = vsel %vm2245, %v2798, %v2794
        %vm2800 = vcmask 1041409
        %v2801 = vsel %vm2800, %v2325, %v2246
        %vm2802 = vcmask 1042434
        %v2803 = vsel %vm2802, %v2404, %v2801
        %vm2804 = vcmask 1043459
        %v2805 = vsel %vm2804, %v2483, %v2803
        %vm2806 = vcmask 1044484
        %v2807 = vsel %vm2806, %v2562, %v2805
        %vm2808 = vcmask 1045509
        %v2809 = vsel %vm2808, %v2641, %v2807
        %vm2810 = vcmask 1046534
        %v2811 = vsel %vm2810, %v2720, %v2809
        %vm2812 = vcmask 1047559
        %v2813 = vsel %vm2812, %v2799, %v2811
        %2815 = vst [vmem:[%s137] sm:$0xff] %v2813
        %s2816 = sand.u32 %s71, 1
        %s2817 = scalar_lea.sflag [#allocation3], %s2816
        %s2818 = sand.u32 %s71, 1
        %s2819 = smul.addr %s2818, 8
        %s2820 = scalar_lea.vmem [#allocation2], %s2819
        // Predicated region
        $region29: #{tpu_custom_call.1} parent=27 // pred_check
          %p2821 = pneg %p81
        $region30: #{tpu_custom_call.1} parent=27 // pred_check_branch
          %2823 = sbr.rel (%p2821) target = $region32
        $region31: #{tpu_custom_call.1} parent=27 // pred_region
          %s2825 = ssub.s32 128, 128
          %2826 = vsyncadd %s2817, %s2825
          %s2827 = smul.addr %s16, 128
          %s2828 = scalar_lea.hbm %s2, %s2827
          %s2830 = sshll.u32 %s2820, 4
          %s2831 = int_to_ptr.vmem [resolvable:$true] %s2830
          %2833 = dma.vmem_to_hbm [thread:$0]  %s2831, 128, %s2828, %s2817
        $region32: #{tpu_custom_call.1} parent=27 // pred_fallthru
          _
      $region28: #{tpu_custom_call.1} parent=5 // pred_fallthru
        _
      %p2834 = scmp.le.s32.totalorder 2, %s11
      // Predicated region
      $region33: #{tpu_custom_call.1} parent=5 // pred_check
        %p2835 = pneg %p2834
      $region34: #{tpu_custom_call.1} parent=5 // pred_check_branch
        %2837 = sbr.rel (%p2835) target = $region36
      $region35: #{tpu_custom_call.1} parent=5 // pred_region
        %s2838 = ssub.s32 %s11, 2
        // Predicated region
        $region37: #{tpu_custom_call.1} parent=35 // pred_check
          %p2839 = pneg %p87
        $region38: #{tpu_custom_call.1} parent=35 // pred_check_branch
          %2841 = sbr.rel (%p2839) target = $region40
        $region39: #{tpu_custom_call.1} parent=35 // pred_region
          %s2842 = sand.u32 %s72, 1
          %s2843 = scalar_lea.sflag [#allocation3], %s2842
          %s2844 = sand.u32 %s72, 1
          %s2845 = smul.addr %s2844, 8
          %s2846 = scalar_lea.vmem [#allocation2], %s2845
          %2847 = dma.done %s2843, 128
        $region40: #{tpu_custom_call.1} parent=35 // pred_fallthru
          _
      $region36: #{tpu_custom_call.1} parent=5 // pred_fallthru
        _
    $region6: #{tpu_custom_call.1} parent=1 // loop_footer
      %s15 = sadd.s32 1, %s11
    $region7: #{tpu_custom_call.1} parent=1 // loop_footer_branch
      %10 = sbr.rel target = $region3
    $region8: #{tpu_custom_call.1} parent=1 // loop_exit
      _
    %2848 = vsyncpa [#allocation3], 1
    %s2849 = scalar_lea.sflag [#allocation3], 1
    %2850 = vsyncpa %s2849, 1

// kernel: tpu_custom_call.1
$region0: #{tpu_custom_call.1}
  #allocation0 [shape = 'u32[]', space=smem, size = 0x4, offset = 0x4, fixed_abs, tag = 'smem constant byte address 0x4 - core index']
  #allocation1 [shape = 'u32[144,128]{1,0:T(1,128)}', space=vmem, size = 0x12000, scoped, tag = 'internal scratch']
  %s0 = inlined_call_operand.vmem [shape: f32[128,48], index: 0, kind: input, shape index: {}]
  %s1 = inlined_call_operand.vmem [shape: f32[48,48], index: 1, kind: input, shape index: {}]
  %s2 = inlined_call_operand.vmem [shape: f32[128,1], index: 2, kind: output, shape index: {}]
  %s3 = sld [smem:[#allocation0]]
  $region18: #{tpu_custom_call.1} parent=0
    _
  %s5 = ssub.s32 1, %s3
  %s6 = scalar_select 0, %s5, %s3
  // Predicated region
  $region2: #{tpu_custom_call.1} parent=0 // pred_check
    _
  $region3: #{tpu_custom_call.1} parent=0 // pred_check_branch
    %8 = sbr.rel (0) target = $region5
  $region4: #{tpu_custom_call.1} parent=0 // pred_region
    _
  $region5: #{tpu_custom_call.1} parent=0 // pred_fallthru
    _
  // Predicated region
  $region6: #{tpu_custom_call.1} parent=0 // pred_check
    _
  $region7: #{tpu_custom_call.1} parent=0 // pred_check_branch
    %10 = sbr.rel (0) target = $region9
  $region8: #{tpu_custom_call.1} parent=0 // pred_region
    _
  $region9: #{tpu_custom_call.1} parent=0 // pred_fallthru
    _
  %v11 = vld [vmem:[%s0] sm:$0xff]
  %v12 = vld [vmem:[%s0 + $0x8] sm:$0xff]
  %v13 = vld [vmem:[%s0 + $0x10] sm:$0xff]
  %v14 = vld [vmem:[%s0 + $0x18] sm:$0xff]
  %v15 = vld [vmem:[%s0 + $0x20] sm:$0xff]
  %v16 = vld [vmem:[%s0 + $0x28] sm:$0xff]
  %v17 = vld [vmem:[%s0 + $0x30] sm:$0xff]
  %v18 = vld [vmem:[%s0 + $0x38] sm:$0xff]
  %v19 = vld [vmem:[%s0 + $0x40] sm:$0xff]
  %v20 = vld [vmem:[%s0 + $0x48] sm:$0xff]
  %v21 = vld [vmem:[%s0 + $0x50] sm:$0xff]
  %v22 = vld [vmem:[%s0 + $0x58] sm:$0xff]
  %v23 = vld [vmem:[%s0 + $0x60] sm:$0xff]
  %v24 = vld [vmem:[%s0 + $0x68] sm:$0xff]
  %v25 = vld [vmem:[%s0 + $0x70] sm:$0xff]
  %v26 = vld [vmem:[%s0 + $0x78] sm:$0xff]
  %v27 = vld [vmem:[%s1] sm:$0xff]
  %v28 = vld [vmem:[%s1 + $0x8] sm:$0xff]
  %v29 = vld [vmem:[%s1 + $0x10] sm:$0xff]
  %v30 = vld [vmem:[%s1 + $0x18] sm:$0xff]
  %v31 = vld [vmem:[%s1 + $0x20] sm:$0xff]
  %v32 = vld [vmem:[%s1 + $0x28] sm:$0xff]
  %vm33 = vcmask 392192
  %v35 = vsel %vm33, %v11, 0
  %v38 = vsel %vm33, %v12, 0
  %v41 = vsel %vm33, %v13, 0
  %v44 = vsel %vm33, %v14, 0
  %v47 = vsel %vm33, %v15, 0
  %v50 = vsel %vm33, %v16, 0
  %v53 = vsel %vm33, %v17, 0
  %v56 = vsel %vm33, %v18, 0
  %v59 = vsel %vm33, %v19, 0
  %v62 = vsel %vm33, %v20, 0
  %v65 = vsel %vm33, %v21, 0
  %v68 = vsel %vm33, %v22, 0
  %v71 = vsel %vm33, %v23, 0
  %v74 = vsel %vm33, %v24, 0
  %v77 = vsel %vm33, %v25, 0
  %v80 = vsel %vm33, %v26, 0
  %82 = vmatprep.subr.mxu0 0.0
  %83 = vmatpush1.msra.mxu0 0.0
  %84 = vmatprep.subr.mxu0 0.0
  %85 = vmatpush1.msra.mxu0 0.0
  %86 = vmatprep.subr.mxu0 0.0
  %87 = vmatpush1.msra.mxu0 0.0
  %88 = vmatprep.subr.mxu0 0.0
  %89 = vmatpush1.msra.mxu0 0.0
  %90 = vmatprep.subr.mxu0 0.0
  %91 = vmatpush1.msra.mxu0 0.0
  %92 = vmatprep.subr.mxu0 0.0
  %93 = vmatpush1.msra.mxu0 0.0
  %94 = vmatprep.subr.mxu0 0.0
  %95 = vmatpush1.msra.mxu0 0.0
  %96 = vmatprep.subr.mxu0 0.0
  %97 = vmatpush1.msra.mxu0 0.0
  %98 = vmatprep.subr.mxu0 0.0
  %99 = vmatpush1.msra.mxu0 0.0
  %100 = vmatprep.subr.mxu0 0.0
  %101 = vmatpush1.msra.mxu0 0.0
  %102 = vmatprep.subr.mxu0 0.0
  %103 = vmatpush1.msra.mxu0 %v32
  %104 = vmatprep.subr.mxu0 0.0
  %105 = vmatpush1.msra.mxu0 %v31
  %106 = vmatprep.subr.mxu0 0.0
  %107 = vmatpush1.msra.mxu0 %v30
  %108 = vmatprep.subr.mxu0 0.0
  %109 = vmatpush1.msra.mxu0 %v29
  %110 = vmatprep.subr.mxu0 0.0
  %111 = vmatpush1.msra.mxu0 %v28
  %112 = vmatprep.subr.mxu0 0.0
  %113 = vmatpush1.msra.mxu0 %v27
  %114 = vmatprep.subr.mxu0 0.0
  %115 = vmatpush2.msra.mxu0 0.0
  %116 = vmatprep.subr.mxu0 0.0
  %117 = vmatpush2.msra.mxu0 0.0
  %118 = vmatprep.subr.mxu0 0.0
  %119 = vmatpush2.msra.mxu0 0.0
  %120 = vmatprep.subr.mxu0 0.0
  %121 = vmatpush2.msra.mxu0 0.0
  %122 = vmatprep.subr.mxu0 0.0
  %123 = vmatpush2.msra.mxu0 0.0
  %124 = vmatprep.subr.mxu0 0.0
  %125 = vmatpush2.msra.mxu0 0.0
  %126 = vmatprep.subr.mxu0 0.0
  %127 = vmatpush2.msra.mxu0 0.0
  %128 = vmatprep.subr.mxu0 0.0
  %129 = vmatpush2.msra.mxu0 0.0
  %130 = vmatprep.subr.mxu0 0.0
  %131 = vmatpush2.msra.mxu0 0.0
  %132 = vmatprep.subr.mxu0 0.0
  %133 = vmatpush2.msra.mxu0 0.0
  %134 = vmatprep.subr.mxu0 0.0
  %135 = vmatpush2.msra.mxu0 0.0
  %136 = vmatprep.subr.mxu0 0.0
  %137 = vmatpush2.msra.mxu0 0.0
  %138 = vmatprep.subr.mxu0 0.0
  %139 = vmatpush2.msra.mxu0 0.0
  %140 = vmatprep.subr.mxu0 0.0
  %141 = vmatpush2.msra.mxu0 0.0
  %142 = vmatprep.subr.mxu0 0.0
  %143 = vmatpush2.msra.mxu0 0.0
  %144 = vmatprep.subr.mxu0 0.0
  %145 = vmatpush2.msra.mxu0 0.0
  %146 = vmatprep.mubr.f32.mxu0 0.0
  %147 = vmatmul.mubr.f32.gmra.mxu0 %v35
  %v148 = vpop.f32.mrf.mxu0
  %v149 = vadd.f32 0.0, %v148
  %v150 = vpop.f32.mrf.mxu0
  %151 = vmatprep.mubr.f32.mxu0 0.0
  %152 = vmatmul.mubr.f32.gmra.mxu0 %v38
  %v153 = vpop.f32.mrf.mxu0
  %v154 = vadd.f32 0.0, %v153
  %v155 = vpop.f32.mrf.mxu0
  %156 = vmatprep.mubr.f32.mxu0 0.0
  %157 = vmatmul.mubr.f32.gmra.mxu0 %v41
  %v158 = vpop.f32.mrf.mxu0
  %v159 = vadd.f32 0.0, %v158
  %v160 = vpop.f32.mrf.mxu0
  %161 = vmatprep.mubr.f32.mxu0 0.0
  %162 = vmatmul.mubr.f32.gmra.mxu0 %v44
  %v163 = vpop.f32.mrf.mxu0
  %v164 = vadd.f32 0.0, %v163
  %v165 = vpop.f32.mrf.mxu0
  %166 = vmatprep.mubr.f32.mxu0 0.0
  %167 = vmatmul.mubr.f32.gmra.mxu0 %v47
  %v168 = vpop.f32.mrf.mxu0
  %v169 = vadd.f32 0.0, %v168
  %v170 = vpop.f32.mrf.mxu0
  %171 = vmatprep.mubr.f32.mxu0 0.0
  %172 = vmatmul.mubr.f32.gmra.mxu0 %v50
  %v173 = vpop.f32.mrf.mxu0
  %v174 = vadd.f32 0.0, %v173
  %v175 = vpop.f32.mrf.mxu0
  %176 = vmatprep.mubr.f32.mxu0 0.0
  %177 = vmatmul.mubr.f32.gmra.mxu0 %v53
  %v178 = vpop.f32.mrf.mxu0
  %v179 = vadd.f32 0.0, %v178
  %v180 = vpop.f32.mrf.mxu0
  %181 = vmatprep.mubr.f32.mxu0 0.0
  %182 = vmatmul.mubr.f32.gmra.mxu0 %v56
  %v183 = vpop.f32.mrf.mxu0
  %v184 = vadd.f32 0.0, %v183
  %v185 = vpop.f32.mrf.mxu0
  %186 = vmatprep.mubr.f32.mxu0 0.0
  %187 = vmatmul.mubr.f32.gmra.mxu0 %v59
  %v188 = vpop.f32.mrf.mxu0
  %v189 = vadd.f32 0.0, %v188
  %v190 = vpop.f32.mrf.mxu0
  %191 = vmatprep.mubr.f32.mxu0 0.0
  %192 = vmatmul.mubr.f32.gmra.mxu0 %v62
  %v193 = vpop.f32.mrf.mxu0
  %v194 = vadd.f32 0.0, %v193
  %v195 = vpop.f32.mrf.mxu0
  %196 = vmatprep.mubr.f32.mxu0 0.0
  %197 = vmatmul.mubr.f32.gmra.mxu0 %v65
  %v198 = vpop.f32.mrf.mxu0
  %v199 = vadd.f32 0.0, %v198
  %v200 = vpop.f32.mrf.mxu0
  %201 = vmatprep.mubr.f32.mxu0 0.0
  %202 = vmatmul.mubr.f32.gmra.mxu0 %v68
  %v203 = vpop.f32.mrf.mxu0
  %v204 = vadd.f32 0.0, %v203
  %v205 = vpop.f32.mrf.mxu0
  %206 = vmatprep.mubr.f32.mxu0 0.0
  %207 = vmatmul.mubr.f32.gmra.mxu0 %v71
  %v208 = vpop.f32.mrf.mxu0
  %v209 = vadd.f32 0.0, %v208
  %v210 = vpop.f32.mrf.mxu0
  %211 = vmatprep.mubr.f32.mxu0 0.0
  %212 = vmatmul.mubr.f32.gmra.mxu0 %v74
  %v213 = vpop.f32.mrf.mxu0
  %v214 = vadd.f32 0.0, %v213
  %v215 = vpop.f32.mrf.mxu0
  %216 = vmatprep.mubr.f32.mxu0 0.0
  %217 = vmatmul.mubr.f32.gmra.mxu0 %v77
  %v218 = vpop.f32.mrf.mxu0
  %v219 = vadd.f32 0.0, %v218
  %v220 = vpop.f32.mrf.mxu0
  %221 = vmatprep.mubr.f32.mxu0 0.0
  %222 = vmatmul.mubr.f32.gmra.mxu0 %v80
  %v223 = vpop.f32.mrf.mxu0
  %v224 = vadd.f32 0.0, %v223
  %v225 = vpop.f32.mrf.mxu0
  %226 = vdwg.mxu0
  %v227 = vmul.f32 %v149, %v149
  %v228 = vmul.f32 %v154, %v154
  %v229 = vmul.f32 %v159, %v159
  %v230 = vmul.f32 %v164, %v164
  %v231 = vmul.f32 %v169, %v169
  %v232 = vmul.f32 %v174, %v174
  %v233 = vmul.f32 %v179, %v179
  %v234 = vmul.f32 %v184, %v184
  %v235 = vmul.f32 %v189, %v189
  %v236 = vmul.f32 %v194, %v194
  %v237 = vmul.f32 %v199, %v199
  %v238 = vmul.f32 %v204, %v204
  %v239 = vmul.f32 %v209, %v209
  %v240 = vmul.f32 %v214, %v214
  %v241 = vmul.f32 %v219, %v219
  %v242 = vmul.f32 %v224, %v224
  %v243 = vsel %vm33, %v227, 0.0
  %244 = vadd.xlane.f32.xlu0 %v243
  %v245 = vpop.xlane.xlu0 %244
  %v246 = vsel %vm33, %v228, 0.0
  %247 = vadd.xlane.f32.xlu0 %v246
  %v248 = vpop.xlane.xlu0 %247
  %v249 = vsel %vm33, %v229, 0.0
  %250 = vadd.xlane.f32.xlu0 %v249
  %v251 = vpop.xlane.xlu0 %250
  %v252 = vsel %vm33, %v230, 0.0
  %253 = vadd.xlane.f32.xlu0 %v252
  %v254 = vpop.xlane.xlu0 %253
  %v255 = vsel %vm33, %v231, 0.0
  %256 = vadd.xlane.f32.xlu0 %v255
  %v257 = vpop.xlane.xlu0 %256
  %v258 = vsel %vm33, %v232, 0.0
  %259 = vadd.xlane.f32.xlu0 %v258
  %v260 = vpop.xlane.xlu0 %259
  %v261 = vsel %vm33, %v233, 0.0
  %262 = vadd.xlane.f32.xlu0 %v261
  %v263 = vpop.xlane.xlu0 %262
  %v264 = vsel %vm33, %v234, 0.0
  %265 = vadd.xlane.f32.xlu0 %v264
  %v266 = vpop.xlane.xlu0 %265
  %v267 = vsel %vm33, %v235, 0.0
  %268 = vadd.xlane.f32.xlu0 %v267
  %v269 = vpop.xlane.xlu0 %268
  %v270 = vsel %vm33, %v236, 0.0
  %271 = vadd.xlane.f32.xlu0 %v270
  %v272 = vpop.xlane.xlu0 %271
  %v273 = vsel %vm33, %v237, 0.0
  %274 = vadd.xlane.f32.xlu0 %v273
  %v275 = vpop.xlane.xlu0 %274
  %v276 = vsel %vm33, %v238, 0.0
  %277 = vadd.xlane.f32.xlu0 %v276
  %v278 = vpop.xlane.xlu0 %277
  %v279 = vsel %vm33, %v239, 0.0
  %280 = vadd.xlane.f32.xlu0 %v279
  %v281 = vpop.xlane.xlu0 %280
  %v282 = vsel %vm33, %v240, 0.0
  %283 = vadd.xlane.f32.xlu0 %v282
  %v284 = vpop.xlane.xlu0 %283
  %v285 = vsel %vm33, %v241, 0.0
  %286 = vadd.xlane.f32.xlu0 %v285
  %v287 = vpop.xlane.xlu0 %286
  %v288 = vsel %vm33, %v242, 0.0
  %289 = vadd.xlane.f32.xlu0 %v288
  %v290 = vpop.xlane.xlu0 %289
  %v291 = vsub.f32 0.0, %v245
  %v292 = vsub.f32 0.0, %v248
  %v293 = vsub.f32 0.0, %v251
  %v294 = vsub.f32 0.0, %v254
  %v295 = vsub.f32 0.0, %v257
  %v296 = vsub.f32 0.0, %v260
  %v297 = vsub.f32 0.0, %v263
  %v298 = vsub.f32 0.0, %v266
  %v299 = vsub.f32 0.0, %v269
  %v300 = vsub.f32 0.0, %v272
  %v301 = vsub.f32 0.0, %v275
  %v302 = vsub.f32 0.0, %v278
  %v303 = vsub.f32 0.0, %v281
  %v304 = vsub.f32 0.0, %v284
  %v305 = vsub.f32 0.0, %v287
  %v306 = vsub.f32 0.0, %v290
  %vm307 = vcmask 7168
  %308 = vst.msk [vmem:[%s2] sm:$0xff] %vm307, %v291
  %309 = vst.msk [vmem:[%s2 + $0x8] sm:$0xff] %vm307, %v292
  %310 = vst.msk [vmem:[%s2 + $0x10] sm:$0xff] %vm307, %v293
  %311 = vst.msk [vmem:[%s2 + $0x18] sm:$0xff] %vm307, %v294
  %312 = vst.msk [vmem:[%s2 + $0x20] sm:$0xff] %vm307, %v295
  %313 = vst.msk [vmem:[%s2 + $0x28] sm:$0xff] %vm307, %v296
  %314 = vst.msk [vmem:[%s2 + $0x30] sm:$0xff] %vm307, %v297
  %315 = vst.msk [vmem:[%s2 + $0x38] sm:$0xff] %vm307, %v298
  %316 = vst.msk [vmem:[%s2 + $0x40] sm:$0xff] %vm307, %v299
  %317 = vst.msk [vmem:[%s2 + $0x48] sm:$0xff] %vm307, %v300
  %318 = vst.msk [vmem:[%s2 + $0x50] sm:$0xff] %vm307, %v301
  %319 = vst.msk [vmem:[%s2 + $0x58] sm:$0xff] %vm307, %v302
  %320 = vst.msk [vmem:[%s2 + $0x60] sm:$0xff] %vm307, %v303
  %321 = vst.msk [vmem:[%s2 + $0x68] sm:$0xff] %vm307, %v304
  %322 = vst.msk [vmem:[%s2 + $0x70] sm:$0xff] %vm307, %v305
  %323 = vst.msk [vmem:[%s2 + $0x78] sm:$0xff] %vm307, %v306
  // Predicated region
  $region10: #{tpu_custom_call.1} parent=0 // pred_check
    _
  $region11: #{tpu_custom_call.1} parent=0 // pred_check_branch
    %325 = sbr.rel (0) target = $region13
  $region12: #{tpu_custom_call.1} parent=0 // pred_region
    _
  $region13: #{tpu_custom_call.1} parent=0 // pred_fallthru
    _
  // Predicated region
  $region14: #{tpu_custom_call.1} parent=0 // pred_check
    _
  $region15: #{tpu_custom_call.1} parent=0 // pred_check_branch
    %327 = sbr.rel (0) target = $region17
  $region16: #{tpu_custom_call.1} parent=0 // pred_region
    _
  $region17: #{tpu_custom_call.1} parent=0 // pred_fallthru
    _

// kernel: tpu_custom_call.1
$region0: #{tpu_custom_call.1}
  #allocation0 [shape = 'u32[]', space=smem, size = 0x4, offset = 0x4, fixed_abs, tag = 'smem constant byte address 0x4 - core index']
  #allocation1 [shape = 'u32[144,128]{1,0:T(1,128)}', space=vmem, size = 0x12000, scoped, tag = 'internal scratch']
  %s0 = inlined_call_operand.vmem [shape: f32[128,48], index: 0, kind: input, shape index: {}]
  %s1 = inlined_call_operand.vmem [shape: f32[48,48], index: 1, kind: input, shape index: {}]
  %s2 = inlined_call_operand.vmem [shape: f32[128,1], index: 2, kind: output, shape index: {}]
  %s3 = sld [smem:[#allocation0]]
  $region18: #{tpu_custom_call.1} parent=0
    _
  %s5 = ssub.s32 1, %s3
  %s6 = scalar_select 0, %s5, %s3
  // Predicated region
  $region2: #{tpu_custom_call.1} parent=0 // pred_check
    _
  $region3: #{tpu_custom_call.1} parent=0 // pred_check_branch
    %8 = sbr.rel (0) target = $region5
  $region4: #{tpu_custom_call.1} parent=0 // pred_region
    _
  $region5: #{tpu_custom_call.1} parent=0 // pred_fallthru
    _
  // Predicated region
  $region6: #{tpu_custom_call.1} parent=0 // pred_check
    _
  $region7: #{tpu_custom_call.1} parent=0 // pred_check_branch
    %10 = sbr.rel (0) target = $region9
  $region8: #{tpu_custom_call.1} parent=0 // pred_region
    _
  $region9: #{tpu_custom_call.1} parent=0 // pred_fallthru
    _
  %v11 = vld [vmem:[%s0] sm:$0xff]
  %v12 = vld [vmem:[%s0 + $0x8] sm:$0xff]
  %v13 = vld [vmem:[%s0 + $0x10] sm:$0xff]
  %v14 = vld [vmem:[%s0 + $0x18] sm:$0xff]
  %v15 = vld [vmem:[%s0 + $0x20] sm:$0xff]
  %v16 = vld [vmem:[%s0 + $0x28] sm:$0xff]
  %v17 = vld [vmem:[%s0 + $0x30] sm:$0xff]
  %v18 = vld [vmem:[%s0 + $0x38] sm:$0xff]
  %v19 = vld [vmem:[%s0 + $0x40] sm:$0xff]
  %v20 = vld [vmem:[%s0 + $0x48] sm:$0xff]
  %v21 = vld [vmem:[%s0 + $0x50] sm:$0xff]
  %v22 = vld [vmem:[%s0 + $0x58] sm:$0xff]
  %v23 = vld [vmem:[%s0 + $0x60] sm:$0xff]
  %v24 = vld [vmem:[%s0 + $0x68] sm:$0xff]
  %v25 = vld [vmem:[%s0 + $0x70] sm:$0xff]
  %v26 = vld [vmem:[%s0 + $0x78] sm:$0xff]
  %v27 = vld [vmem:[%s1] sm:$0xff]
  %v28 = vld [vmem:[%s1 + $0x8] sm:$0xff]
  %v29 = vld [vmem:[%s1 + $0x10] sm:$0xff]
  %v30 = vld [vmem:[%s1 + $0x18] sm:$0xff]
  %v31 = vld [vmem:[%s1 + $0x20] sm:$0xff]
  %v32 = vld [vmem:[%s1 + $0x28] sm:$0xff]
  %vm33 = vcmask 392192
  %v35 = vsel %vm33, %v11, 0
  %v38 = vsel %vm33, %v12, 0
  %v41 = vsel %vm33, %v13, 0
  %v44 = vsel %vm33, %v14, 0
  %v47 = vsel %vm33, %v15, 0
  %v50 = vsel %vm33, %v16, 0
  %v53 = vsel %vm33, %v17, 0
  %v56 = vsel %vm33, %v18, 0
  %v59 = vsel %vm33, %v19, 0
  %v62 = vsel %vm33, %v20, 0
  %v65 = vsel %vm33, %v21, 0
  %v68 = vsel %vm33, %v22, 0
  %v71 = vsel %vm33, %v23, 0
  %v74 = vsel %vm33, %v24, 0
  %v77 = vsel %vm33, %v25, 0
  %v80 = vsel %vm33, %v26, 0
  %82 = vmatprep.subr.mxu0 0.0
  %83 = vmatpush1.msra.mxu0 0.0
  %84 = vmatprep.subr.mxu0 0.0
  %85 = vmatpush1.msra.mxu0 0.0
  %86 = vmatprep.subr.mxu0 0.0
  %87 = vmatpush1.msra.mxu0 0.0
  %88 = vmatprep.subr.mxu0 0.0
  %89 = vmatpush1.msra.mxu0 0.0
  %90 = vmatprep.subr.mxu0 0.0
  %91 = vmatpush1.msra.mxu0 0.0
  %92 = vmatprep.subr.mxu0 0.0
  %93 = vmatpush1.msra.mxu0 0.0
  %94 = vmatprep.subr.mxu0 0.0
  %95 = vmatpush1.msra.mxu0 0.0
  %96 = vmatprep.subr.mxu0 0.0
  %97 = vmatpush1.msra.mxu0 0.0
  %98 = vmatprep.subr.mxu0 0.0
  %99 = vmatpush1.msra.mxu0 0.0
  %100 = vmatprep.subr.mxu0 0.0
  %101 = vmatpush1.msra.mxu0 0.0
  %102 = vmatprep.subr.mxu0 0.0
  %103 = vmatpush1.msra.mxu0 %v32
  %104 = vmatprep.subr.mxu0 0.0
  %105 = vmatpush1.msra.mxu0 %v31
  %106 = vmatprep.subr.mxu0 0.0
  %107 = vmatpush1.msra.mxu0 %v30
  %108 = vmatprep.subr.mxu0 0.0
  %109 = vmatpush1.msra.mxu0 %v29
  %110 = vmatprep.subr.mxu0 0.0
  %111 = vmatpush1.msra.mxu0 %v28
  %112 = vmatprep.subr.mxu0 0.0
  %113 = vmatpush1.msra.mxu0 %v27
  %114 = vmatprep.subr.mxu0 0.0
  %115 = vmatpush2.msra.mxu0 0.0
  %116 = vmatprep.subr.mxu0 0.0
  %117 = vmatpush2.msra.mxu0 0.0
  %118 = vmatprep.subr.mxu0 0.0
  %119 = vmatpush2.msra.mxu0 0.0
  %120 = vmatprep.subr.mxu0 0.0
  %121 = vmatpush2.msra.mxu0 0.0
  %122 = vmatprep.subr.mxu0 0.0
  %123 = vmatpush2.msra.mxu0 0.0
  %124 = vmatprep.subr.mxu0 0.0
  %125 = vmatpush2.msra.mxu0 0.0
  %126 = vmatprep.subr.mxu0 0.0
  %127 = vmatpush2.msra.mxu0 0.0
  %128 = vmatprep.subr.mxu0 0.0
  %129 = vmatpush2.msra.mxu0 0.0
  %130 = vmatprep.subr.mxu0 0.0
  %131 = vmatpush2.msra.mxu0 0.0
  %132 = vmatprep.subr.mxu0 0.0
  %133 = vmatpush2.msra.mxu0 0.0
  %134 = vmatprep.subr.mxu0 0.0
  %135 = vmatpush2.msra.mxu0 0.0
  %136 = vmatprep.subr.mxu0 0.0
  %137 = vmatpush2.msra.mxu0 0.0
  %138 = vmatprep.subr.mxu0 0.0
  %139 = vmatpush2.msra.mxu0 0.0
  %140 = vmatprep.subr.mxu0 0.0
  %141 = vmatpush2.msra.mxu0 0.0
  %142 = vmatprep.subr.mxu0 0.0
  %143 = vmatpush2.msra.mxu0 0.0
  %144 = vmatprep.subr.mxu0 0.0
  %145 = vmatpush2.msra.mxu0 0.0
  %146 = vmatprep.mubr.f32.mxu0 0.0
  %147 = vmatmul.mubr.f32.gmra.mxu0 %v35
  %v148 = vpop.f32.mrf.mxu0
  %v149 = vadd.f32 0.0, %v148
  %v150 = vpop.f32.mrf.mxu0
  %151 = vmatprep.mubr.f32.mxu0 0.0
  %152 = vmatmul.mubr.f32.gmra.mxu0 %v38
  %v153 = vpop.f32.mrf.mxu0
  %v154 = vadd.f32 0.0, %v153
  %v155 = vpop.f32.mrf.mxu0
  %156 = vmatprep.mubr.f32.mxu0 0.0
  %157 = vmatmul.mubr.f32.gmra.mxu0 %v41
  %v158 = vpop.f32.mrf.mxu0
  %v159 = vadd.f32 0.0, %v158
  %v160 = vpop.f32.mrf.mxu0
  %161 = vmatprep.mubr.f32.mxu0 0.0
  %162 = vmatmul.mubr.f32.gmra.mxu0 %v44
  %v163 = vpop.f32.mrf.mxu0
  %v164 = vadd.f32 0.0, %v163
  %v165 = vpop.f32.mrf.mxu0
  %166 = vmatprep.mubr.f32.mxu0 0.0
  %167 = vmatmul.mubr.f32.gmra.mxu0 %v47
  %v168 = vpop.f32.mrf.mxu0
  %v169 = vadd.f32 0.0, %v168
  %v170 = vpop.f32.mrf.mxu0
  %171 = vmatprep.mubr.f32.mxu0 0.0
  %172 = vmatmul.mubr.f32.gmra.mxu0 %v50
  %v173 = vpop.f32.mrf.mxu0
  %v174 = vadd.f32 0.0, %v173
  %v175 = vpop.f32.mrf.mxu0
  %176 = vmatprep.mubr.f32.mxu0 0.0
  %177 = vmatmul.mubr.f32.gmra.mxu0 %v53
  %v178 = vpop.f32.mrf.mxu0
  %v179 = vadd.f32 0.0, %v178
  %v180 = vpop.f32.mrf.mxu0
  %181 = vmatprep.mubr.f32.mxu0 0.0
  %182 = vmatmul.mubr.f32.gmra.mxu0 %v56
  %v183 = vpop.f32.mrf.mxu0
  %v184 = vadd.f32 0.0, %v183
  %v185 = vpop.f32.mrf.mxu0
  %186 = vmatprep.mubr.f32.mxu0 0.0
  %187 = vmatmul.mubr.f32.gmra.mxu0 %v59
  %v188 = vpop.f32.mrf.mxu0
  %v189 = vadd.f32 0.0, %v188
  %v190 = vpop.f32.mrf.mxu0
  %191 = vmatprep.mubr.f32.mxu0 0.0
  %192 = vmatmul.mubr.f32.gmra.mxu0 %v62
  %v193 = vpop.f32.mrf.mxu0
  %v194 = vadd.f32 0.0, %v193
  %v195 = vpop.f32.mrf.mxu0
  %196 = vmatprep.mubr.f32.mxu0 0.0
  %197 = vmatmul.mubr.f32.gmra.mxu0 %v65
  %v198 = vpop.f32.mrf.mxu0
  %v199 = vadd.f32 0.0, %v198
  %v200 = vpop.f32.mrf.mxu0
  %201 = vmatprep.mubr.f32.mxu0 0.0
  %202 = vmatmul.mubr.f32.gmra.mxu0 %v68
  %v203 = vpop.f32.mrf.mxu0
  %v204 = vadd.f32 0.0, %v203
  %v205 = vpop.f32.mrf.mxu0
  %206 = vmatprep.mubr.f32.mxu0 0.0
  %207 = vmatmul.mubr.f32.gmra.mxu0 %v71
  %v208 = vpop.f32.mrf.mxu0
  %v209 = vadd.f32 0.0, %v208
  %v210 = vpop.f32.mrf.mxu0
  %211 = vmatprep.mubr.f32.mxu0 0.0
  %212 = vmatmul.mubr.f32.gmra.mxu0 %v74
  %v213 = vpop.f32.mrf.mxu0
  %v214 = vadd.f32 0.0, %v213
  %v215 = vpop.f32.mrf.mxu0
  %216 = vmatprep.mubr.f32.mxu0 0.0
  %217 = vmatmul.mubr.f32.gmra.mxu0 %v77
  %v218 = vpop.f32.mrf.mxu0
  %v219 = vadd.f32 0.0, %v218
  %v220 = vpop.f32.mrf.mxu0
  %221 = vmatprep.mubr.f32.mxu0 0.0
  %222 = vmatmul.mubr.f32.gmra.mxu0 %v80
  %v223 = vpop.f32.mrf.mxu0
  %v224 = vadd.f32 0.0, %v223
  %v225 = vpop.f32.mrf.mxu0
  %226 = vdwg.mxu0
  %v227 = vmul.f32 %v149, %v149
  %v228 = vmul.f32 %v154, %v154
  %v229 = vmul.f32 %v159, %v159
  %v230 = vmul.f32 %v164, %v164
  %v231 = vmul.f32 %v169, %v169
  %v232 = vmul.f32 %v174, %v174
  %v233 = vmul.f32 %v179, %v179
  %v234 = vmul.f32 %v184, %v184
  %v235 = vmul.f32 %v189, %v189
  %v236 = vmul.f32 %v194, %v194
  %v237 = vmul.f32 %v199, %v199
  %v238 = vmul.f32 %v204, %v204
  %v239 = vmul.f32 %v209, %v209
  %v240 = vmul.f32 %v214, %v214
  %v241 = vmul.f32 %v219, %v219
  %v242 = vmul.f32 %v224, %v224
  %v243 = vsel %vm33, %v227, 0.0
  %244 = vadd.xlane.f32.xlu0 %v243
  %v245 = vpop.xlane.xlu0 %244
  %v246 = vsel %vm33, %v228, 0.0
  %247 = vadd.xlane.f32.xlu0 %v246
  %v248 = vpop.xlane.xlu0 %247
  %v249 = vsel %vm33, %v229, 0.0
  %250 = vadd.xlane.f32.xlu0 %v249
  %v251 = vpop.xlane.xlu0 %250
  %v252 = vsel %vm33, %v230, 0.0
  %253 = vadd.xlane.f32.xlu0 %v252
  %v254 = vpop.xlane.xlu0 %253
  %v255 = vsel %vm33, %v231, 0.0
  %256 = vadd.xlane.f32.xlu0 %v255
  %v257 = vpop.xlane.xlu0 %256
  %v258 = vsel %vm33, %v232, 0.0
  %259 = vadd.xlane.f32.xlu0 %v258
  %v260 = vpop.xlane.xlu0 %259
  %v261 = vsel %vm33, %v233, 0.0
  %262 = vadd.xlane.f32.xlu0 %v261
  %v263 = vpop.xlane.xlu0 %262
  %v264 = vsel %vm33, %v234, 0.0
  %265 = vadd.xlane.f32.xlu0 %v264
  %v266 = vpop.xlane.xlu0 %265
  %v267 = vsel %vm33, %v235, 0.0
  %268 = vadd.xlane.f32.xlu0 %v267
  %v269 = vpop.xlane.xlu0 %268
  %v270 = vsel %vm33, %v236, 0.0
  %271 = vadd.xlane.f32.xlu0 %v270
  %v272 = vpop.xlane.xlu0 %271
  %v273 = vsel %vm33, %v237, 0.0
  %274 = vadd.xlane.f32.xlu0 %v273
  %v275 = vpop.xlane.xlu0 %274
  %v276 = vsel %vm33, %v238, 0.0
  %277 = vadd.xlane.f32.xlu0 %v276
  %v278 = vpop.xlane.xlu0 %277
  %v279 = vsel %vm33, %v239, 0.0
  %280 = vadd.xlane.f32.xlu0 %v279
  %v281 = vpop.xlane.xlu0 %280
  %v282 = vsel %vm33, %v240, 0.0
  %283 = vadd.xlane.f32.xlu0 %v282
  %v284 = vpop.xlane.xlu0 %283
  %v285 = vsel %vm33, %v241, 0.0
  %286 = vadd.xlane.f32.xlu0 %v285
  %v287 = vpop.xlane.xlu0 %286
  %v288 = vsel %vm33, %v242, 0.0
  %289 = vadd.xlane.f32.xlu0 %v288
  %v290 = vpop.xlane.xlu0 %289
  %v291 = vsub.f32 0.0, %v245
  %v292 = vsub.f32 0.0, %v248
  %v293 = vsub.f32 0.0, %v251
  %v294 = vsub.f32 0.0, %v254
  %v295 = vsub.f32 0.0, %v257
  %v296 = vsub.f32 0.0, %v260
  %v297 = vsub.f32 0.0, %v263
  %v298 = vsub.f32 0.0, %v266
  %v299 = vsub.f32 0.0, %v269
  %v300 = vsub.f32 0.0, %v272
  %v301 = vsub.f32 0.0, %v275
  %v302 = vsub.f32 0.0, %v278
  %v303 = vsub.f32 0.0, %v281
  %v304 = vsub.f32 0.0, %v284
  %v305 = vsub.f32 0.0, %v287
  %v306 = vsub.f32 0.0, %v290
  %vm307 = vcmask 7168
  %308 = vst.msk [vmem:[%s2] sm:$0xff] %vm307, %v291
  %309 = vst.msk [vmem:[%s2 + $0x8] sm:$0xff] %vm307, %v292
  %310 = vst.msk [vmem:[%s2 + $0x10] sm:$0xff] %vm307, %v293
  %311 = vst.msk [vmem:[%s2 + $0x18] sm:$0xff] %vm307, %v294
  %312 = vst.msk [vmem:[%s2 + $0x20] sm:$0xff] %vm307, %v295
  %313 = vst.msk [vmem:[%s2 + $0x28] sm:$0xff] %vm307, %v296
  %314 = vst.msk [vmem:[%s2 + $0x30] sm:$0xff] %vm307, %v297
  %315 = vst.msk [vmem:[%s2 + $0x38] sm:$0xff] %vm307, %v298
  %316 = vst.msk [vmem:[%s2 + $0x40] sm:$0xff] %vm307, %v299
  %317 = vst.msk [vmem:[%s2 + $0x48] sm:$0xff] %vm307, %v300
  %318 = vst.msk [vmem:[%s2 + $0x50] sm:$0xff] %vm307, %v301
  %319 = vst.msk [vmem:[%s2 + $0x58] sm:$0xff] %vm307, %v302
  %320 = vst.msk [vmem:[%s2 + $0x60] sm:$0xff] %vm307, %v303
  %321 = vst.msk [vmem:[%s2 + $0x68] sm:$0xff] %vm307, %v304
  %322 = vst.msk [vmem:[%s2 + $0x70] sm:$0xff] %vm307, %v305
  %323 = vst.msk [vmem:[%s2 + $0x78] sm:$0xff] %vm307, %v306
  // Predicated region
  $region10: #{tpu_custom_call.1} parent=0 // pred_check
    _
  $region11: #{tpu_custom_call.1} parent=0 // pred_check_branch
    %325 = sbr.rel (0) target = $region13
  $region12: #{tpu_custom_call.1} parent=0 // pred_region
    _
  $region13: #{tpu_custom_call.1} parent=0 // pred_fallthru
    _
  // Predicated region
  $region14: #{tpu_custom_call.1} parent=0 // pred_check
    _
  $region15: #{tpu_custom_call.1} parent=0 // pred_check_branch
    %327 = sbr.rel (0) target = $region17
  $region16: #{tpu_custom_call.1} parent=0 // pred_region
    _
  $region17: #{tpu_custom_call.1} parent=0 // pred_fallthru
    _

</llo_original>
